<compile_context>
chip_gen: v6e
topology: v6e:2x2x1
jax: 0.10.0
libtpu: 0.0.40
codegen_flags: <defaults>
</compile_context>

<pallas_src>
import functools

import numpy as np
import jax
import jax.numpy as jnp
from jax.experimental import pallas as pl
from jax.experimental.pallas import tpu as pltpu

BN_EPS = 1e-5


# ------------------------------ Pallas kernel -------------------------------

def _convblock_kernel(x_ref, w1_ref, s1_ref, h1_ref, w2_ref, s2_ref, h2_ref,
                      o_ref, ypad_ref, *, H, W, Cin, Cout, BT):
    """Fused ConvBlock (eval mode) for a block of BT batch elements.

    x_ref:    (BT, H+2, W+2, Cin)   bf16 NHWC input, pre-haloed in the wrapper
    w1_ref:   (9*Cin, Cout)         bf16 im2col conv1 weights (rows ordered ky,kx,ci)
    s1/h1:    (1, Cout)             f32 folded BN1 scale / shift
    w2_ref:   (9*Cout, Cout)        bf16 im2col conv2 weights
    s2/h2:    (1, Cout)             f32 folded BN2 scale / shift
    o_ref:    (BT, H/2, W/2, Cout)  bf16 pooled NHWC output (lane-dense, Cout=128k)
    ypad_ref: VMEM (BT, H+2, W+2, Cout) bf16 haloed-intermediate scratch
    """
    H2, W2 = H // 2, W // 2
    M = BT * H * W

    def im2col(xp, c):
        # xp: (BT, H+2, W+2, c) haloed activation -> (M, 9*c) patch.
        # Column order (ky, kx, ci) matches the weight row order from prepare_params.
        # With Cout padded to 128, the conv2 taps are full-lane-width slices.
        cols = []
        for ky in range(3):
            for kx in range(3):
                cols.append(xp[:, ky:ky + H, kx:kx + W, :].reshape(M, c))
        return jnp.concatenate(cols, axis=1)

    # ---- conv1 + BN1 + ReLU (one big-K MXU matmul over the whole batch block) ----
    p1 = im2col(x_ref[...], Cin)                                       # (M, 9*Cin) bf16
    y1 = jnp.dot(p1, w1_ref[...], preferred_element_type=jnp.float32)  # (M, Cout) f32
    y1 = jnp.maximum(y1 * s1_ref[...] + h1_ref[...], 0.0)              # folded BN + ReLU

    # ---- build conv2 halo in VMEM: zero only the 1-px border, overwrite interior ----
    zr = jnp.zeros((BT, 1, W + 2, Cout), ypad_ref.dtype)
    zc = jnp.zeros((BT, H + 2, 1, Cout), ypad_ref.dtype)
    ypad_ref[:, 0:1, :, :] = zr
    ypad_ref[:, H + 1:H + 2, :, :] = zr
    ypad_ref[:, :, 0:1, :] = zc
    ypad_ref[:, :, W + 1:W + 2, :] = zc
    ypad_ref[:, 1:H + 1, 1:W + 1, :] = (
        y1.reshape(BT, H, W, Cout).astype(ypad_ref.dtype))
    # TODO(synk): merged (H+2, (W+2)*Cout) lane layout would make this interior
    #             write a lane-contiguous slab at larger H*W.

    # ---- conv2 + BN2 + ReLU (intermediate never leaves VMEM) ----
    p2 = im2col(ypad_ref[...], Cout)                                   # (M, 9*Cout) bf16
    y2 = jnp.dot(p2, w2_ref[...], preferred_element_type=jnp.float32)  # (M, Cout) f32
    y2 = jnp.maximum(y2 * s2_ref[...] + h2_ref[...], 0.0)

    # ---- 2x2 average pool: strided-add epilogue (no pool matrix) ----
    y2 = y2.reshape(BT * H * W2, 2, Cout)        # pair adjacent columns (w)
    y2 = y2[:, 0, :] + y2[:, 1, :]               # (BT*H*W2, Cout)
    y2 = y2.reshape(BT * H2, 2, W2, Cout)        # pair adjacent rows (h)
    pooled = (y2[:, 0] + y2[:, 1]) * 0.25        # (BT*H2, W2, Cout)
    o_ref[...] = pooled.reshape(BT, H2, W2, Cout).astype(o_ref.dtype)


# ------------------------------ wrapper / glue -------------------------------

def convblock_forward(x_nchw, params, *, out_channels):
    """ConvBlock.forward (eval mode, pool_type='avg', pool_size=(2, 2)).

    x_nchw: (B, Cin, H, W) float32.  Returns (B, out_channels, H//2, W//2) float32.
    `params` must come from prepare_params (weights already padded/im2col'd/bf16)."""
    B, Cin, H, W = x_nchw.shape
    assert H % 2 == 0 and W % 2 == 0, "2x2 avg pool path assumes even H, W"
    cin_p = params['w1'].shape[0] // 9
    cout_p = params['w1'].shape[1]
    assert Cin <= cin_p, "input channels do not match the prepared weights"
    H2, W2 = H // 2, W // 2

    # NCHW -> NHWC, bf16, channel pad, and build the conv1 halo ONCE here (one
    # fused XLA pass) so the kernel needs no conv1 halo scratch / fill.
    x = jnp.transpose(x_nchw, (0, 2, 3, 1)).astype(jnp.bfloat16)
    x = jnp.pad(x, ((0, 0), (1, 1), (1, 1), (0, cin_p - Cin)))

    # Batch blocking: fatten each grid step (bigger M per MXU pass, fewer
    # per-step overheads) while keeping >=2 grid steps whenever B >= 2 so that
    # v7x's two TensorCores both get a "parallel" step.
    cap = min(8, max(1, B // 2))
    b_tile = max(d for d in range(1, cap + 1) if B % d == 0)
    grid = (B // b_tile,)

    kern = functools.partial(_convblock_kernel, H=H, W=W,
                             Cin=cin_p, Cout=cout_p, BT=b_tile)
    out = pl.pallas_call(
        kern,
        out_shape=jax.ShapeDtypeStruct((B, H2, W2, cout_p), jnp.bfloat16),
        grid=grid,
        in_specs=[
            pl.BlockSpec((b_tile, H + 2, W + 2, cin_p), lambda b: (b, 0, 0, 0)),  # x (haloed)
            pl.BlockSpec((9 * cin_p, cout_p), lambda b: (0, 0)),                  # w1 (bf16)
            pl.BlockSpec((1, cout_p), lambda b: (0, 0)),                          # bn1 scale
            pl.BlockSpec((1, cout_p), lambda b: (0, 0)),                          # bn1 shift
            pl.BlockSpec((9 * cout_p, cout_p), lambda b: (0, 0)),                 # w2 (bf16)
            pl.BlockSpec((1, cout_p), lambda b: (0, 0)),                          # bn2 scale
            pl.BlockSpec((1, cout_p), lambda b: (0, 0)),                          # bn2 shift
        ],
        out_specs=pl.BlockSpec((b_tile, H2, W2, cout_p), lambda b: (b, 0, 0, 0)),
        scratch_shapes=[
            pltpu.VMEM((b_tile, H + 2, W + 2, cout_p), jnp.bfloat16),  # conv2 halo
        ],
        compiler_params=pltpu.CompilerParams(
            dimension_semantics=("parallel",)),   # batch blocks are independent
    )(x, params['w1'], params['s1'], params['h1'],
      params['w2'], params['s2'], params['h2'])

    # NHWC bf16 with Cout padded to 128 is what a following ConvBlock would
    # consume directly; convert to the module's NCHW f32 interface here.
    out = out[..., :out_channels]
    return jnp.transpose(out, (0, 3, 1, 2)).astype(jnp.float32)


# -------------------------------- parameters ---------------------------------

def init_convblock_params(key, in_channels, out_channels):
    """Raw (PyTorch-layout) parameters matching ConvBlock.init_weight()."""
    k1, k2, k3, k4 = jax.random.split(key, 4)

    def xavier_conv(k, cout, cin):
        bound = float(np.sqrt(6.0 / (cin * 9 + cout * 9)))             # xavier_uniform_
        return jax.random.uniform(k, (cout, cin, 3, 3), jnp.float32, -bound, bound)

    def bn_state(k, c):
        # gamma=1 / beta=0 per init_bn(); running stats randomized so the
        # eval-mode BN fold is actually exercised.
        km, kv = jax.random.split(k)
        return dict(g=jnp.ones((c,), jnp.float32),
                    b=jnp.zeros((c,), jnp.float32),
                    m=0.1 * jax.random.normal(km, (c,), jnp.float32),
                    v=jax.random.uniform(kv, (c,), jnp.float32, 0.5, 1.5))

    return dict(conv1_w=xavier_conv(k1, out_channels, in_channels),
                conv2_w=xavier_conv(k2, out_channels, out_channels),
                bn1=bn_state(k3, out_channels),
                bn2=bn_state(k4, out_channels))


def prepare_params(raw, eps=BN_EPS):
    """One-time weight prep: channel pad + im2col reshape + bf16 cast + BN fold.

    Cout is zero-padded to a multiple of 128 (MXU width / lane density on
    v6e & v7x); Cin is padded to a multiple of 8.  Padded output channels are
    exact zeros end-to-end and are sliced off in the wrapper."""
    def round_up(v, m):
        return ((v + m - 1) // m) * m

    cout = int(raw['conv1_w'].shape[0])
    cin = int(raw['conv1_w'].shape[1])
    cin_p = max(8, round_up(cin, 8))
    cout_p = max(128, round_up(cout, 128))

    def prep_w(w_oihw, cin_pad_to):
        co, ci = int(w_oihw.shape[0]), int(w_oihw.shape[1])
        w = jnp.pad(w_oihw, ((0, cout_p - co), (0, cin_pad_to - ci), (0, 0), (0, 0)))
        # (ky, kx, cin, cout): rows ordered (ky, kx, ci) to match the kernel im2col.
        w = jnp.transpose(w, (2, 3, 1, 0)).reshape(9 * cin_pad_to, cout_p)
        return w.astype(jnp.bfloat16)

    def fold(bn):
        s = bn['g'] / jnp.sqrt(bn['v'] + eps)
        h = bn['b'] - bn['m'] * s
        c = s.shape[0]
        s = jnp.pad(s, (0, cout_p - c))        # padded channels stay exactly 0
        h = jnp.pad(h, (0, cout_p - c))
        return (s.reshape(1, cout_p).astype(jnp.float32),
                h.reshape(1, cout_p).astype(jnp.float32))

    s1, h1 = fold(raw['bn1'])
    s2, h2 = fold(raw['bn2'])
    return dict(w1=prep_w(raw['conv1_w'], cin_p), s1=s1, h1=h1,
                w2=prep_w(raw['conv2_w'], cout_p), s2=s2, h2=h2)


# ------------------------------ pure-JAX reference ---------------------------

def ref_convblock(x_nchw, raw, eps=BN_EPS):
    """f32 reference of ConvBlock.forward (eval, pool_type='avg', pool_size=(2,2))."""
    def conv(x, w):
        return jax.lax.conv_general_dilated(
            x, w, window_strides=(1, 1), padding=((1, 1), (1, 1)),
            dimension_numbers=('NCHW', 'OIHW', 'NCHW'))

    def bn(x, p):
        inv = (p['g'] / jnp.sqrt(p['v'] + eps))[None, :, None, None]
        return (x - p['m'][None, :, None, None]) * inv + p['b'][None, :, None, None]

    x = jnp.maximum(bn(conv(x_nchw, raw['conv1_w']), raw['bn1']), 0.0)
    x = jnp.maximum(bn(conv(x, raw['conv2_w']), raw['bn2']), 0.0)
    B, C, H, W = x.shape
    return x.reshape(B, C, H // 2, 2, W // 2, 2).mean(axis=(3, 5))


# ----------------------------------- main -------------------------------------

if __name__ == "__main__":
    key = jax.random.PRNGKey(0)
    k_x, k_p = jax.random.split(key)

    B, Cin, Cout, H, W = 2, 4, 64, 16, 16
    x = jax.random.normal(k_x, (B, Cin, H, W), dtype=jnp.float32)

    raw = init_convblock_params(k_p, Cin, Cout)
    params = prepare_params(raw)            # weights prepped ONCE, outside the forward

    fwd = jax.jit(convblock_forward, static_argnames=("out_channels",))
    out = jax.block_until_ready(fwd(x, params, out_channels=Cout))

    assert out.shape == (B, Cout, H // 2, W // 2), out.shape
    assert bool(jnp.all(jnp.isfinite(out)))

    ref = ref_convblock(x, raw)             # f32 reference; kernel uses bf16 matmul inputs
    max_err = float(jnp.max(jnp.abs(out - ref)))
    assert max_err < 5e-2, f"max abs error vs reference: {max_err}"

    print("KERNEL_OK")
</pallas_src>

<mosaic_0001>
module attributes {stable_mosaic.version = 11 : i64} {
  func.func @_convblock_kernel(%arg0: i32, %arg1: memref<1x18x18x8xbf16, #tpu.memory_space<vmem>>, %arg2: memref<72x128xbf16, #tpu.memory_space<vmem>>, %arg3: memref<1x128xf32, #tpu.memory_space<vmem>>, %arg4: memref<1x128xf32, #tpu.memory_space<vmem>>, %arg5: memref<1152x128xbf16, #tpu.memory_space<vmem>>, %arg6: memref<1x128xf32, #tpu.memory_space<vmem>>, %arg7: memref<1x128xf32, #tpu.memory_space<vmem>>, %arg8: memref<1x8x8x128xbf16, #tpu.memory_space<vmem>>, %arg9: memref<1x18x18x128xbf16, #tpu.memory_space<vmem>>) attributes {dimension_semantics = [#tpu.dimension_semantics<parallel>], iteration_bounds = array<i64: 2>, scalar_prefetch = 0 : i64, scratch_operands = 1 : i64, tpu.core_type = #tpu.core_type<tc>, window_params = [{transform_indices = @transform_0, window_bounds = array<i64: 1, 18, 18, 8>}, {pipeline_mode = #tpu.pipeline_mode<synchronous>, transform_indices = @transform_1, window_bounds = array<i64: 72, 128>}, {pipeline_mode = #tpu.pipeline_mode<synchronous>, transform_indices = @transform_2, window_bounds = array<i64: 1, 128>}, {pipeline_mode = #tpu.pipeline_mode<synchronous>, transform_indices = @transform_3, window_bounds = array<i64: 1, 128>}, {pipeline_mode = #tpu.pipeline_mode<synchronous>, transform_indices = @transform_4, window_bounds = array<i64: 1152, 128>}, {pipeline_mode = #tpu.pipeline_mode<synchronous>, transform_indices = @transform_5, window_bounds = array<i64: 1, 128>}, {pipeline_mode = #tpu.pipeline_mode<synchronous>, transform_indices = @transform_6, window_bounds = array<i64: 1, 128>}, {transform_indices = @transform_7, window_bounds = array<i64: 1, 8, 8, 128>}]} {
    %c0 = arith.constant 0 : index
    %c0_0 = arith.constant 0 : index
    %c0_1 = arith.constant 0 : index
    %c0_2 = arith.constant 0 : index
    %0 = vector.load %arg1[%c0, %c0_0, %c0_1, %c0_2] : memref<1x18x18x8xbf16, #tpu.memory_space<vmem>>, vector<1x18x18x8xbf16>
    %1 = vector.extract_strided_slice %0 {offsets = [0, 0, 0, 0], sizes = [1, 16, 16, 8], strides = [1, 1, 1, 1]} : vector<1x18x18x8xbf16> to vector<1x16x16x8xbf16>
    %2 = vector.shape_cast %1 : vector<1x16x16x8xbf16> to vector<256x8xbf16>
    %3 = vector.extract_strided_slice %0 {offsets = [0, 0, 1, 0], sizes = [1, 16, 16, 8], strides = [1, 1, 1, 1]} : vector<1x18x18x8xbf16> to vector<1x16x16x8xbf16>
    %4 = vector.shape_cast %3 : vector<1x16x16x8xbf16> to vector<256x8xbf16>
    %5 = vector.extract_strided_slice %0 {offsets = [0, 0, 2, 0], sizes = [1, 16, 16, 8], strides = [1, 1, 1, 1]} : vector<1x18x18x8xbf16> to vector<1x16x16x8xbf16>
    %6 = vector.shape_cast %5 : vector<1x16x16x8xbf16> to vector<256x8xbf16>
    %7 = vector.extract_strided_slice %0 {offsets = [0, 1, 0, 0], sizes = [1, 16, 16, 8], strides = [1, 1, 1, 1]} : vector<1x18x18x8xbf16> to vector<1x16x16x8xbf16>
    %8 = vector.shape_cast %7 : vector<1x16x16x8xbf16> to vector<256x8xbf16>
    %9 = vector.extract_strided_slice %0 {offsets = [0, 1, 1, 0], sizes = [1, 16, 16, 8], strides = [1, 1, 1, 1]} : vector<1x18x18x8xbf16> to vector<1x16x16x8xbf16>
    %10 = vector.shape_cast %9 : vector<1x16x16x8xbf16> to vector<256x8xbf16>
    %11 = vector.extract_strided_slice %0 {offsets = [0, 1, 2, 0], sizes = [1, 16, 16, 8], strides = [1, 1, 1, 1]} : vector<1x18x18x8xbf16> to vector<1x16x16x8xbf16>
    %12 = vector.shape_cast %11 : vector<1x16x16x8xbf16> to vector<256x8xbf16>
    %13 = vector.extract_strided_slice %0 {offsets = [0, 2, 0, 0], sizes = [1, 16, 16, 8], strides = [1, 1, 1, 1]} : vector<1x18x18x8xbf16> to vector<1x16x16x8xbf16>
    %14 = vector.shape_cast %13 : vector<1x16x16x8xbf16> to vector<256x8xbf16>
    %15 = vector.extract_strided_slice %0 {offsets = [0, 2, 1, 0], sizes = [1, 16, 16, 8], strides = [1, 1, 1, 1]} : vector<1x18x18x8xbf16> to vector<1x16x16x8xbf16>
    %16 = vector.shape_cast %15 : vector<1x16x16x8xbf16> to vector<256x8xbf16>
    %17 = vector.extract_strided_slice %0 {offsets = [0, 2, 2, 0], sizes = [1, 16, 16, 8], strides = [1, 1, 1, 1]} : vector<1x18x18x8xbf16> to vector<1x16x16x8xbf16>
    %18 = vector.shape_cast %17 : vector<1x16x16x8xbf16> to vector<256x8xbf16>
    %19 = tpu.concatenate %2, %4, %6, %8, %10, %12, %14, %16, %18 in 1 : vector<256x8xbf16>, vector<256x8xbf16>, vector<256x8xbf16>, vector<256x8xbf16>, vector<256x8xbf16>, vector<256x8xbf16>, vector<256x8xbf16>, vector<256x8xbf16>, vector<256x8xbf16> -> vector<256x72xbf16>
    %c0_3 = arith.constant 0 : index
    %c0_4 = arith.constant 0 : index
    %20 = vector.load %arg2[%c0_3, %c0_4] : memref<72x128xbf16, #tpu.memory_space<vmem>>, vector<72x128xbf16>
    %cst = arith.constant dense<0.000000e+00> : vector<256x128xf32>
    %21 = tpu.matmul %19, %20, %cst {dimension_numbers = #tpu.dot_dimension_numbers<[1], [0], [0], [1], [0, 0, 1, 1], [], []>} : vector<256x72xbf16>, vector<72x128xbf16>, vector<256x128xf32> -> vector<256x128xf32>
    %c0_5 = arith.constant 0 : index
    %c0_6 = arith.constant 0 : index
    %22 = vector.load %arg3[%c0_5, %c0_6] : memref<1x128xf32, #tpu.memory_space<vmem>>, vector<1x128xf32>
    %23 = vector.broadcast %22 : vector<1x128xf32> to vector<256x128xf32>
    %24 = arith.mulf %21, %23 : vector<256x128xf32>
    %c0_7 = arith.constant 0 : index
    %c0_8 = arith.constant 0 : index
    %25 = vector.load %arg4[%c0_7, %c0_8] : memref<1x128xf32, #tpu.memory_space<vmem>>, vector<1x128xf32>
    %26 = vector.broadcast %25 : vector<1x128xf32> to vector<256x128xf32>
    %27 = arith.addf %24, %26 : vector<256x128xf32>
    %cst_9 = arith.constant 0.000000e+00 : f32
    %28 = vector.broadcast %cst_9 : f32 to vector<256x128xf32>
    %29 = arith.maximumf %27, %28 : vector<256x128xf32>
    %cst_10 = arith.constant 0.000000e+00 : bf16
    %30 = vector.broadcast %cst_10 : bf16 to vector<1x1x18x128xbf16>
    %cst_11 = arith.constant 0.000000e+00 : bf16
    %31 = vector.broadcast %cst_11 : bf16 to vector<1x18x1x128xbf16>
    %c0_12 = arith.constant 0 : index
    %c0_13 = arith.constant 0 : index
    %c0_14 = arith.constant 0 : index
    %c0_15 = arith.constant 0 : index
    %32 = vector.load %arg9[%c0_12, %c0_13, %c0_14, %c0_15] : memref<1x18x18x128xbf16, #tpu.memory_space<vmem>>, vector<1x1x18x128xbf16>
    tpu.vector_store %arg9[%c0_12, %c0_13, %c0_14, %c0_15], %30 {strides = array<i32>} : memref<1x18x18x128xbf16, #tpu.memory_space<vmem>>, vector<1x1x18x128xbf16>,
    %c0_16 = arith.constant 0 : index
    %c17 = arith.constant 17 : index
    %c0_17 = arith.constant 0 : index
    %c0_18 = arith.constant 0 : index
    %33 = vector.load %arg9[%c0_16, %c17, %c0_17, %c0_18] : memref<1x18x18x128xbf16, #tpu.memory_space<vmem>>, vector<1x1x18x128xbf16>
    tpu.vector_store %arg9[%c0_16, %c17, %c0_17, %c0_18], %30 {strides = array<i32>} : memref<1x18x18x128xbf16, #tpu.memory_space<vmem>>, vector<1x1x18x128xbf16>,
    %c0_19 = arith.constant 0 : index
    %c0_20 = arith.constant 0 : index
    %c0_21 = arith.constant 0 : index
    %c0_22 = arith.constant 0 : index
    %34 = vector.load %arg9[%c0_19, %c0_20, %c0_21, %c0_22] : memref<1x18x18x128xbf16, #tpu.memory_space<vmem>>, vector<1x18x1x128xbf16>
    tpu.vector_store %arg9[%c0_19, %c0_20, %c0_21, %c0_22], %31 {strides = array<i32>} : memref<1x18x18x128xbf16, #tpu.memory_space<vmem>>, vector<1x18x1x128xbf16>,
    %c0_23 = arith.constant 0 : index
    %c0_24 = arith.constant 0 : index
    %c17_25 = arith.constant 17 : index
    %c0_26 = arith.constant 0 : index
    %35 = vector.load %arg9[%c0_23, %c0_24, %c17_25, %c0_26] : memref<1x18x18x128xbf16, #tpu.memory_space<vmem>>, vector<1x18x1x128xbf16>
    tpu.vector_store %arg9[%c0_23, %c0_24, %c17_25, %c0_26], %31 {strides = array<i32>} : memref<1x18x18x128xbf16, #tpu.memory_space<vmem>>, vector<1x18x1x128xbf16>,
    %36 = vector.shape_cast %29 : vector<256x128xf32> to vector<1x16x16x128xf32>
    %37 = arith.truncf %36 : vector<1x16x16x128xf32> to vector<1x16x16x128xbf16>
    %c0_27 = arith.constant 0 : index
    %c1 = arith.constant 1 : index
    %c1_28 = arith.constant 1 : index
    %c0_29 = arith.constant 0 : index
    %38 = vector.load %arg9[%c0_27, %c1, %c1_28, %c0_29] : memref<1x18x18x128xbf16, #tpu.memory_space<vmem>>, vector<1x16x16x128xbf16>
    tpu.vector_store %arg9[%c0_27, %c1, %c1_28, %c0_29], %37 {strides = array<i32>} : memref<1x18x18x128xbf16, #tpu.memory_space<vmem>>, vector<1x16x16x128xbf16>,
    %c0_30 = arith.constant 0 : index
    %c0_31 = arith.constant 0 : index
    %c0_32 = arith.constant 0 : index
    %c0_33 = arith.constant 0 : index
    %39 = vector.load %arg9[%c0_30, %c0_31, %c0_32, %c0_33] : memref<1x18x18x128xbf16, #tpu.memory_space<vmem>>, vector<1x18x18x128xbf16>
    %40 = vector.extract_strided_slice %39 {offsets = [0, 0, 0, 0], sizes = [1, 16, 16, 128], strides = [1, 1, 1, 1]} : vector<1x18x18x128xbf16> to vector<1x16x16x128xbf16>
    %41 = vector.shape_cast %40 : vector<1x16x16x128xbf16> to vector<256x128xbf16>
    %42 = vector.extract_strided_slice %39 {offsets = [0, 0, 1, 0], sizes = [1, 16, 16, 128], strides = [1, 1, 1, 1]} : vector<1x18x18x128xbf16> to vector<1x16x16x128xbf16>
    %43 = vector.shape_cast %42 : vector<1x16x16x128xbf16> to vector<256x128xbf16>
    %44 = vector.extract_strided_slice %39 {offsets = [0, 0, 2, 0], sizes = [1, 16, 16, 128], strides = [1, 1, 1, 1]} : vector<1x18x18x128xbf16> to vector<1x16x16x128xbf16>
    %45 = vector.shape_cast %44 : vector<1x16x16x128xbf16> to vector<256x128xbf16>
    %46 = vector.extract_strided_slice %39 {offsets = [0, 1, 0, 0], sizes = [1, 16, 16, 128], strides = [1, 1, 1, 1]} : vector<1x18x18x128xbf16> to vector<1x16x16x128xbf16>
    %47 = vector.shape_cast %46 : vector<1x16x16x128xbf16> to vector<256x128xbf16>
    %48 = vector.extract_strided_slice %39 {offsets = [0, 1, 1, 0], sizes = [1, 16, 16, 128], strides = [1, 1, 1, 1]} : vector<1x18x18x128xbf16> to vector<1x16x16x128xbf16>
    %49 = vector.shape_cast %48 : vector<1x16x16x128xbf16> to vector<256x128xbf16>
    %50 = vector.extract_strided_slice %39 {offsets = [0, 1, 2, 0], sizes = [1, 16, 16, 128], strides = [1, 1, 1, 1]} : vector<1x18x18x128xbf16> to vector<1x16x16x128xbf16>
    %51 = vector.shape_cast %50 : vector<1x16x16x128xbf16> to vector<256x128xbf16>
    %52 = vector.extract_strided_slice %39 {offsets = [0, 2, 0, 0], sizes = [1, 16, 16, 128], strides = [1, 1, 1, 1]} : vector<1x18x18x128xbf16> to vector<1x16x16x128xbf16>
    %53 = vector.shape_cast %52 : vector<1x16x16x128xbf16> to vector<256x128xbf16>
    %54 = vector.extract_strided_slice %39 {offsets = [0, 2, 1, 0], sizes = [1, 16, 16, 128], strides = [1, 1, 1, 1]} : vector<1x18x18x128xbf16> to vector<1x16x16x128xbf16>
    %55 = vector.shape_cast %54 : vector<1x16x16x128xbf16> to vector<256x128xbf16>
    %56 = vector.extract_strided_slice %39 {offsets = [0, 2, 2, 0], sizes = [1, 16, 16, 128], strides = [1, 1, 1, 1]} : vector<1x18x18x128xbf16> to vector<1x16x16x128xbf16>
    %57 = vector.shape_cast %56 : vector<1x16x16x128xbf16> to vector<256x128xbf16>
    %58 = tpu.concatenate %41, %43, %45, %47, %49, %51, %53, %55, %57 in 1 : vector<256x128xbf16>, vector<256x128xbf16>, vector<256x128xbf16>, vector<256x128xbf16>, vector<256x128xbf16>, vector<256x128xbf16>, vector<256x128xbf16>, vector<256x128xbf16>, vector<256x128xbf16> -> vector<256x1152xbf16>
    %c0_34 = arith.constant 0 : index
    %c0_35 = arith.constant 0 : index
    %59 = vector.load %arg5[%c0_34, %c0_35] : memref<1152x128xbf16, #tpu.memory_space<vmem>>, vector<1152x128xbf16>
    %cst_36 = arith.constant dense<0.000000e+00> : vector<256x128xf32>
    %60 = tpu.matmul %58, %59, %cst_36 {dimension_numbers = #tpu.dot_dimension_numbers<[1], [0], [0], [1], [0, 0, 1, 1], [], []>} : vector<256x1152xbf16>, vector<1152x128xbf16>, vector<256x128xf32> -> vector<256x128xf32>
    %c0_37 = arith.constant 0 : index
    %c0_38 = arith.constant 0 : index
    %61 = vector.load %arg6[%c0_37, %c0_38] : memref<1x128xf32, #tpu.memory_space<vmem>>, vector<1x128xf32>
    %62 = vector.broadcast %61 : vector<1x128xf32> to vector<256x128xf32>
    %63 = arith.mulf %60, %62 : vector<256x128xf32>
    %c0_39 = arith.constant 0 : index
    %c0_40 = arith.constant 0 : index
    %64 = vector.load %arg7[%c0_39, %c0_40] : memref<1x128xf32, #tpu.memory_space<vmem>>, vector<1x128xf32>
    %65 = vector.broadcast %64 : vector<1x128xf32> to vector<256x128xf32>
    %66 = arith.addf %63, %65 : vector<256x128xf32>
    %cst_41 = arith.constant 0.000000e+00 : f32
    %67 = vector.broadcast %cst_41 : f32 to vector<256x128xf32>
    %68 = arith.maximumf %66, %67 : vector<256x128xf32>
    %69 = vector.shape_cast %68 : vector<256x128xf32> to vector<128x2x128xf32>
    %70 = vector.extract_strided_slice %69 {offsets = [0, 0, 0], sizes = [128, 1, 128], strides = [1, 1, 1]} : vector<128x2x128xf32> to vector<128x1x128xf32>
    %71 = vector.shape_cast %70 : vector<128x1x128xf32> to vector<128x128xf32>
    %72 = vector.extract_strided_slice %69 {offsets = [0, 1, 0], sizes = [128, 1, 128], strides = [1, 1, 1]} : vector<128x2x128xf32> to vector<128x1x128xf32>
    %73 = vector.shape_cast %72 : vector<128x1x128xf32> to vector<128x128xf32>
    %74 = arith.addf %71, %73 : vector<128x128xf32>
    %75 = vector.shape_cast %74 : vector<128x128xf32> to vector<8x2x8x128xf32>
    %76 = vector.extract_strided_slice %75 {offsets = [0, 0, 0, 0], sizes = [8, 1, 8, 128], strides = [1, 1, 1, 1]} : vector<8x2x8x128xf32> to vector<8x1x8x128xf32>
    %77 = vector.shape_cast %76 : vector<8x1x8x128xf32> to vector<8x8x128xf32>
    %78 = vector.extract_strided_slice %75 {offsets = [0, 1, 0, 0], sizes = [8, 1, 8, 128], strides = [1, 1, 1, 1]} : vector<8x2x8x128xf32> to vector<8x1x8x128xf32>
    %79 = vector.shape_cast %78 : vector<8x1x8x128xf32> to vector<8x8x128xf32>
    %80 = arith.addf %77, %79 : vector<8x8x128xf32>
    %cst_42 = arith.constant 2.500000e-01 : f32
    %81 = vector.broadcast %cst_42 : f32 to vector<8x8x128xf32>
    %82 = arith.mulf %80, %81 : vector<8x8x128xf32>
    %83 = vector.shape_cast %82 : vector<8x8x128xf32> to vector<1x8x8x128xf32>
    %84 = arith.truncf %83 : vector<1x8x8x128xf32> to vector<1x8x8x128xbf16>
    %c0_43 = arith.constant 0 : index
    %c0_44 = arith.constant 0 : index
    %c0_45 = arith.constant 0 : index
    %c0_46 = arith.constant 0 : index
    %85 = vector.load %arg8[%c0_43, %c0_44, %c0_45, %c0_46] : memref<1x8x8x128xbf16, #tpu.memory_space<vmem>>, vector<1x8x8x128xbf16>
    tpu.vector_store %arg8[%c0_43, %c0_44, %c0_45, %c0_46], %84 {strides = array<i32>} : memref<1x8x8x128xbf16, #tpu.memory_space<vmem>>, vector<1x8x8x128xbf16>,
    return
  }
  func.func @transform_0(%arg0: i32) -> (i32, i32, i32, i32) {
    %c0_i32 = arith.constant 0 : i32
    %c0_i32_0 = arith.constant 0 : i32
    %c0_i32_1 = arith.constant 0 : i32
    %c0_i32_2 = arith.constant 0 : i32
    return %arg0, %c0_i32, %c0_i32_0, %c0_i32_1 : i32, i32, i32, i32
  }
  func.func @transform_1(%arg0: i32) -> (i32, i32) {
    %c0_i32 = arith.constant 0 : i32
    %c0_i32_0 = arith.constant 0 : i32
    %c0_i32_1 = arith.constant 0 : i32
    return %c0_i32, %c0_i32_0 : i32, i32
  }
  func.func @transform_2(%arg0: i32) -> (i32, i32) {
    %c0_i32 = arith.constant 0 : i32
    %c0_i32_0 = arith.constant 0 : i32
    %c0_i32_1 = arith.constant 0 : i32
    return %c0_i32, %c0_i32_0 : i32, i32
  }
  func.func @transform_3(%arg0: i32) -> (i32, i32) {
    %c0_i32 = arith.constant 0 : i32
    %c0_i32_0 = arith.constant 0 : i32
    %c0_i32_1 = arith.constant 0 : i32
    return %c0_i32, %c0_i32_0 : i32, i32
  }
  func.func @transform_4(%arg0: i32) -> (i32, i32) {
    %c0_i32 = arith.constant 0 : i32
    %c0_i32_0 = arith.constant 0 : i32
    %c0_i32_1 = arith.constant 0 : i32
    return %c0_i32, %c0_i32_0 : i32, i32
  }
  func.func @transform_5(%arg0: i32) -> (i32, i32) {
    %c0_i32 = arith.constant 0 : i32
    %c0_i32_0 = arith.constant 0 : i32
    %c0_i32_1 = arith.constant 0 : i32
    return %c0_i32, %c0_i32_0 : i32, i32
  }
  func.func @transform_6(%arg0: i32) -> (i32, i32) {
    %c0_i32 = arith.constant 0 : i32
    %c0_i32_0 = arith.constant 0 : i32
    %c0_i32_1 = arith.constant 0 : i32
    return %c0_i32, %c0_i32_0 : i32, i32
  }
  func.func @transform_7(%arg0: i32) -> (i32, i32, i32, i32) {
    %c0_i32 = arith.constant 0 : i32
    %c0_i32_0 = arith.constant 0 : i32
    %c0_i32_1 = arith.constant 0 : i32
    %c0_i32_2 = arith.constant 0 : i32
    return %arg0, %c0_i32, %c0_i32_0, %c0_i32_1 : i32, i32, i32, i32
  }
}

</mosaic_0001>

<llo_original>
// kernel: convblock_forward.1
$region0: #{convblock_forward.1}
  #allocation0 [shape = 'u32[]', space=smem, size = 0x4, offset = 0x4, fixed_abs, tag = 'smem constant byte address 0x4 - core index']
  #allocation1 [shape = 'u32[144,128]{1,0:T(1,128)}', space=vmem, size = 0x12000, scoped, tag = 'internal scratch']
  #allocation2 [shape = 'bf16[1,18,18,128]{3,2,1,0:T(8,128)(2,1)}', space=vmem, size = 0x1b000, scoped, tag = 'scratch operand']
  %s0 = inlined_call_operand.vmem [shape: bf16[2,18,18,8], index: 0, kind: input, shape index: {}]
  %s1 = inlined_call_operand.vmem [shape: bf16[72,128], index: 1, kind: input, shape index: {}]
  %s2 = inlined_call_operand.vmem [shape: f32[1,128], index: 2, kind: input, shape index: {}]
  %s3 = inlined_call_operand.vmem [shape: f32[1,128], index: 3, kind: input, shape index: {}]
  %s4 = inlined_call_operand.vmem [shape: bf16[1152,128], index: 4, kind: input, shape index: {}]
  %s5 = inlined_call_operand.vmem [shape: f32[1,128], index: 5, kind: input, shape index: {}]
  %s6 = inlined_call_operand.vmem [shape: f32[1,128], index: 6, kind: input, shape index: {}]
  %s7 = inlined_call_operand.vmem [shape: bf16[2,8,8,128], index: 7, kind: output, shape index: {}]
  %s8 = sld [smem:[#allocation0]]
  $region61: #{convblock_forward.1} parent=0
    _
  %s10 = ssub.s32 1, %s8
  %s11 = scalar_select 0, %s10, %s8
  loop: start=0, step=1, limit=4
  $region2: #{convblock_forward.1} parent=0 // loop_pre_header
    _
  $region3: #{convblock_forward.1} parent=0 // loop_header
    %s13 = sphi 0, %s17
    %p14 = scmp.ge.s32.totalorder %s13, 4
    %s23 = sphi 0, %s25
    %s26 = sphi 0, %s23
    %s27 = sphi 0, %s26
    %s43 = sphi 0, %s27
    %s47 = sphi 0, %s47
    %s49 = sphi 0, %s47
    %s50 = sphi 0, %s49
    %s64 = sphi 0, %s50
    %s68 = sphi 0, %s68
    %s70 = sphi 0, %s68
    %s71 = sphi 0, %s70
    %s85 = sphi 0, %s71
    %s89 = sphi 0, %s89
    %s91 = sphi 0, %s89
    %s92 = sphi 0, %s91
    %s106 = sphi 0, %s92
    %s110 = sphi 0, %s110
    %s112 = sphi 0, %s110
    %s113 = sphi 0, %s112
    %s127 = sphi 0, %s113
    %s131 = sphi 0, %s131
    %s133 = sphi 0, %s131
    %s134 = sphi 0, %s133
    %s148 = sphi 0, %s134
    %s152 = sphi 0, %s152
    %s154 = sphi 0, %s152
    %s155 = sphi 0, %s154
    %s169 = sphi 0, %s155
    %s175 = sphi 0, %s177
    %s178 = sphi 0, %s175
    %s179 = sphi 0, %s178
    %s195 = sphi 0, %s179
  $region4: #{convblock_forward.1} parent=0 // loop_header_branch
    %16 = sbr.rel (%p14) target = $region8
  $region5: #{convblock_forward.1} parent=0 // loop_body
    %s18 = ssub.s32 %s13, 1
    %s19 = ssub.s32 %s13, 2
    %s20 = sadd.s32 %s13, 1
    %s21 = ssub.s32 %s13, %s20
    %p22 = scmp.eq.s32.totalorder %s21, 0
    %s24 = sadd.s32 %s23, 1
    %s25 = scalar_select %p22, %s23, %s24
    %p28 = pneg %p22
    %p29 = scmp.eq.s32.totalorder %s13, 1
    %p30 = por %p28, %p29
    %p31 = scmp.ne.s32.totalorder %s23, %s26
    %p32 = scmp.eq.s32.totalorder %s13, 0
    %p33 = por %p31, %p32
    %p34 = scmp.ne.s32.totalorder %s23, %s26
    %p35 = scmp.eq.s32.totalorder %s18, 1
    %p36 = por %p34, %p35
    %p37 = scmp.ne.s32.totalorder %s26, %s27
    %p38 = scmp.eq.s32.totalorder %s18, 0
    %p39 = por %p37, %p38
    %p40 = scmp.ne.s32.totalorder %s26, %s27
    %p41 = scmp.eq.s32.totalorder %s19, 1
    %p42 = por %p40, %p41
    %p44 = scmp.ne.s32.totalorder %s27, %s43
    %p45 = scmp.eq.s32.totalorder %s19, 0
    %p46 = por %p44, %p45
    %s48 = sadd.s32 %s47, 1
    %p51 = scmp.eq.s32.totalorder %s13, 1
    %p52 = scmp.ne.s32.totalorder %s47, %s49
    %p53 = scmp.eq.s32.totalorder %s13, 0
    %p54 = por %p52, %p53
    %p55 = scmp.ne.s32.totalorder %s47, %s49
    %p56 = scmp.eq.s32.totalorder %s18, 1
    %p57 = por %p55, %p56
    %p58 = scmp.ne.s32.totalorder %s49, %s50
    %p59 = scmp.eq.s32.totalorder %s18, 0
    %p60 = por %p58, %p59
    %p61 = scmp.ne.s32.totalorder %s49, %s50
    %p62 = scmp.eq.s32.totalorder %s19, 1
    %p63 = por %p61, %p62
    %p65 = scmp.ne.s32.totalorder %s50, %s64
    %p66 = scmp.eq.s32.totalorder %s19, 0
    %p67 = por %p65, %p66
    %s69 = sadd.s32 %s68, 1
    %p72 = scmp.eq.s32.totalorder %s13, 1
    %p73 = scmp.ne.s32.totalorder %s68, %s70
    %p74 = scmp.eq.s32.totalorder %s13, 0
    %p75 = por %p73, %p74
    %p76 = scmp.ne.s32.totalorder %s68, %s70
    %p77 = scmp.eq.s32.totalorder %s18, 1
    %p78 = por %p76, %p77
    %p79 = scmp.ne.s32.totalorder %s70, %s71
    %p80 = scmp.eq.s32.totalorder %s18, 0
    %p81 = por %p79, %p80
    %p82 = scmp.ne.s32.totalorder %s70, %s71
    %p83 = scmp.eq.s32.totalorder %s19, 1
    %p84 = por %p82, %p83
    %p86 = scmp.ne.s32.totalorder %s71, %s85
    %p87 = scmp.eq.s32.totalorder %s19, 0
    %p88 = por %p86, %p87
    %s90 = sadd.s32 %s89, 1
    %p93 = scmp.eq.s32.totalorder %s13, 1
    %p94 = scmp.ne.s32.totalorder %s89, %s91
    %p95 = scmp.eq.s32.totalorder %s13, 0
    %p96 = por %p94, %p95
    %p97 = scmp.ne.s32.totalorder %s89, %s91
    %p98 = scmp.eq.s32.totalorder %s18, 1
    %p99 = por %p97, %p98
    %p100 = scmp.ne.s32.totalorder %s91, %s92
    %p101 = scmp.eq.s32.totalorder %s18, 0
    %p102 = por %p100, %p101
    %p103 = scmp.ne.s32.totalorder %s91, %s92
    %p104 = scmp.eq.s32.totalorder %s19, 1
    %p105 = por %p103, %p104
    %p107 = scmp.ne.s32.totalorder %s92, %s106
    %p108 = scmp.eq.s32.totalorder %s19, 0
    %p109 = por %p107, %p108
    %s111 = sadd.s32 %s110, 1
    %p114 = scmp.eq.s32.totalorder %s13, 1
    %p115 = scmp.ne.s32.totalorder %s110, %s112
    %p116 = scmp.eq.s32.totalorder %s13, 0
    %p117 = por %p115, %p116
    %p118 = scmp.ne.s32.totalorder %s110, %s112
    %p119 = scmp.eq.s32.totalorder %s18, 1
    %p120 = por %p118, %p119
    %p121 = scmp.ne.s32.totalorder %s112, %s113
    %p122 = scmp.eq.s32.totalorder %s18, 0
    %p123 = por %p121, %p122
    %p124 = scmp.ne.s32.totalorder %s112, %s113
    %p125 = scmp.eq.s32.totalorder %s19, 1
    %p126 = por %p124, %p125
    %p128 = scmp.ne.s32.totalorder %s113, %s127
    %p129 = scmp.eq.s32.totalorder %s19, 0
    %p130 = por %p128, %p129
    %s132 = sadd.s32 %s131, 1
    %p135 = scmp.eq.s32.totalorder %s13, 1
    %p136 = scmp.ne.s32.totalorder %s131, %s133
    %p137 = scmp.eq.s32.totalorder %s13, 0
    %p138 = por %p136, %p137
    %p139 = scmp.ne.s32.totalorder %s131, %s133
    %p140 = scmp.eq.s32.totalorder %s18, 1
    %p141 = por %p139, %p140
    %p142 = scmp.ne.s32.totalorder %s133, %s134
    %p143 = scmp.eq.s32.totalorder %s18, 0
    %p144 = por %p142, %p143
    %p145 = scmp.ne.s32.totalorder %s133, %s134
    %p146 = scmp.eq.s32.totalorder %s19, 1
    %p147 = por %p145, %p146
    %p149 = scmp.ne.s32.totalorder %s134, %s148
    %p150 = scmp.eq.s32.totalorder %s19, 0
    %p151 = por %p149, %p150
    %s153 = sadd.s32 %s152, 1
    %p156 = scmp.eq.s32.totalorder %s13, 1
    %p157 = scmp.ne.s32.totalorder %s152, %s154
    %p158 = scmp.eq.s32.totalorder %s13, 0
    %p159 = por %p157, %p158
    %p160 = scmp.ne.s32.totalorder %s152, %s154
    %p161 = scmp.eq.s32.totalorder %s18, 1
    %p162 = por %p160, %p161
    %p163 = scmp.ne.s32.totalorder %s154, %s155
    %p164 = scmp.eq.s32.totalorder %s18, 0
    %p165 = por %p163, %p164
    %p166 = scmp.ne.s32.totalorder %s154, %s155
    %p167 = scmp.eq.s32.totalorder %s19, 1
    %p168 = por %p166, %p167
    %p170 = scmp.ne.s32.totalorder %s155, %s169
    %p171 = scmp.eq.s32.totalorder %s19, 0
    %p172 = por %p170, %p171
    %s173 = ssub.s32 %s13, %s20
    %p174 = scmp.eq.s32.totalorder %s173, 0
    %s176 = sadd.s32 %s175, 1
    %s177 = scalar_select %p174, %s175, %s176
    %p180 = pneg %p174
    %p181 = scmp.eq.s32.totalorder %s13, 1
    %p182 = por %p180, %p181
    %p183 = scmp.ne.s32.totalorder %s175, %s178
    %p184 = scmp.eq.s32.totalorder %s13, 0
    %p185 = por %p183, %p184
    %p186 = scmp.ne.s32.totalorder %s175, %s178
    %p187 = scmp.eq.s32.totalorder %s18, 1
    %p188 = por %p186, %p187
    %p189 = scmp.ne.s32.totalorder %s178, %s179
    %p190 = scmp.eq.s32.totalorder %s18, 0
    %p191 = por %p189, %p190
    %p192 = scmp.ne.s32.totalorder %s178, %s179
    %p193 = scmp.eq.s32.totalorder %s19, 1
    %p194 = por %p192, %p193
    %p196 = scmp.ne.s32.totalorder %s179, %s195
    %p197 = scmp.eq.s32.totalorder %s19, 0
    %p198 = por %p196, %p197
    %p199 = scmp.le.s32.totalorder 1, %s13
    %p200 = scmp.lt.s32.totalorder %s13, 3
    %p201 = pnand %p199, %p200
    %p202 = pneg %p201
    // Predicated region
    $region9: #{convblock_forward.1} parent=5 // pred_check
      _
    $region10: #{convblock_forward.1} parent=5 // pred_check_branch
      %204 = sbr.rel (%p201) target = $region12
    $region11: #{convblock_forward.1} parent=5 // pred_region
      %s205 = ssub.s32 %s13, 1
      // Predicated region
      $region13: #{convblock_forward.1} parent=11 // pred_check
        %p206 = pneg %p60
      $region14: #{convblock_forward.1} parent=11 // pred_check_branch
        %208 = sbr.rel (%p206) target = $region16
      $region15: #{convblock_forward.1} parent=11 // pred_region
        _
      $region16: #{convblock_forward.1} parent=11 // pred_fallthru
        _
      // Predicated region
      $region17: #{convblock_forward.1} parent=11 // pred_check
        %p209 = pneg %p81
      $region18: #{convblock_forward.1} parent=11 // pred_check_branch
        %211 = sbr.rel (%p209) target = $region20
      $region19: #{convblock_forward.1} parent=11 // pred_region
        _
      $region20: #{convblock_forward.1} parent=11 // pred_fallthru
        _
      // Predicated region
      $region21: #{convblock_forward.1} parent=11 // pred_check
        %p212 = pneg %p102
      $region22: #{convblock_forward.1} parent=11 // pred_check_branch
        %214 = sbr.rel (%p212) target = $region24
      $region23: #{convblock_forward.1} parent=11 // pred_region
        _
      $region24: #{convblock_forward.1} parent=11 // pred_fallthru
        _
      // Predicated region
      $region25: #{convblock_forward.1} parent=11 // pred_check
        %p215 = pneg %p123
      $region26: #{convblock_forward.1} parent=11 // pred_check_branch
        %217 = sbr.rel (%p215) target = $region28
      $region27: #{convblock_forward.1} parent=11 // pred_region
        _
      $region28: #{convblock_forward.1} parent=11 // pred_fallthru
        _
      // Predicated region
      $region29: #{convblock_forward.1} parent=11 // pred_check
        %p218 = pneg %p144
      $region30: #{convblock_forward.1} parent=11 // pred_check_branch
        %220 = sbr.rel (%p218) target = $region32
      $region31: #{convblock_forward.1} parent=11 // pred_region
        _
      $region32: #{convblock_forward.1} parent=11 // pred_fallthru
        _
      // Predicated region
      $region33: #{convblock_forward.1} parent=11 // pred_check
        %p221 = pneg %p165
      $region34: #{convblock_forward.1} parent=11 // pred_check_branch
        %223 = sbr.rel (%p221) target = $region36
      $region35: #{convblock_forward.1} parent=11 // pred_region
        _
      $region36: #{convblock_forward.1} parent=11 // pred_fallthru
        _
    $region12: #{convblock_forward.1} parent=5 // pred_fallthru
      _
    %p224 = scmp.lt.s32.totalorder %s13, 2
    // Predicated region
    $region37: #{convblock_forward.1} parent=5 // pred_check
      %p225 = pneg %p224
    $region38: #{convblock_forward.1} parent=5 // pred_check_branch
      %227 = sbr.rel (%p225) target = $region40
    $region39: #{convblock_forward.1} parent=5 // pred_region
      // Predicated region
      $region41: #{convblock_forward.1} parent=39 // pred_check
        %p228 = pneg %p33
      $region42: #{convblock_forward.1} parent=39 // pred_check_branch
        %230 = sbr.rel (%p228) target = $region44
      $region43: #{convblock_forward.1} parent=39 // pred_region
        %p231 = scmp.lt.s32.totalorder %s13, 1
        %s232 = scalar_select %p231, %s13, 1
        %s233 = smul.addr %s232, 54
        %s234 = smul.addr %s233, 4
        %s235 = scalar_lea.vmem %s0, %s234
      $region44: #{convblock_forward.1} parent=39 // pred_fallthru
        _
    $region40: #{convblock_forward.1} parent=5 // pred_fallthru
      _
    %p236 = scmp.le.s32.totalorder 1, %s13
    %p237 = scmp.lt.s32.totalorder %s13, 3
    %p238 = pnand %p236, %p237
    %p239 = pneg %p238
    // Predicated region
    $region45: #{convblock_forward.1} parent=5 // pred_check
      _
    $region46: #{convblock_forward.1} parent=5 // pred_check_branch
      %241 = sbr.rel (%p238) target = $region48
    $region47: #{convblock_forward.1} parent=5 // pred_region
      %s242 = ssub.s32 %s13, 1
      %p243 = scmp.lt.s32.totalorder %s18, 1
      %s244 = scalar_select %p243, %s18, 1
      %s245 = smul.addr %s244, 54
      %s246 = smul.addr %s245, 4
      %s247 = scalar_lea.vmem %s0, %s246
      %p248 = pneg %p39
      %p249 = pneg %p36
      %p250 = pneg %p60
      %p251 = pneg %p57
      %p252 = pneg %p81
      %p253 = pneg %p78
      %p254 = pneg %p102
      %p255 = pneg %p99
      %p256 = pneg %p123
      %p257 = pneg %p120
      %p258 = pneg %p144
      %p259 = pneg %p141
      %p260 = pneg %p165
      %p261 = pneg %p162
      %p262 = pneg %p191
      %p263 = pneg %p188
      %p264 = scmp.lt.s32.totalorder %s18, 1
      %s265 = scalar_select %p264, %s18, 1
      %s266 = smul.addr %s265, 8
      %s267 = smul.addr %s266, 4
      %s268 = scalar_lea.vmem %s7, %s267
      %p269 = scmp.lt.s32.totalorder %s18, 1
      %s270 = scalar_select %p269, %s18, 1
      %s271 = smul.addr %s270, 54
      %s272 = smul.addr %s271, 4
      %s273 = scalar_lea.vmem %s0, %s272
      %p274 = scmp.lt.s32.totalorder %s18, 1
      %s275 = scalar_select %p274, %s18, 1
      %s276 = smul.addr %s275, 8
      %s277 = smul.addr %s276, 4
      %s278 = scalar_lea.vmem %s7, %s277
      %v280 = vld [vmem:[%s273] sm:$0xf]
      %v281 = vld [vmem:[%s273 + $0x4] sm:$0xf]
      %v282 = vld [vmem:[%s273 + $0x8] sm:$0x1]
      %v283 = vld [vmem:[%s273 + $0xc] sm:$0xf]
      %v284 = vld [vmem:[%s273 + $0x10] sm:$0xf]
      %v285 = vld [vmem:[%s273 + $0x14] sm:$0x1]
      %v286 = vld [vmem:[%s273 + $0x18] sm:$0xf]
      %v287 = vld [vmem:[%s273 + $0x1c] sm:$0xf]
      %v288 = vld [vmem:[%s273 + $0x20] sm:$0x1]
      %v289 = vld [vmem:[%s273 + $0x24] sm:$0xf]
      %v290 = vld [vmem:[%s273 + $0x28] sm:$0xf]
      %v291 = vld [vmem:[%s273 + $0x2c] sm:$0x1]
      %v292 = vld [vmem:[%s273 + $0x30] sm:$0xf]
      %v293 = vld [vmem:[%s273 + $0x34] sm:$0xf]
      %v294 = vld [vmem:[%s273 + $0x38] sm:$0x1]
      %v295 = vld [vmem:[%s273 + $0x3c] sm:$0xf]
      %v296 = vld [vmem:[%s273 + $0x40] sm:$0xf]
      %v297 = vld [vmem:[%s273 + $0x44] sm:$0x1]
      %v298 = vld [vmem:[%s273 + $0x48] sm:$0xf]
      %v299 = vld [vmem:[%s273 + $0x4c] sm:$0xf]
      %v300 = vld [vmem:[%s273 + $0x50] sm:$0x1]
      %v301 = vld [vmem:[%s273 + $0x54] sm:$0xf]
      %v302 = vld [vmem:[%s273 + $0x58] sm:$0xf]
      %v303 = vld [vmem:[%s273 + $0x5c] sm:$0x1]
      %v304 = vld [vmem:[%s273 + $0x60] sm:$0xf]
      %v305 = vld [vmem:[%s273 + $0x64] sm:$0xf]
      %v306 = vld [vmem:[%s273 + $0x68] sm:$0x1]
      %v307 = vld [vmem:[%s273 + $0x6c] sm:$0xf]
      %v308 = vld [vmem:[%s273 + $0x70] sm:$0xf]
      %v309 = vld [vmem:[%s273 + $0x74] sm:$0x1]
      %v310 = vld [vmem:[%s273 + $0x78] sm:$0xf]
      %v311 = vld [vmem:[%s273 + $0x7c] sm:$0xf]
      %v312 = vld [vmem:[%s273 + $0x80] sm:$0x1]
      %v313 = vld [vmem:[%s273 + $0x84] sm:$0xf]
      %v314 = vld [vmem:[%s273 + $0x88] sm:$0xf]
      %v315 = vld [vmem:[%s273 + $0x8c] sm:$0x1]
      %v316 = vld [vmem:[%s273 + $0x90] sm:$0xf]
      %v317 = vld [vmem:[%s273 + $0x94] sm:$0xf]
      %v318 = vld [vmem:[%s273 + $0x98] sm:$0x1]
      %v319 = vld [vmem:[%s273 + $0x9c] sm:$0xf]
      %v320 = vld [vmem:[%s273 + $0xa0] sm:$0xf]
      %v321 = vld [vmem:[%s273 + $0xa4] sm:$0x1]
      %v322 = vld [vmem:[%s273 + $0xa8] sm:$0xf]
      %v323 = vld [vmem:[%s273 + $0xac] sm:$0xf]
      %v324 = vld [vmem:[%s273 + $0xb0] sm:$0x1]
      %v325 = vld [vmem:[%s273 + $0xb4] sm:$0xf]
      %v326 = vld [vmem:[%s273 + $0xb8] sm:$0xf]
      %v327 = vld [vmem:[%s273 + $0xbc] sm:$0x1]
      %v328 = vld [vmem:[%s273 + $0xc0] sm:$0xf]
      %v329 = vld [vmem:[%s273 + $0xc4] sm:$0xf]
      %v330 = vld [vmem:[%s273 + $0xc8] sm:$0x1]
      %v331 = vld [vmem:[%s273 + $0xcc] sm:$0xf]
      %v332 = vld [vmem:[%s273 + $0xd0] sm:$0xf]
      %v333 = vld [vmem:[%s273 + $0xd4] sm:$0x1]
      %vm334 = vsmask.f32 3328
      %vm335 = vsmask.f32 7440
      %vm336 = vmor %vm334, %vm335
      %v338 = vshrl.u32 %v280, 16
      %v340 = vrot.slane %v338, 4
      %v341 = vshll.u32 %v280, 16
      %v343 = vrot.slane %v341, 5
      %v344 = vor.u32 %v340, %v343
      %v345 = vrot.slane %v344, 4
      %v347 = vshll.u32 %v281, 16
      %v349 = vrot.slane %v347, 5
      %v350 = vsel %vm336, %v345, %v349
      %v351 = vshrl.u32 %v281, 16
      %v353 = vrot.slane %v351, 4
      %v354 = vor.u32 %v353, %v349
      %v355 = vrot.slane %v354, 4
      %v357 = vshll.u32 %v282, 16
      %v359 = vrot.slane %v357, 5
      %v360 = vsel %vm336, %v355, %v359
      %v362 = vshrl.u32 %v283, 16
      %v364 = vrot.slane %v362, 4
      %v365 = vshll.u32 %v283, 16
      %v367 = vrot.slane %v365, 5
      %v368 = vor.u32 %v364, %v367
      %v369 = vrot.slane %v368, 4
      %v371 = vshll.u32 %v284, 16
      %v373 = vrot.slane %v371, 5
      %v374 = vsel %vm336, %v369, %v373
      %v375 = vshrl.u32 %v284, 16
      %v377 = vrot.slane %v375, 4
      %v378 = vor.u32 %v377, %v373
      %v379 = vrot.slane %v378, 4
      %v381 = vshll.u32 %v285, 16
      %v383 = vrot.slane %v381, 5
      %v384 = vsel %vm336, %v379, %v383
      %v386 = vshrl.u32 %v286, 16
      %v388 = vrot.slane %v386, 4
      %v389 = vshll.u32 %v286, 16
      %v391 = vrot.slane %v389, 5
      %v392 = vor.u32 %v388, %v391
      %v393 = vrot.slane %v392, 4
      %v395 = vshll.u32 %v287, 16
      %v397 = vrot.slane %v395, 5
      %v398 = vsel %vm336, %v393, %v397
      %v399 = vshrl.u32 %v287, 16
      %v401 = vrot.slane %v399, 4
      %v402 = vor.u32 %v401, %v397
      %v403 = vrot.slane %v402, 4
      %v405 = vshll.u32 %v288, 16
      %v407 = vrot.slane %v405, 5
      %v408 = vsel %vm336, %v403, %v407
      %v410 = vshrl.u32 %v289, 16
      %v412 = vrot.slane %v410, 4
      %v413 = vshll.u32 %v289, 16
      %v415 = vrot.slane %v413, 5
      %v416 = vor.u32 %v412, %v415
      %v417 = vrot.slane %v416, 4
      %v419 = vshll.u32 %v290, 16
      %v421 = vrot.slane %v419, 5
      %v422 = vsel %vm336, %v417, %v421
      %v423 = vshrl.u32 %v290, 16
      %v425 = vrot.slane %v423, 4
      %v426 = vor.u32 %v425, %v421
      %v427 = vrot.slane %v426, 4
      %v429 = vshll.u32 %v291, 16
      %v431 = vrot.slane %v429, 5
      %v432 = vsel %vm336, %v427, %v431
      %v434 = vshrl.u32 %v292, 16
      %v436 = vrot.slane %v434, 4
      %v437 = vshll.u32 %v292, 16
      %v439 = vrot.slane %v437, 5
      %v440 = vor.u32 %v436, %v439
      %v441 = vrot.slane %v440, 4
      %v443 = vshll.u32 %v293, 16
      %v445 = vrot.slane %v443, 5
      %v446 = vsel %vm336, %v441, %v445
      %v447 = vshrl.u32 %v293, 16
      %v449 = vrot.slane %v447, 4
      %v450 = vor.u32 %v449, %v445
      %v451 = vrot.slane %v450, 4
      %v453 = vshll.u32 %v294, 16
      %v455 = vrot.slane %v453, 5
      %v456 = vsel %vm336, %v451, %v455
      %v458 = vshrl.u32 %v295, 16
      %v460 = vrot.slane %v458, 4
      %v461 = vshll.u32 %v295, 16
      %v463 = vrot.slane %v461, 5
      %v464 = vor.u32 %v460, %v463
      %v465 = vrot.slane %v464, 4
      %v467 = vshll.u32 %v296, 16
      %v469 = vrot.slane %v467, 5
      %v470 = vsel %vm336, %v465, %v469
      %v471 = vshrl.u32 %v296, 16
      %v473 = vrot.slane %v471, 4
      %v474 = vor.u32 %v473, %v469
      %v475 = vrot.slane %v474, 4
      %v477 = vshll.u32 %v297, 16
      %v479 = vrot.slane %v477, 5
      %v480 = vsel %vm336, %v475, %v479
      %v482 = vshrl.u32 %v298, 16
      %v484 = vrot.slane %v482, 4
      %v485 = vshll.u32 %v298, 16
      %v487 = vrot.slane %v485, 5
      %v488 = vor.u32 %v484, %v487
      %v489 = vrot.slane %v488, 4
      %v491 = vshll.u32 %v299, 16
      %v493 = vrot.slane %v491, 5
      %v494 = vsel %vm336, %v489, %v493
      %v495 = vshrl.u32 %v299, 16
      %v497 = vrot.slane %v495, 4
      %v498 = vor.u32 %v497, %v493
      %v499 = vrot.slane %v498, 4
      %v501 = vshll.u32 %v300, 16
      %v503 = vrot.slane %v501, 5
      %v504 = vsel %vm336, %v499, %v503
      %v506 = vshrl.u32 %v301, 16
      %v508 = vrot.slane %v506, 4
      %v509 = vshll.u32 %v301, 16
      %v511 = vrot.slane %v509, 5
      %v512 = vor.u32 %v508, %v511
      %v513 = vrot.slane %v512, 4
      %v515 = vshll.u32 %v302, 16
      %v517 = vrot.slane %v515, 5
      %v518 = vsel %vm336, %v513, %v517
      %v519 = vshrl.u32 %v302, 16
      %v521 = vrot.slane %v519, 4
      %v522 = vor.u32 %v521, %v517
      %v523 = vrot.slane %v522, 4
      %v525 = vshll.u32 %v303, 16
      %v527 = vrot.slane %v525, 5
      %v528 = vsel %vm336, %v523, %v527
      %v530 = vshrl.u32 %v304, 16
      %v532 = vrot.slane %v530, 4
      %v533 = vshll.u32 %v304, 16
      %v535 = vrot.slane %v533, 5
      %v536 = vor.u32 %v532, %v535
      %v537 = vrot.slane %v536, 4
      %v539 = vshll.u32 %v305, 16
      %v541 = vrot.slane %v539, 5
      %v542 = vsel %vm336, %v537, %v541
      %v543 = vshrl.u32 %v305, 16
      %v545 = vrot.slane %v543, 4
      %v546 = vor.u32 %v545, %v541
      %v547 = vrot.slane %v546, 4
      %v549 = vshll.u32 %v306, 16
      %v551 = vrot.slane %v549, 5
      %v552 = vsel %vm336, %v547, %v551
      %v554 = vshrl.u32 %v307, 16
      %v556 = vrot.slane %v554, 4
      %v557 = vshll.u32 %v307, 16
      %v559 = vrot.slane %v557, 5
      %v560 = vor.u32 %v556, %v559
      %v561 = vrot.slane %v560, 4
      %v563 = vshll.u32 %v308, 16
      %v565 = vrot.slane %v563, 5
      %v566 = vsel %vm336, %v561, %v565
      %v567 = vshrl.u32 %v308, 16
      %v569 = vrot.slane %v567, 4
      %v570 = vor.u32 %v569, %v565
      %v571 = vrot.slane %v570, 4
      %v573 = vshll.u32 %v309, 16
      %v575 = vrot.slane %v573, 5
      %v576 = vsel %vm336, %v571, %v575
      %v578 = vshrl.u32 %v310, 16
      %v580 = vrot.slane %v578, 4
      %v581 = vshll.u32 %v310, 16
      %v583 = vrot.slane %v581, 5
      %v584 = vor.u32 %v580, %v583
      %v585 = vrot.slane %v584, 4
      %v587 = vshll.u32 %v311, 16
      %v589 = vrot.slane %v587, 5
      %v590 = vsel %vm336, %v585, %v589
      %v591 = vshrl.u32 %v311, 16
      %v593 = vrot.slane %v591, 4
      %v594 = vor.u32 %v593, %v589
      %v595 = vrot.slane %v594, 4
      %v597 = vshll.u32 %v312, 16
      %v599 = vrot.slane %v597, 5
      %v600 = vsel %vm336, %v595, %v599
      %v602 = vshrl.u32 %v313, 16
      %v604 = vrot.slane %v602, 4
      %v605 = vshll.u32 %v313, 16
      %v607 = vrot.slane %v605, 5
      %v608 = vor.u32 %v604, %v607
      %v609 = vrot.slane %v608, 4
      %v611 = vshll.u32 %v314, 16
      %v613 = vrot.slane %v611, 5
      %v614 = vsel %vm336, %v609, %v613
      %v615 = vshrl.u32 %v314, 16
      %v617 = vrot.slane %v615, 4
      %v618 = vor.u32 %v617, %v613
      %v619 = vrot.slane %v618, 4
      %v621 = vshll.u32 %v315, 16
      %v623 = vrot.slane %v621, 5
      %v624 = vsel %vm336, %v619, %v623
      %v626 = vshrl.u32 %v316, 16
      %v628 = vrot.slane %v626, 4
      %v629 = vshll.u32 %v316, 16
      %v631 = vrot.slane %v629, 5
      %v632 = vor.u32 %v628, %v631
      %v633 = vrot.slane %v632, 4
      %v635 = vshll.u32 %v317, 16
      %v637 = vrot.slane %v635, 5
      %v638 = vsel %vm336, %v633, %v637
      %v639 = vshrl.u32 %v317, 16
      %v641 = vrot.slane %v639, 4
      %v642 = vor.u32 %v641, %v637
      %v643 = vrot.slane %v642, 4
      %v645 = vshll.u32 %v318, 16
      %v647 = vrot.slane %v645, 5
      %v648 = vsel %vm336, %v643, %v647
      %v650 = vshrl.u32 %v319, 16
      %v652 = vrot.slane %v650, 4
      %v653 = vshll.u32 %v319, 16
      %v655 = vrot.slane %v653, 5
      %v656 = vor.u32 %v652, %v655
      %v657 = vrot.slane %v656, 4
      %v659 = vshll.u32 %v320, 16
      %v661 = vrot.slane %v659, 5
      %v662 = vsel %vm336, %v657, %v661
      %v663 = vshrl.u32 %v320, 16
      %v665 = vrot.slane %v663, 4
      %v666 = vor.u32 %v665, %v661
      %v667 = vrot.slane %v666, 4
      %v669 = vshll.u32 %v321, 16
      %v671 = vrot.slane %v669, 5
      %v672 = vsel %vm336, %v667, %v671
      %v674 = vshrl.u32 %v322, 16
      %v676 = vrot.slane %v674, 4
      %v677 = vshll.u32 %v322, 16
      %v679 = vrot.slane %v677, 5
      %v680 = vor.u32 %v676, %v679
      %v681 = vrot.slane %v680, 4
      %v683 = vshll.u32 %v323, 16
      %v685 = vrot.slane %v683, 5
      %v686 = vsel %vm336, %v681, %v685
      %v687 = vshrl.u32 %v323, 16
      %v689 = vrot.slane %v687, 4
      %v690 = vor.u32 %v689, %v685
      %v691 = vrot.slane %v690, 4
      %v693 = vshll.u32 %v324, 16
      %v695 = vrot.slane %v693, 5
      %v696 = vsel %vm336, %v691, %v695
      %v698 = vshrl.u32 %v325, 16
      %v700 = vrot.slane %v698, 4
      %v701 = vshll.u32 %v325, 16
      %v703 = vrot.slane %v701, 5
      %v704 = vor.u32 %v700, %v703
      %v705 = vrot.slane %v704, 4
      %v707 = vshll.u32 %v326, 16
      %v709 = vrot.slane %v707, 5
      %v710 = vsel %vm336, %v705, %v709
      %v711 = vshrl.u32 %v326, 16
      %v713 = vrot.slane %v711, 4
      %v714 = vor.u32 %v713, %v709
      %v715 = vrot.slane %v714, 4
      %v717 = vshll.u32 %v327, 16
      %v719 = vrot.slane %v717, 5
      %v720 = vsel %vm336, %v715, %v719
      %vm769 = vcmask 1042432
      %vm770 = vcmask 1046532
      %vm771 = vmor %vm769, %vm770
      %v772 = vrot.slane %v280, 5
      %v773 = vrot.slane %v772, 4
      %v774 = vrot.slane %v281, 5
      %v775 = vsel %vm771, %v773, %v774
      %v776 = vrot.slane %v774, 4
      %v777 = vrot.slane %v282, 5
      %v778 = vsel %vm771, %v776, %v777
      %v779 = vrot.slane %v283, 5
      %v780 = vrot.slane %v779, 4
      %v781 = vrot.slane %v284, 5
      %v782 = vsel %vm771, %v780, %v781
      %v783 = vrot.slane %v781, 4
      %v784 = vrot.slane %v285, 5
      %v785 = vsel %vm771, %v783, %v784
      %v786 = vrot.slane %v286, 5
      %v787 = vrot.slane %v786, 4
      %v788 = vrot.slane %v287, 5
      %v789 = vsel %vm771, %v787, %v788
      %v790 = vrot.slane %v788, 4
      %v791 = vrot.slane %v288, 5
      %v792 = vsel %vm771, %v790, %v791
      %v793 = vrot.slane %v289, 5
      %v794 = vrot.slane %v793, 4
      %v795 = vrot.slane %v290, 5
      %v796 = vsel %vm771, %v794, %v795
      %v797 = vrot.slane %v795, 4
      %v798 = vrot.slane %v291, 5
      %v799 = vsel %vm771, %v797, %v798
      %v800 = vrot.slane %v292, 5
      %v801 = vrot.slane %v800, 4
      %v802 = vrot.slane %v293, 5
      %v803 = vsel %vm771, %v801, %v802
      %v804 = vrot.slane %v802, 4
      %v805 = vrot.slane %v294, 5
      %v806 = vsel %vm771, %v804, %v805
      %v807 = vrot.slane %v295, 5
      %v808 = vrot.slane %v807, 4
      %v809 = vrot.slane %v296, 5
      %v810 = vsel %vm771, %v808, %v809
      %v811 = vrot.slane %v809, 4
      %v812 = vrot.slane %v297, 5
      %v813 = vsel %vm771, %v811, %v812
      %v814 = vrot.slane %v298, 5
      %v815 = vrot.slane %v814, 4
      %v816 = vrot.slane %v299, 5
      %v817 = vsel %vm771, %v815, %v816
      %v818 = vrot.slane %v816, 4
      %v819 = vrot.slane %v300, 5
      %v820 = vsel %vm771, %v818, %v819
      %v821 = vrot.slane %v301, 5
      %v822 = vrot.slane %v821, 4
      %v823 = vrot.slane %v302, 5
      %v824 = vsel %vm771, %v822, %v823
      %v825 = vrot.slane %v823, 4
      %v826 = vrot.slane %v303, 5
      %v827 = vsel %vm771, %v825, %v826
      %v828 = vrot.slane %v304, 5
      %v829 = vrot.slane %v828, 4
      %v830 = vrot.slane %v305, 5
      %v831 = vsel %vm771, %v829, %v830
      %v832 = vrot.slane %v830, 4
      %v833 = vrot.slane %v306, 5
      %v834 = vsel %vm771, %v832, %v833
      %v835 = vrot.slane %v307, 5
      %v836 = vrot.slane %v835, 4
      %v837 = vrot.slane %v308, 5
      %v838 = vsel %vm771, %v836, %v837
      %v839 = vrot.slane %v837, 4
      %v840 = vrot.slane %v309, 5
      %v841 = vsel %vm771, %v839, %v840
      %v842 = vrot.slane %v310, 5
      %v843 = vrot.slane %v842, 4
      %v844 = vrot.slane %v311, 5
      %v845 = vsel %vm771, %v843, %v844
      %v846 = vrot.slane %v844, 4
      %v847 = vrot.slane %v312, 5
      %v848 = vsel %vm771, %v846, %v847
      %v849 = vrot.slane %v313, 5
      %v850 = vrot.slane %v849, 4
      %v851 = vrot.slane %v314, 5
      %v852 = vsel %vm771, %v850, %v851
      %v853 = vrot.slane %v851, 4
      %v854 = vrot.slane %v315, 5
      %v855 = vsel %vm771, %v853, %v854
      %v856 = vrot.slane %v316, 5
      %v857 = vrot.slane %v856, 4
      %v858 = vrot.slane %v317, 5
      %v859 = vsel %vm771, %v857, %v858
      %v860 = vrot.slane %v858, 4
      %v861 = vrot.slane %v318, 5
      %v862 = vsel %vm771, %v860, %v861
      %v863 = vrot.slane %v319, 5
      %v864 = vrot.slane %v863, 4
      %v865 = vrot.slane %v320, 5
      %v866 = vsel %vm771, %v864, %v865
      %v867 = vrot.slane %v865, 4
      %v868 = vrot.slane %v321, 5
      %v869 = vsel %vm771, %v867, %v868
      %v870 = vrot.slane %v322, 5
      %v871 = vrot.slane %v870, 4
      %v872 = vrot.slane %v323, 5
      %v873 = vsel %vm771, %v871, %v872
      %v874 = vrot.slane %v872, 4
      %v875 = vrot.slane %v324, 5
      %v876 = vsel %vm771, %v874, %v875
      %v877 = vrot.slane %v325, 5
      %v878 = vrot.slane %v877, 4
      %v879 = vrot.slane %v326, 5
      %v880 = vsel %vm771, %v878, %v879
      %v881 = vrot.slane %v879, 4
      %v882 = vrot.slane %v327, 5
      %v883 = vsel %vm771, %v881, %v882
      %v885 = vshrl.u32 %v328, 16
      %v887 = vrot.slane %v885, 4
      %v888 = vshll.u32 %v328, 16
      %v890 = vrot.slane %v888, 5
      %v891 = vor.u32 %v887, %v890
      %v892 = vrot.slane %v891, 4
      %v894 = vshll.u32 %v329, 16
      %v896 = vrot.slane %v894, 5
      %v897 = vsel %vm336, %v892, %v896
      %v898 = vshrl.u32 %v329, 16
      %v900 = vrot.slane %v898, 4
      %v901 = vor.u32 %v900, %v896
      %v902 = vrot.slane %v901, 4
      %v904 = vshll.u32 %v330, 16
      %v906 = vrot.slane %v904, 5
      %v907 = vsel %vm336, %v902, %v906
      %v911 = vrot.slane %v328, 5
      %v912 = vrot.slane %v911, 4
      %v913 = vrot.slane %v329, 5
      %v914 = vsel %vm771, %v912, %v913
      %v915 = vrot.slane %v913, 4
      %v916 = vrot.slane %v330, 5
      %v917 = vsel %vm771, %v915, %v916
      %v919 = vshrl.u32 %v331, 16
      %v921 = vrot.slane %v919, 4
      %v922 = vshll.u32 %v331, 16
      %v924 = vrot.slane %v922, 5
      %v925 = vor.u32 %v921, %v924
      %v926 = vrot.slane %v925, 4
      %v928 = vshll.u32 %v332, 16
      %v930 = vrot.slane %v928, 5
      %v931 = vsel %vm336, %v926, %v930
      %v932 = vshrl.u32 %v332, 16
      %v934 = vrot.slane %v932, 4
      %v935 = vor.u32 %v934, %v930
      %v936 = vrot.slane %v935, 4
      %v938 = vshll.u32 %v333, 16
      %v940 = vrot.slane %v938, 5
      %v941 = vsel %vm336, %v936, %v940
      %v945 = vrot.slane %v331, 5
      %v946 = vrot.slane %v945, 4
      %v947 = vrot.slane %v332, 5
      %v948 = vsel %vm771, %v946, %v947
      %v949 = vrot.slane %v947, 4
      %v950 = vrot.slane %v333, 5
      %v951 = vsel %vm771, %v949, %v950
      %v952 = vunpack.c.l.b16 %v280
      %v953 = vunpack.c.l.b16 %v281
      %v954 = vunpack.c.l.b16 %v283
      %v955 = vunpack.c.l.b16 %v284
      %v956 = vunpack.c.l.b16 %v286
      %v957 = vunpack.c.l.b16 %v287
      %v958 = vunpack.c.l.b16 %v289
      %v959 = vunpack.c.l.b16 %v290
      %v960 = vunpack.c.l.b16 %v292
      %v961 = vunpack.c.l.b16 %v293
      %v962 = vunpack.c.l.b16 %v295
      %v963 = vunpack.c.l.b16 %v296
      %v964 = vunpack.c.l.b16 %v298
      %v965 = vunpack.c.l.b16 %v299
      %v966 = vunpack.c.l.b16 %v301
      %v967 = vunpack.c.l.b16 %v302
      %v968 = vunpack.c.l.b16 %v304
      %v969 = vunpack.c.l.b16 %v305
      %v970 = vunpack.c.l.b16 %v307
      %v971 = vunpack.c.l.b16 %v308
      %v972 = vunpack.c.l.b16 %v310
      %v973 = vunpack.c.l.b16 %v311
      %v974 = vunpack.c.l.b16 %v313
      %v975 = vunpack.c.l.b16 %v314
      %v976 = vunpack.c.l.b16 %v316
      %v977 = vunpack.c.l.b16 %v317
      %v978 = vunpack.c.l.b16 %v319
      %v979 = vunpack.c.l.b16 %v320
      %v980 = vunpack.c.l.b16 %v322
      %v981 = vunpack.c.l.b16 %v323
      %v982 = vunpack.c.l.b16 %v325
      %v983 = vunpack.c.l.b16 %v326
      %v984 = vpack.c.b16 %v953, %v952
      %v985 = vpack.c.b16 %v955, %v954
      %v986 = vpack.c.b16 %v957, %v956
      %v987 = vpack.c.b16 %v959, %v958
      %v988 = vpack.c.b16 %v961, %v960
      %v989 = vpack.c.b16 %v963, %v962
      %v990 = vpack.c.b16 %v965, %v964
      %v991 = vpack.c.b16 %v967, %v966
      %v992 = vpack.c.b16 %v969, %v968
      %v993 = vpack.c.b16 %v971, %v970
      %v994 = vpack.c.b16 %v973, %v972
      %v995 = vpack.c.b16 %v975, %v974
      %v996 = vpack.c.b16 %v977, %v976
      %v997 = vpack.c.b16 %v979, %v978
      %v998 = vpack.c.b16 %v981, %v980
      %v999 = vpack.c.b16 %v983, %v982
      %v1000 = vunpack.c.l.b16 %v350
      %v1001 = vunpack.c.l.b16 %v360
      %v1002 = vunpack.c.l.b16 %v374
      %v1003 = vunpack.c.l.b16 %v384
      %v1004 = vunpack.c.l.b16 %v398
      %v1005 = vunpack.c.l.b16 %v408
      %v1006 = vunpack.c.l.b16 %v422
      %v1007 = vunpack.c.l.b16 %v432
      %v1008 = vunpack.c.l.b16 %v446
      %v1009 = vunpack.c.l.b16 %v456
      %v1010 = vunpack.c.l.b16 %v470
      %v1011 = vunpack.c.l.b16 %v480
      %v1012 = vunpack.c.l.b16 %v494
      %v1013 = vunpack.c.l.b16 %v504
      %v1014 = vunpack.c.l.b16 %v518
      %v1015 = vunpack.c.l.b16 %v528
      %v1016 = vunpack.c.l.b16 %v542
      %v1017 = vunpack.c.l.b16 %v552
      %v1018 = vunpack.c.l.b16 %v566
      %v1019 = vunpack.c.l.b16 %v576
      %v1020 = vunpack.c.l.b16 %v590
      %v1021 = vunpack.c.l.b16 %v600
      %v1022 = vunpack.c.l.b16 %v614
      %v1023 = vunpack.c.l.b16 %v624
      %v1024 = vunpack.c.l.b16 %v638
      %v1025 = vunpack.c.l.b16 %v648
      %v1026 = vunpack.c.l.b16 %v662
      %v1027 = vunpack.c.l.b16 %v672
      %v1028 = vunpack.c.l.b16 %v686
      %v1029 = vunpack.c.l.b16 %v696
      %v1030 = vunpack.c.l.b16 %v710
      %v1031 = vunpack.c.l.b16 %v720
      %v1032 = vpack.c.b16 %v1001, %v1000
      %v1033 = vpack.c.b16 %v1003, %v1002
      %v1034 = vpack.c.b16 %v1005, %v1004
      %v1035 = vpack.c.b16 %v1007, %v1006
      %v1036 = vpack.c.b16 %v1009, %v1008
      %v1037 = vpack.c.b16 %v1011, %v1010
      %v1038 = vpack.c.b16 %v1013, %v1012
      %v1039 = vpack.c.b16 %v1015, %v1014
      %v1040 = vpack.c.b16 %v1017, %v1016
      %v1041 = vpack.c.b16 %v1019, %v1018
      %v1042 = vpack.c.b16 %v1021, %v1020
      %v1043 = vpack.c.b16 %v1023, %v1022
      %v1044 = vpack.c.b16 %v1025, %v1024
      %v1045 = vpack.c.b16 %v1027, %v1026
      %v1046 = vpack.c.b16 %v1029, %v1028
      %v1047 = vpack.c.b16 %v1031, %v1030
      %1048 = vrot.lane.b32.xlu0 %v1032, 8
      %v1049 = vpop.permute.xlu0 %1048
      %1050 = vrot.lane.b32.xlu0 %v1033, 8
      %v1051 = vpop.permute.xlu0 %1050
      %1052 = vrot.lane.b32.xlu0 %v1034, 8
      %v1053 = vpop.permute.xlu0 %1052
      %1054 = vrot.lane.b32.xlu0 %v1035, 8
      %v1055 = vpop.permute.xlu0 %1054
      %1056 = vrot.lane.b32.xlu0 %v1036, 8
      %v1057 = vpop.permute.xlu0 %1056
      %1058 = vrot.lane.b32.xlu0 %v1037, 8
      %v1059 = vpop.permute.xlu0 %1058
      %1060 = vrot.lane.b32.xlu0 %v1038, 8
      %v1061 = vpop.permute.xlu0 %1060
      %1062 = vrot.lane.b32.xlu0 %v1039, 8
      %v1063 = vpop.permute.xlu0 %1062
      %1064 = vrot.lane.b32.xlu0 %v1040, 8
      %v1065 = vpop.permute.xlu0 %1064
      %1066 = vrot.lane.b32.xlu0 %v1041, 8
      %v1067 = vpop.permute.xlu0 %1066
      %1068 = vrot.lane.b32.xlu0 %v1042, 8
      %v1069 = vpop.permute.xlu0 %1068
      %1070 = vrot.lane.b32.xlu0 %v1043, 8
      %v1071 = vpop.permute.xlu0 %1070
      %1072 = vrot.lane.b32.xlu0 %v1044, 8
      %v1073 = vpop.permute.xlu0 %1072
      %1074 = vrot.lane.b32.xlu0 %v1045, 8
      %v1075 = vpop.permute.xlu0 %1074
      %1076 = vrot.lane.b32.xlu0 %v1046, 8
      %v1077 = vpop.permute.xlu0 %1076
      %1078 = vrot.lane.b32.xlu0 %v1047, 8
      %v1079 = vpop.permute.xlu0 %1078
      %v1080 = vunpack.c.l.b16 %v775
      %v1081 = vunpack.c.l.b16 %v778
      %v1082 = vunpack.c.l.b16 %v782
      %v1083 = vunpack.c.l.b16 %v785
      %v1084 = vunpack.c.l.b16 %v789
      %v1085 = vunpack.c.l.b16 %v792
      %v1086 = vunpack.c.l.b16 %v796
      %v1087 = vunpack.c.l.b16 %v799
      %v1088 = vunpack.c.l.b16 %v803
      %v1089 = vunpack.c.l.b16 %v806
      %v1090 = vunpack.c.l.b16 %v810
      %v1091 = vunpack.c.l.b16 %v813
      %v1092 = vunpack.c.l.b16 %v817
      %v1093 = vunpack.c.l.b16 %v820
      %v1094 = vunpack.c.l.b16 %v824
      %v1095 = vunpack.c.l.b16 %v827
      %v1096 = vunpack.c.l.b16 %v831
      %v1097 = vunpack.c.l.b16 %v834
      %v1098 = vunpack.c.l.b16 %v838
      %v1099 = vunpack.c.l.b16 %v841
      %v1100 = vunpack.c.l.b16 %v845
      %v1101 = vunpack.c.l.b16 %v848
      %v1102 = vunpack.c.l.b16 %v852
      %v1103 = vunpack.c.l.b16 %v855
      %v1104 = vunpack.c.l.b16 %v859
      %v1105 = vunpack.c.l.b16 %v862
      %v1106 = vunpack.c.l.b16 %v866
      %v1107 = vunpack.c.l.b16 %v869
      %v1108 = vunpack.c.l.b16 %v873
      %v1109 = vunpack.c.l.b16 %v876
      %v1110 = vunpack.c.l.b16 %v880
      %v1111 = vunpack.c.l.b16 %v883
      %v1112 = vpack.c.b16 %v1081, %v1080
      %v1113 = vpack.c.b16 %v1083, %v1082
      %v1114 = vpack.c.b16 %v1085, %v1084
      %v1115 = vpack.c.b16 %v1087, %v1086
      %v1116 = vpack.c.b16 %v1089, %v1088
      %v1117 = vpack.c.b16 %v1091, %v1090
      %v1118 = vpack.c.b16 %v1093, %v1092
      %v1119 = vpack.c.b16 %v1095, %v1094
      %v1120 = vpack.c.b16 %v1097, %v1096
      %v1121 = vpack.c.b16 %v1099, %v1098
      %v1122 = vpack.c.b16 %v1101, %v1100
      %v1123 = vpack.c.b16 %v1103, %v1102
      %v1124 = vpack.c.b16 %v1105, %v1104
      %v1125 = vpack.c.b16 %v1107, %v1106
      %v1126 = vpack.c.b16 %v1109, %v1108
      %v1127 = vpack.c.b16 %v1111, %v1110
      %1128 = vrot.lane.b32.xlu0 %v1112, 16
      %v1129 = vpop.permute.xlu0 %1128
      %1130 = vrot.lane.b32.xlu0 %v1113, 16
      %v1131 = vpop.permute.xlu0 %1130
      %1132 = vrot.lane.b32.xlu0 %v1114, 16
      %v1133 = vpop.permute.xlu0 %1132
      %1134 = vrot.lane.b32.xlu0 %v1115, 16
      %v1135 = vpop.permute.xlu0 %1134
      %1136 = vrot.lane.b32.xlu0 %v1116, 16
      %v1137 = vpop.permute.xlu0 %1136
      %1138 = vrot.lane.b32.xlu0 %v1117, 16
      %v1139 = vpop.permute.xlu0 %1138
      %1140 = vrot.lane.b32.xlu0 %v1118, 16
      %v1141 = vpop.permute.xlu0 %1140
      %1142 = vrot.lane.b32.xlu0 %v1119, 16
      %v1143 = vpop.permute.xlu0 %1142
      %1144 = vrot.lane.b32.xlu0 %v1120, 16
      %v1145 = vpop.permute.xlu0 %1144
      %1146 = vrot.lane.b32.xlu0 %v1121, 16
      %v1147 = vpop.permute.xlu0 %1146
      %1148 = vrot.lane.b32.xlu0 %v1122, 16
      %v1149 = vpop.permute.xlu0 %1148
      %1150 = vrot.lane.b32.xlu0 %v1123, 16
      %v1151 = vpop.permute.xlu0 %1150
      %1152 = vrot.lane.b32.xlu0 %v1124, 16
      %v1153 = vpop.permute.xlu0 %1152
      %1154 = vrot.lane.b32.xlu0 %v1125, 16
      %v1155 = vpop.permute.xlu0 %1154
      %1156 = vrot.lane.b32.xlu0 %v1126, 16
      %v1157 = vpop.permute.xlu0 %1156
      %1158 = vrot.lane.b32.xlu0 %v1127, 16
      %v1159 = vpop.permute.xlu0 %1158
      %v1160 = vunpack.c.l.b16 %v328
      %v1161 = vunpack.c.l.b16 %v329
      %v1162 = vpack.c.b16 %v1161, %v1160
      %1163 = vrot.lane.b32.xlu0 %v985, 24
      %v1164 = vpop.permute.xlu0 %1163
      %1165 = vrot.lane.b32.xlu0 %v986, 24
      %v1166 = vpop.permute.xlu0 %1165
      %1167 = vrot.lane.b32.xlu0 %v987, 24
      %v1168 = vpop.permute.xlu0 %1167
      %1169 = vrot.lane.b32.xlu0 %v988, 24
      %v1170 = vpop.permute.xlu0 %1169
      %1171 = vrot.lane.b32.xlu0 %v989, 24
      %v1172 = vpop.permute.xlu0 %1171
      %1173 = vrot.lane.b32.xlu0 %v990, 24
      %v1174 = vpop.permute.xlu0 %1173
      %1175 = vrot.lane.b32.xlu0 %v991, 24
      %v1176 = vpop.permute.xlu0 %1175
      %1177 = vrot.lane.b32.xlu0 %v992, 24
      %v1178 = vpop.permute.xlu0 %1177
      %1179 = vrot.lane.b32.xlu0 %v993, 24
      %v1180 = vpop.permute.xlu0 %1179
      %1181 = vrot.lane.b32.xlu0 %v994, 24
      %v1182 = vpop.permute.xlu0 %1181
      %1183 = vrot.lane.b32.xlu0 %v995, 24
      %v1184 = vpop.permute.xlu0 %1183
      %1185 = vrot.lane.b32.xlu0 %v996, 24
      %v1186 = vpop.permute.xlu0 %1185
      %1187 = vrot.lane.b32.xlu0 %v997, 24
      %v1188 = vpop.permute.xlu0 %1187
      %1189 = vrot.lane.b32.xlu0 %v998, 24
      %v1190 = vpop.permute.xlu0 %1189
      %1191 = vrot.lane.b32.xlu0 %v999, 24
      %v1192 = vpop.permute.xlu0 %1191
      %1193 = vrot.lane.b32.xlu0 %v1162, 24
      %v1194 = vpop.permute.xlu0 %1193
      %v1195 = vunpack.c.l.b16 %v897
      %v1196 = vunpack.c.l.b16 %v907
      %v1197 = vpack.c.b16 %v1196, %v1195
      %1198 = vrot.lane.b32.xlu0 %v1033, 32
      %v1199 = vpop.permute.xlu0 %1198
      %1200 = vrot.lane.b32.xlu0 %v1034, 32
      %v1201 = vpop.permute.xlu0 %1200
      %1202 = vrot.lane.b32.xlu0 %v1035, 32
      %v1203 = vpop.permute.xlu0 %1202
      %1204 = vrot.lane.b32.xlu0 %v1036, 32
      %v1205 = vpop.permute.xlu0 %1204
      %1206 = vrot.lane.b32.xlu0 %v1037, 32
      %v1207 = vpop.permute.xlu0 %1206
      %1208 = vrot.lane.b32.xlu0 %v1038, 32
      %v1209 = vpop.permute.xlu0 %1208
      %1210 = vrot.lane.b32.xlu0 %v1039, 32
      %v1211 = vpop.permute.xlu0 %1210
      %1212 = vrot.lane.b32.xlu0 %v1040, 32
      %v1213 = vpop.permute.xlu0 %1212
      %1214 = vrot.lane.b32.xlu0 %v1041, 32
      %v1215 = vpop.permute.xlu0 %1214
      %1216 = vrot.lane.b32.xlu0 %v1042, 32
      %v1217 = vpop.permute.xlu0 %1216
      %1218 = vrot.lane.b32.xlu0 %v1043, 32
      %v1219 = vpop.permute.xlu0 %1218
      %1220 = vrot.lane.b32.xlu0 %v1044, 32
      %v1221 = vpop.permute.xlu0 %1220
      %1222 = vrot.lane.b32.xlu0 %v1045, 32
      %v1223 = vpop.permute.xlu0 %1222
      %1224 = vrot.lane.b32.xlu0 %v1046, 32
      %v1225 = vpop.permute.xlu0 %1224
      %1226 = vrot.lane.b32.xlu0 %v1047, 32
      %v1227 = vpop.permute.xlu0 %1226
      %1228 = vrot.lane.b32.xlu0 %v1197, 32
      %v1229 = vpop.permute.xlu0 %1228
      %v1230 = vunpack.c.l.b16 %v914
      %v1231 = vunpack.c.l.b16 %v917
      %v1232 = vpack.c.b16 %v1231, %v1230
      %1233 = vrot.lane.b32.xlu0 %v1113, 40
      %v1234 = vpop.permute.xlu0 %1233
      %1235 = vrot.lane.b32.xlu0 %v1114, 40
      %v1236 = vpop.permute.xlu0 %1235
      %1237 = vrot.lane.b32.xlu0 %v1115, 40
      %v1238 = vpop.permute.xlu0 %1237
      %1239 = vrot.lane.b32.xlu0 %v1116, 40
      %v1240 = vpop.permute.xlu0 %1239
      %1241 = vrot.lane.b32.xlu0 %v1117, 40
      %v1242 = vpop.permute.xlu0 %1241
      %1243 = vrot.lane.b32.xlu0 %v1118, 40
      %v1244 = vpop.permute.xlu0 %1243
      %1245 = vrot.lane.b32.xlu0 %v1119, 40
      %v1246 = vpop.permute.xlu0 %1245
      %1247 = vrot.lane.b32.xlu0 %v1120, 40
      %v1248 = vpop.permute.xlu0 %1247
      %1249 = vrot.lane.b32.xlu0 %v1121, 40
      %v1250 = vpop.permute.xlu0 %1249
      %1251 = vrot.lane.b32.xlu0 %v1122, 40
      %v1252 = vpop.permute.xlu0 %1251
      %1253 = vrot.lane.b32.xlu0 %v1123, 40
      %v1254 = vpop.permute.xlu0 %1253
      %1255 = vrot.lane.b32.xlu0 %v1124, 40
      %v1256 = vpop.permute.xlu0 %1255
      %1257 = vrot.lane.b32.xlu0 %v1125, 40
      %v1258 = vpop.permute.xlu0 %1257
      %1259 = vrot.lane.b32.xlu0 %v1126, 40
      %v1260 = vpop.permute.xlu0 %1259
      %1261 = vrot.lane.b32.xlu0 %v1127, 40
      %v1262 = vpop.permute.xlu0 %1261
      %1263 = vrot.lane.b32.xlu0 %v1232, 40
      %v1264 = vpop.permute.xlu0 %1263
      %v1265 = vunpack.c.l.b16 %v331
      %v1266 = vunpack.c.l.b16 %v332
      %v1267 = vpack.c.b16 %v1266, %v1265
      %1268 = vrot.lane.b32.xlu0 %v986, 48
      %v1269 = vpop.permute.xlu0 %1268
      %1270 = vrot.lane.b32.xlu0 %v987, 48
      %v1271 = vpop.permute.xlu0 %1270
      %1272 = vrot.lane.b32.xlu0 %v988, 48
      %v1273 = vpop.permute.xlu0 %1272
      %1274 = vrot.lane.b32.xlu0 %v989, 48
      %v1275 = vpop.permute.xlu0 %1274
      %1276 = vrot.lane.b32.xlu0 %v990, 48
      %v1277 = vpop.permute.xlu0 %1276
      %1278 = vrot.lane.b32.xlu0 %v991, 48
      %v1279 = vpop.permute.xlu0 %1278
      %1280 = vrot.lane.b32.xlu0 %v992, 48
      %v1281 = vpop.permute.xlu0 %1280
      %1282 = vrot.lane.b32.xlu0 %v993, 48
      %v1283 = vpop.permute.xlu0 %1282
      %1284 = vrot.lane.b32.xlu0 %v994, 48
      %v1285 = vpop.permute.xlu0 %1284
      %1286 = vrot.lane.b32.xlu0 %v995, 48
      %v1287 = vpop.permute.xlu0 %1286
      %1288 = vrot.lane.b32.xlu0 %v996, 48
      %v1289 = vpop.permute.xlu0 %1288
      %1290 = vrot.lane.b32.xlu0 %v997, 48
      %v1291 = vpop.permute.xlu0 %1290
      %1292 = vrot.lane.b32.xlu0 %v998, 48
      %v1293 = vpop.permute.xlu0 %1292
      %1294 = vrot.lane.b32.xlu0 %v999, 48
      %v1295 = vpop.permute.xlu0 %1294
      %1296 = vrot.lane.b32.xlu0 %v1162, 48
      %v1297 = vpop.permute.xlu0 %1296
      %1298 = vrot.lane.b32.xlu0 %v1267, 48
      %v1299 = vpop.permute.xlu0 %1298
      %v1300 = vunpack.c.l.b16 %v931
      %v1301 = vunpack.c.l.b16 %v941
      %v1302 = vpack.c.b16 %v1301, %v1300
      %1303 = vrot.lane.b32.xlu0 %v1034, 56
      %v1304 = vpop.permute.xlu0 %1303
      %1305 = vrot.lane.b32.xlu0 %v1035, 56
      %v1306 = vpop.permute.xlu0 %1305
      %1307 = vrot.lane.b32.xlu0 %v1036, 56
      %v1308 = vpop.permute.xlu0 %1307
      %1309 = vrot.lane.b32.xlu0 %v1037, 56
      %v1310 = vpop.permute.xlu0 %1309
      %1311 = vrot.lane.b32.xlu0 %v1038, 56
      %v1312 = vpop.permute.xlu0 %1311
      %1313 = vrot.lane.b32.xlu0 %v1039, 56
      %v1314 = vpop.permute.xlu0 %1313
      %1315 = vrot.lane.b32.xlu0 %v1040, 56
      %v1316 = vpop.permute.xlu0 %1315
      %1317 = vrot.lane.b32.xlu0 %v1041, 56
      %v1318 = vpop.permute.xlu0 %1317
      %1319 = vrot.lane.b32.xlu0 %v1042, 56
      %v1320 = vpop.permute.xlu0 %1319
      %1321 = vrot.lane.b32.xlu0 %v1043, 56
      %v1322 = vpop.permute.xlu0 %1321
      %1323 = vrot.lane.b32.xlu0 %v1044, 56
      %v1324 = vpop.permute.xlu0 %1323
      %1325 = vrot.lane.b32.xlu0 %v1045, 56
      %v1326 = vpop.permute.xlu0 %1325
      %1327 = vrot.lane.b32.xlu0 %v1046, 56
      %v1328 = vpop.permute.xlu0 %1327
      %1329 = vrot.lane.b32.xlu0 %v1047, 56
      %v1330 = vpop.permute.xlu0 %1329
      %1331 = vrot.lane.b32.xlu0 %v1197, 56
      %v1332 = vpop.permute.xlu0 %1331
      %1333 = vrot.lane.b32.xlu0 %v1302, 56
      %v1334 = vpop.permute.xlu0 %1333
      %v1335 = vunpack.c.l.b16 %v948
      %v1336 = vunpack.c.l.b16 %v951
      %v1337 = vpack.c.b16 %v1336, %v1335
      %1338 = vrot.lane.b32.xlu0 %v1114, 64
      %v1339 = vpop.permute.xlu0 %1338
      %1340 = vrot.lane.b32.xlu0 %v1115, 64
      %v1341 = vpop.permute.xlu0 %1340
      %1342 = vrot.lane.b32.xlu0 %v1116, 64
      %v1343 = vpop.permute.xlu0 %1342
      %1344 = vrot.lane.b32.xlu0 %v1117, 64
      %v1345 = vpop.permute.xlu0 %1344
      %1346 = vrot.lane.b32.xlu0 %v1118, 64
      %v1347 = vpop.permute.xlu0 %1346
      %1348 = vrot.lane.b32.xlu0 %v1119, 64
      %v1349 = vpop.permute.xlu0 %1348
      %1350 = vrot.lane.b32.xlu0 %v1120, 64
      %v1351 = vpop.permute.xlu0 %1350
      %1352 = vrot.lane.b32.xlu0 %v1121, 64
      %v1353 = vpop.permute.xlu0 %1352
      %1354 = vrot.lane.b32.xlu0 %v1122, 64
      %v1355 = vpop.permute.xlu0 %1354
      %1356 = vrot.lane.b32.xlu0 %v1123, 64
      %v1357 = vpop.permute.xlu0 %1356
      %1358 = vrot.lane.b32.xlu0 %v1124, 64
      %v1359 = vpop.permute.xlu0 %1358
      %1360 = vrot.lane.b32.xlu0 %v1125, 64
      %v1361 = vpop.permute.xlu0 %1360
      %1362 = vrot.lane.b32.xlu0 %v1126, 64
      %v1363 = vpop.permute.xlu0 %1362
      %1364 = vrot.lane.b32.xlu0 %v1127, 64
      %v1365 = vpop.permute.xlu0 %1364
      %1366 = vrot.lane.b32.xlu0 %v1232, 64
      %v1367 = vpop.permute.xlu0 %1366
      %1368 = vrot.lane.b32.xlu0 %v1337, 64
      %v1369 = vpop.permute.xlu0 %1368
      %vm1370 = vcmask 64512
      %v1373 = vsel %vm1370, %v984, %v1049
      %v1376 = vsel %vm1370, %v985, %v1051
      %v1379 = vsel %vm1370, %v986, %v1053
      %v1382 = vsel %vm1370, %v987, %v1055
      %v1385 = vsel %vm1370, %v988, %v1057
      %v1388 = vsel %vm1370, %v989, %v1059
      %v1391 = vsel %vm1370, %v990, %v1061
      %v1394 = vsel %vm1370, %v991, %v1063
      %v1397 = vsel %vm1370, %v992, %v1065
      %v1400 = vsel %vm1370, %v993, %v1067
      %v1403 = vsel %vm1370, %v994, %v1069
      %v1406 = vsel %vm1370, %v995, %v1071
      %v1409 = vsel %vm1370, %v996, %v1073
      %v1412 = vsel %vm1370, %v997, %v1075
      %v1415 = vsel %vm1370, %v998, %v1077
      %v1418 = vsel %vm1370, %v999, %v1079
      %vm1419 = vcmask 130048
      %v1421 = vsel %vm1419, %v1373, %v1129
      %v1423 = vsel %vm1419, %v1376, %v1131
      %v1425 = vsel %vm1419, %v1379, %v1133
      %v1427 = vsel %vm1419, %v1382, %v1135
      %v1429 = vsel %vm1419, %v1385, %v1137
      %v1431 = vsel %vm1419, %v1388, %v1139
      %v1433 = vsel %vm1419, %v1391, %v1141
      %v1435 = vsel %vm1419, %v1394, %v1143
      %v1437 = vsel %vm1419, %v1397, %v1145
      %v1439 = vsel %vm1419, %v1400, %v1147
      %v1441 = vsel %vm1419, %v1403, %v1149
      %v1443 = vsel %vm1419, %v1406, %v1151
      %v1445 = vsel %vm1419, %v1409, %v1153
      %v1447 = vsel %vm1419, %v1412, %v1155
      %v1449 = vsel %vm1419, %v1415, %v1157
      %v1451 = vsel %vm1419, %v1418, %v1159
      %vm1452 = vcmask 195584
      %v1454 = vsel %vm1452, %v1421, %v1164
      %v1456 = vsel %vm1452, %v1423, %v1166
      %v1458 = vsel %vm1452, %v1425, %v1168
      %v1460 = vsel %vm1452, %v1427, %v1170
      %v1462 = vsel %vm1452, %v1429, %v1172
      %v1464 = vsel %vm1452, %v1431, %v1174
      %v1466 = vsel %vm1452, %v1433, %v1176
      %v1468 = vsel %vm1452, %v1435, %v1178
      %v1470 = vsel %vm1452, %v1437, %v1180
      %v1472 = vsel %vm1452, %v1439, %v1182
      %v1474 = vsel %vm1452, %v1441, %v1184
      %v1476 = vsel %vm1452, %v1443, %v1186
      %v1478 = vsel %vm1452, %v1445, %v1188
      %v1480 = vsel %vm1452, %v1447, %v1190
      %v1482 = vsel %vm1452, %v1449, %v1192
      %v1484 = vsel %vm1452, %v1451, %v1194
      %vm1485 = vcmask 261120
      %v1487 = vsel %vm1485, %v1454, %v1199
      %v1489 = vsel %vm1485, %v1456, %v1201
      %v1491 = vsel %vm1485, %v1458, %v1203
      %v1493 = vsel %vm1485, %v1460, %v1205
      %v1495 = vsel %vm1485, %v1462, %v1207
      %v1497 = vsel %vm1485, %v1464, %v1209
      %v1499 = vsel %vm1485, %v1466, %v1211
      %v1501 = vsel %vm1485, %v1468, %v1213
      %v1503 = vsel %vm1485, %v1470, %v1215
      %v1505 = vsel %vm1485, %v1472, %v1217
      %v1507 = vsel %vm1485, %v1474, %v1219
      %v1509 = vsel %vm1485, %v1476, %v1221
      %v1511 = vsel %vm1485, %v1478, %v1223
      %v1513 = vsel %vm1485, %v1480, %v1225
      %v1515 = vsel %vm1485, %v1482, %v1227
      %v1517 = vsel %vm1485, %v1484, %v1229
      %vm1518 = vcmask 326656
      %v1520 = vsel %vm1518, %v1487, %v1234
      %v1522 = vsel %vm1518, %v1489, %v1236
      %v1524 = vsel %vm1518, %v1491, %v1238
      %v1526 = vsel %vm1518, %v1493, %v1240
      %v1528 = vsel %vm1518, %v1495, %v1242
      %v1530 = vsel %vm1518, %v1497, %v1244
      %v1532 = vsel %vm1518, %v1499, %v1246
      %v1534 = vsel %vm1518, %v1501, %v1248
      %v1536 = vsel %vm1518, %v1503, %v1250
      %v1538 = vsel %vm1518, %v1505, %v1252
      %v1540 = vsel %vm1518, %v1507, %v1254
      %v1542 = vsel %vm1518, %v1509, %v1256
      %v1544 = vsel %vm1518, %v1511, %v1258
      %v1546 = vsel %vm1518, %v1513, %v1260
      %v1548 = vsel %vm1518, %v1515, %v1262
      %v1550 = vsel %vm1518, %v1517, %v1264
      %vm1551 = vcmask 392192
      %v1553 = vsel %vm1551, %v1520, %v1269
      %v1555 = vsel %vm1551, %v1522, %v1271
      %v1557 = vsel %vm1551, %v1524, %v1273
      %v1559 = vsel %vm1551, %v1526, %v1275
      %v1561 = vsel %vm1551, %v1528, %v1277
      %v1563 = vsel %vm1551, %v1530, %v1279
      %v1565 = vsel %vm1551, %v1532, %v1281
      %v1567 = vsel %vm1551, %v1534, %v1283
      %v1569 = vsel %vm1551, %v1536, %v1285
      %v1571 = vsel %vm1551, %v1538, %v1287
      %v1573 = vsel %vm1551, %v1540, %v1289
      %v1575 = vsel %vm1551, %v1542, %v1291
      %v1577 = vsel %vm1551, %v1544, %v1293
      %v1579 = vsel %vm1551, %v1546, %v1295
      %v1581 = vsel %vm1551, %v1548, %v1297
      %v1583 = vsel %vm1551, %v1550, %v1299
      %vm1584 = vcmask 457728
      %v1586 = vsel %vm1584, %v1553, %v1304
      %v1588 = vsel %vm1584, %v1555, %v1306
      %v1590 = vsel %vm1584, %v1557, %v1308
      %v1592 = vsel %vm1584, %v1559, %v1310
      %v1594 = vsel %vm1584, %v1561, %v1312
      %v1596 = vsel %vm1584, %v1563, %v1314
      %v1598 = vsel %vm1584, %v1565, %v1316
      %v1600 = vsel %vm1584, %v1567, %v1318
      %v1602 = vsel %vm1584, %v1569, %v1320
      %v1604 = vsel %vm1584, %v1571, %v1322
      %v1606 = vsel %vm1584, %v1573, %v1324
      %v1608 = vsel %vm1584, %v1575, %v1326
      %v1610 = vsel %vm1584, %v1577, %v1328
      %v1612 = vsel %vm1584, %v1579, %v1330
      %v1614 = vsel %vm1584, %v1581, %v1332
      %v1616 = vsel %vm1584, %v1583, %v1334
      %vm1617 = vcmask 523264
      %v1619 = vsel %vm1617, %v1586, %v1339
      %v1621 = vsel %vm1617, %v1588, %v1341
      %v1623 = vsel %vm1617, %v1590, %v1343
      %v1625 = vsel %vm1617, %v1592, %v1345
      %v1627 = vsel %vm1617, %v1594, %v1347
      %v1629 = vsel %vm1617, %v1596, %v1349
      %v1631 = vsel %vm1617, %v1598, %v1351
      %v1633 = vsel %vm1617, %v1600, %v1353
      %v1635 = vsel %vm1617, %v1602, %v1355
      %v1637 = vsel %vm1617, %v1604, %v1357
      %v1639 = vsel %vm1617, %v1606, %v1359
      %v1641 = vsel %vm1617, %v1608, %v1361
      %v1643 = vsel %vm1617, %v1610, %v1363
      %v1645 = vsel %vm1617, %v1612, %v1365
      %v1647 = vsel %vm1617, %v1614, %v1367
      %v1649 = vsel %vm1617, %v1616, %v1369
      %v1650 = vld [vmem:[%s1] sm:$0xf]
      %v1651 = vld [vmem:[%s1 + $0x4] sm:$0xf]
      %v1652 = vld [vmem:[%s1 + $0x8] sm:$0xf]
      %v1653 = vld [vmem:[%s1 + $0xc] sm:$0xf]
      %v1654 = vld [vmem:[%s1 + $0x10] sm:$0xf]
      %v1655 = vld [vmem:[%s1 + $0x14] sm:$0xf]
      %v1656 = vld [vmem:[%s1 + $0x18] sm:$0xf]
      %v1657 = vld [vmem:[%s1 + $0x1c] sm:$0xf]
      %v1658 = vld [vmem:[%s1 + $0x20] sm:$0xf]
      %v1668 = vunpack.c.l.b16 %v1650
      %v1669 = vunpack.c.l.b16 %v1651
      %v1670 = vunpack.c.l.b16 %v1652
      %v1671 = vunpack.c.l.b16 %v1653
      %v1672 = vunpack.c.l.b16 %v1654
      %v1673 = vunpack.c.l.b16 %v1655
      %v1674 = vunpack.c.l.b16 %v1656
      %v1675 = vunpack.c.l.b16 %v1657
      %v1676 = vunpack.c.l.b16 %v1658
      %v1677 = vpack.c.b16 %v1669, %v1668
      %v1678 = vpack.c.b16 %v1671, %v1670
      %v1679 = vpack.c.b16 %v1673, %v1672
      %v1680 = vpack.c.b16 %v1675, %v1674
      %v1681 = vpack.c.b16 %v1676, %v1676
      %vm1686 = vcmask 588800
      %v1687 = vsel %vm1686, %v1619, 0
      %v1689 = vsel %vm1686, %v1621, 0
      %v1691 = vsel %vm1686, %v1623, 0
      %v1693 = vsel %vm1686, %v1625, 0
      %v1695 = vsel %vm1686, %v1627, 0
      %v1697 = vsel %vm1686, %v1629, 0
      %v1699 = vsel %vm1686, %v1631, 0
      %v1701 = vsel %vm1686, %v1633, 0
      %v1703 = vsel %vm1686, %v1635, 0
      %v1705 = vsel %vm1686, %v1637, 0
      %v1707 = vsel %vm1686, %v1639, 0
      %v1709 = vsel %vm1686, %v1641, 0
      %v1711 = vsel %vm1686, %v1643, 0
      %v1713 = vsel %vm1686, %v1645, 0
      %v1715 = vsel %vm1686, %v1647, 0
      %v1717 = vsel %vm1686, %v1649, 0
      %vm1719 = vcmask 1043456
      %v1721 = vsel %vm1719, %v1681, 0
      %1723 = vmatprep.subr.bf16.mxu0 0
      %1724 = vmatpush1.bf16.msra.mxu0 0
      %1725 = vmatprep.subr.bf16.mxu0 0
      %1726 = vmatpush1.bf16.msra.mxu0 0
      %1727 = vmatprep.subr.bf16.mxu0 0
      %1728 = vmatpush1.bf16.msra.mxu0 0
      %1729 = vmatprep.subr.bf16.mxu0 0
      %1730 = vmatpush1.bf16.msra.mxu0 %v1721
      %1731 = vmatprep.subr.bf16.mxu0 0
      %1732 = vmatpush1.bf16.msra.mxu0 %v1680
      %1733 = vmatprep.subr.bf16.mxu0 0
      %1734 = vmatpush1.bf16.msra.mxu0 %v1679
      %1735 = vmatprep.subr.bf16.mxu0 0
      %1736 = vmatpush1.bf16.msra.mxu0 %v1678
      %1737 = vmatprep.subr.bf16.mxu0 0
      %1738 = vmatpush1.bf16.msra.mxu0 %v1677
      %1739 = vmatprep.subr.bf16.mxu0 0
      %1740 = vmatpush2.bf16.msra.mxu0 0
      %1741 = vmatprep.subr.bf16.mxu0 0
      %1742 = vmatpush2.bf16.msra.mxu0 0
      %1743 = vmatprep.subr.bf16.mxu0 0
      %1744 = vmatpush2.bf16.msra.mxu0 0
      %1745 = vmatprep.subr.bf16.mxu0 0
      %1746 = vmatpush2.bf16.msra.mxu0 0
      %1747 = vmatprep.subr.bf16.mxu0 0
      %1748 = vmatpush2.bf16.msra.mxu0 0
      %1749 = vmatprep.subr.bf16.mxu0 0
      %1750 = vmatpush2.bf16.msra.mxu0 0
      %1751 = vmatprep.subr.bf16.mxu0 0
      %1752 = vmatpush2.bf16.msra.mxu0 0
      %1753 = vmatprep.subr.bf16.mxu0 0
      %1754 = vmatpush2.bf16.msra.mxu0 0
      %1755 = vmatprep.mubr.bf16.mxu0 0
      %1756 = vmatmul.mubr.bf16.gmra.mxu0 %v1687
      %v1757 = vpop.f32.mrf.mxu0
      %v1758 = vadd.f32 0.0, %v1757
      %v1759 = vpop.f32.mrf.mxu0
      %v1760 = vpop.f32.mrf.mxu0
      %v1761 = vadd.f32 0.0, %v1760
      %v1762 = vpop.f32.mrf.mxu0
      %1763 = vmatprep.mubr.bf16.mxu0 0
      %1764 = vmatmul.mubr.bf16.gmra.mxu0 %v1689
      %v1765 = vpop.f32.mrf.mxu0
      %v1766 = vadd.f32 0.0, %v1765
      %v1767 = vpop.f32.mrf.mxu0
      %v1768 = vpop.f32.mrf.mxu0
      %v1769 = vadd.f32 0.0, %v1768
      %v1770 = vpop.f32.mrf.mxu0
      %1771 = vmatprep.mubr.bf16.mxu0 0
      %1772 = vmatmul.mubr.bf16.gmra.mxu0 %v1691
      %v1773 = vpop.f32.mrf.mxu0
      %v1774 = vadd.f32 0.0, %v1773
      %v1775 = vpop.f32.mrf.mxu0
      %v1776 = vpop.f32.mrf.mxu0
      %v1777 = vadd.f32 0.0, %v1776
      %v1778 = vpop.f32.mrf.mxu0
      %1779 = vmatprep.mubr.bf16.mxu0 0
      %1780 = vmatmul.mubr.bf16.gmra.mxu0 %v1693
      %v1781 = vpop.f32.mrf.mxu0
      %v1782 = vadd.f32 0.0, %v1781
      %v1783 = vpop.f32.mrf.mxu0
      %v1784 = vpop.f32.mrf.mxu0
      %v1785 = vadd.f32 0.0, %v1784
      %v1786 = vpop.f32.mrf.mxu0
      %1787 = vmatprep.mubr.bf16.mxu0 0
      %1788 = vmatmul.mubr.bf16.gmra.mxu0 %v1695
      %v1789 = vpop.f32.mrf.mxu0
      %v1790 = vadd.f32 0.0, %v1789
      %v1791 = vpop.f32.mrf.mxu0
      %v1792 = vpop.f32.mrf.mxu0
      %v1793 = vadd.f32 0.0, %v1792
      %v1794 = vpop.f32.mrf.mxu0
      %1795 = vmatprep.mubr.bf16.mxu0 0
      %1796 = vmatmul.mubr.bf16.gmra.mxu0 %v1697
      %v1797 = vpop.f32.mrf.mxu0
      %v1798 = vadd.f32 0.0, %v1797
      %v1799 = vpop.f32.mrf.mxu0
      %v1800 = vpop.f32.mrf.mxu0
      %v1801 = vadd.f32 0.0, %v1800
      %v1802 = vpop.f32.mrf.mxu0
      %1803 = vmatprep.mubr.bf16.mxu0 0
      %1804 = vmatmul.mubr.bf16.gmra.mxu0 %v1699
      %v1805 = vpop.f32.mrf.mxu0
      %v1806 = vadd.f32 0.0, %v1805
      %v1807 = vpop.f32.mrf.mxu0
      %v1808 = vpop.f32.mrf.mxu0
      %v1809 = vadd.f32 0.0, %v1808
      %v1810 = vpop.f32.mrf.mxu0
      %1811 = vmatprep.mubr.bf16.mxu0 0
      %1812 = vmatmul.mubr.bf16.gmra.mxu0 %v1701
      %v1813 = vpop.f32.mrf.mxu0
      %v1814 = vadd.f32 0.0, %v1813
      %v1815 = vpop.f32.mrf.mxu0
      %v1816 = vpop.f32.mrf.mxu0
      %v1817 = vadd.f32 0.0, %v1816
      %v1818 = vpop.f32.mrf.mxu0
      %1819 = vmatprep.mubr.bf16.mxu0 0
      %1820 = vmatmul.mubr.bf16.gmra.mxu0 %v1703
      %v1821 = vpop.f32.mrf.mxu0
      %v1822 = vadd.f32 0.0, %v1821
      %v1823 = vpop.f32.mrf.mxu0
      %v1824 = vpop.f32.mrf.mxu0
      %v1825 = vadd.f32 0.0, %v1824
      %v1826 = vpop.f32.mrf.mxu0
      %1827 = vmatprep.mubr.bf16.mxu0 0
      %1828 = vmatmul.mubr.bf16.gmra.mxu0 %v1705
      %v1829 = vpop.f32.mrf.mxu0
      %v1830 = vadd.f32 0.0, %v1829
      %v1831 = vpop.f32.mrf.mxu0
      %v1832 = vpop.f32.mrf.mxu0
      %v1833 = vadd.f32 0.0, %v1832
      %v1834 = vpop.f32.mrf.mxu0
      %1835 = vmatprep.mubr.bf16.mxu0 0
      %1836 = vmatmul.mubr.bf16.gmra.mxu0 %v1707
      %v1837 = vpop.f32.mrf.mxu0
      %v1838 = vadd.f32 0.0, %v1837
      %v1839 = vpop.f32.mrf.mxu0
      %v1840 = vpop.f32.mrf.mxu0
      %v1841 = vadd.f32 0.0, %v1840
      %v1842 = vpop.f32.mrf.mxu0
      %1843 = vmatprep.mubr.bf16.mxu0 0
      %1844 = vmatmul.mubr.bf16.gmra.mxu0 %v1709
      %v1845 = vpop.f32.mrf.mxu0
      %v1846 = vadd.f32 0.0, %v1845
      %v1847 = vpop.f32.mrf.mxu0
      %v1848 = vpop.f32.mrf.mxu0
      %v1849 = vadd.f32 0.0, %v1848
      %v1850 = vpop.f32.mrf.mxu0
      %1851 = vmatprep.mubr.bf16.mxu0 0
      %1852 = vmatmul.mubr.bf16.gmra.mxu0 %v1711
      %v1853 = vpop.f32.mrf.mxu0
      %v1854 = vadd.f32 0.0, %v1853
      %v1855 = vpop.f32.mrf.mxu0
      %v1856 = vpop.f32.mrf.mxu0
      %v1857 = vadd.f32 0.0, %v1856
      %v1858 = vpop.f32.mrf.mxu0
      %1859 = vmatprep.mubr.bf16.mxu0 0
      %1860 = vmatmul.mubr.bf16.gmra.mxu0 %v1713
      %v1861 = vpop.f32.mrf.mxu0
      %v1862 = vadd.f32 0.0, %v1861
      %v1863 = vpop.f32.mrf.mxu0
      %v1864 = vpop.f32.mrf.mxu0
      %v1865 = vadd.f32 0.0, %v1864
      %v1866 = vpop.f32.mrf.mxu0
      %1867 = vmatprep.mubr.bf16.mxu0 0
      %1868 = vmatmul.mubr.bf16.gmra.mxu0 %v1715
      %v1869 = vpop.f32.mrf.mxu0
      %v1870 = vadd.f32 0.0, %v1869
      %v1871 = vpop.f32.mrf.mxu0
      %v1872 = vpop.f32.mrf.mxu0
      %v1873 = vadd.f32 0.0, %v1872
      %v1874 = vpop.f32.mrf.mxu0
      %1875 = vmatprep.mubr.bf16.mxu0 0
      %1876 = vmatmul.mubr.bf16.gmra.mxu0 %v1717
      %v1877 = vpop.f32.mrf.mxu0
      %v1878 = vadd.f32 0.0, %v1877
      %v1879 = vpop.f32.mrf.mxu0
      %v1880 = vpop.f32.mrf.mxu0
      %v1881 = vadd.f32 0.0, %v1880
      %v1882 = vpop.f32.mrf.mxu0
      %1883 = vdwg.mxu0
      %v1884 = vld [vmem:[%s2] sm:$0x1]
      %v1886 = vlaneseq
      %v1887 = vshrl.u32 %v1886, 7
      %v1888 = vsub.s32 0, %v1887
      %v1889 = vrot.slane %v1884, %v1888
      %v1891 = vmul.f32 %v1758, %v1889
      %v1892 = vmul.f32 %v1761, %v1889
      %v1893 = vmul.f32 %v1766, %v1889
      %v1894 = vmul.f32 %v1769, %v1889
      %v1895 = vmul.f32 %v1774, %v1889
      %v1896 = vmul.f32 %v1777, %v1889
      %v1897 = vmul.f32 %v1782, %v1889
      %v1898 = vmul.f32 %v1785, %v1889
      %v1899 = vmul.f32 %v1790, %v1889
      %v1900 = vmul.f32 %v1793, %v1889
      %v1901 = vmul.f32 %v1798, %v1889
      %v1902 = vmul.f32 %v1801, %v1889
      %v1903 = vmul.f32 %v1806, %v1889
      %v1904 = vmul.f32 %v1809, %v1889
      %v1905 = vmul.f32 %v1814, %v1889
      %v1906 = vmul.f32 %v1817, %v1889
      %v1907 = vmul.f32 %v1822, %v1889
      %v1908 = vmul.f32 %v1825, %v1889
      %v1909 = vmul.f32 %v1830, %v1889
      %v1910 = vmul.f32 %v1833, %v1889
      %v1911 = vmul.f32 %v1838, %v1889
      %v1912 = vmul.f32 %v1841, %v1889
      %v1913 = vmul.f32 %v1846, %v1889
      %v1914 = vmul.f32 %v1849, %v1889
      %v1915 = vmul.f32 %v1854, %v1889
      %v1916 = vmul.f32 %v1857, %v1889
      %v1917 = vmul.f32 %v1862, %v1889
      %v1918 = vmul.f32 %v1865, %v1889
      %v1919 = vmul.f32 %v1870, %v1889
      %v1920 = vmul.f32 %v1873, %v1889
      %v1921 = vmul.f32 %v1878, %v1889
      %v1922 = vmul.f32 %v1881, %v1889
      %v1923 = vld [vmem:[%s3] sm:$0x1]
      %v1925 = vlaneseq
      %v1926 = vshrl.u32 %v1925, 7
      %v1927 = vsub.s32 0, %v1926
      %v1928 = vrot.slane %v1923, %v1927
      %v1930 = vadd.f32 %v1891, %v1928
      %v1931 = vadd.f32 %v1892, %v1928
      %v1932 = vadd.f32 %v1893, %v1928
      %v1933 = vadd.f32 %v1894, %v1928
      %v1934 = vadd.f32 %v1895, %v1928
      %v1935 = vadd.f32 %v1896, %v1928
      %v1936 = vadd.f32 %v1897, %v1928
      %v1937 = vadd.f32 %v1898, %v1928
      %v1938 = vadd.f32 %v1899, %v1928
      %v1939 = vadd.f32 %v1900, %v1928
      %v1940 = vadd.f32 %v1901, %v1928
      %v1941 = vadd.f32 %v1902, %v1928
      %v1942 = vadd.f32 %v1903, %v1928
      %v1943 = vadd.f32 %v1904, %v1928
      %v1944 = vadd.f32 %v1905, %v1928
      %v1945 = vadd.f32 %v1906, %v1928
      %v1946 = vadd.f32 %v1907, %v1928
      %v1947 = vadd.f32 %v1908, %v1928
      %v1948 = vadd.f32 %v1909, %v1928
      %v1949 = vadd.f32 %v1910, %v1928
      %v1950 = vadd.f32 %v1911, %v1928
      %v1951 = vadd.f32 %v1912, %v1928
      %v1952 = vadd.f32 %v1913, %v1928
      %v1953 = vadd.f32 %v1914, %v1928
      %v1954 = vadd.f32 %v1915, %v1928
      %v1955 = vadd.f32 %v1916, %v1928
      %v1956 = vadd.f32 %v1917, %v1928
      %v1957 = vadd.f32 %v1918, %v1928
      %v1958 = vadd.f32 %v1919, %v1928
      %v1959 = vadd.f32 %v1920, %v1928
      %v1960 = vadd.f32 %v1921, %v1928
      %v1961 = vadd.f32 %v1922, %v1928
      %v1962 = vmax.f32 %v1930, 0.0
      %v1963 = vmax.f32 %v1931, 0.0
      %v1964 = vmax.f32 %v1932, 0.0
      %v1965 = vmax.f32 %v1933, 0.0
      %v1966 = vmax.f32 %v1934, 0.0
      %v1967 = vmax.f32 %v1935, 0.0
      %v1968 = vmax.f32 %v1936, 0.0
      %v1969 = vmax.f32 %v1937, 0.0
      %v1970 = vmax.f32 %v1938, 0.0
      %v1971 = vmax.f32 %v1939, 0.0
      %v1972 = vmax.f32 %v1940, 0.0
      %v1973 = vmax.f32 %v1941, 0.0
      %v1974 = vmax.f32 %v1942, 0.0
      %v1975 = vmax.f32 %v1943, 0.0
      %v1976 = vmax.f32 %v1944, 0.0
      %v1977 = vmax.f32 %v1945, 0.0
      %v1978 = vmax.f32 %v1946, 0.0
      %v1979 = vmax.f32 %v1947, 0.0
      %v1980 = vmax.f32 %v1948, 0.0
      %v1981 = vmax.f32 %v1949, 0.0
      %v1982 = vmax.f32 %v1950, 0.0
      %v1983 = vmax.f32 %v1951, 0.0
      %v1984 = vmax.f32 %v1952, 0.0
      %v1985 = vmax.f32 %v1953, 0.0
      %v1986 = vmax.f32 %v1954, 0.0
      %v1987 = vmax.f32 %v1955, 0.0
      %v1988 = vmax.f32 %v1956, 0.0
      %v1989 = vmax.f32 %v1957, 0.0
      %v1990 = vmax.f32 %v1958, 0.0
      %v1991 = vmax.f32 %v1959, 0.0
      %v1992 = vmax.f32 %v1960, 0.0
      %v1993 = vmax.f32 %v1961, 0.0
      %1994 = vst [vmem:[#allocation2] sm:$0xf] 0
      %1995 = vst [vmem:[#allocation2 + $0x4] sm:$0xf] 0
      %1996 = vst [vmem:[#allocation2 + $0x8] sm:$0x1] 0
      %s1997 = scalar_lea.vmem [#allocation2], 204
      %1998 = vst [vmem:[%s1997] sm:$0xf] 0
      %1999 = vst [vmem:[%s1997 + $0x4] sm:$0xf] 0
      %2000 = vst [vmem:[%s1997 + $0x8] sm:$0x1] 0
      %vm2001 = vcmask 1040384
      %vm2002 = vsmask.f32 256
      %vm2003 = vmand %vm2001, %vm2002
      %v2004 = vld [vmem:[#allocation2] sm:$0x1]
      %v2005 = vsel %vm2003, 0, %v2004
      %2006 = vst [vmem:[#allocation2] sm:$0x1] %v2005
      %v2007 = vld [vmem:[#allocation2 + $0xc] sm:$0x1]
      %v2008 = vsel %vm2003, 0, %v2007
      %2009 = vst [vmem:[#allocation2 + $0xc] sm:$0x1] %v2008
      %v2010 = vld [vmem:[#allocation2 + $0x18] sm:$0x1]
      %v2011 = vsel %vm2003, 0, %v2010
      %2012 = vst [vmem:[#allocation2 + $0x18] sm:$0x1] %v2011
      %v2013 = vld [vmem:[#allocation2 + $0x24] sm:$0x1]
      %v2014 = vsel %vm2003, 0, %v2013
      %2015 = vst [vmem:[#allocation2 + $0x24] sm:$0x1] %v2014
      %v2016 = vld [vmem:[#allocation2 + $0x30] sm:$0x1]
      %v2017 = vsel %vm2003, 0, %v2016
      %2018 = vst [vmem:[#allocation2 + $0x30] sm:$0x1] %v2017
      %v2019 = vld [vmem:[#allocation2 + $0x3c] sm:$0x1]
      %v2020 = vsel %vm2003, 0, %v2019
      %2021 = vst [vmem:[#allocation2 + $0x3c] sm:$0x1] %v2020
      %v2022 = vld [vmem:[#allocation2 + $0x48] sm:$0x1]
      %v2023 = vsel %vm2003, 0, %v2022
      %2024 = vst [vmem:[#allocation2 + $0x48] sm:$0x1] %v2023
      %v2025 = vld [vmem:[#allocation2 + $0x54] sm:$0x1]
      %v2026 = vsel %vm2003, 0, %v2025
      %2027 = vst [vmem:[#allocation2 + $0x54] sm:$0x1] %v2026
      %v2028 = vld [vmem:[#allocation2 + $0x60] sm:$0x1]
      %v2029 = vsel %vm2003, 0, %v2028
      %2030 = vst [vmem:[#allocation2 + $0x60] sm:$0x1] %v2029
      %v2031 = vld [vmem:[#allocation2 + $0x6c] sm:$0x1]
      %v2032 = vsel %vm2003, 0, %v2031
      %2033 = vst [vmem:[#allocation2 + $0x6c] sm:$0x1] %v2032
      %v2034 = vld [vmem:[#allocation2 + $0x78] sm:$0x1]
      %v2035 = vsel %vm2003, 0, %v2034
      %2036 = vst [vmem:[#allocation2 + $0x78] sm:$0x1] %v2035
      %v2037 = vld [vmem:[#allocation2 + $0x84] sm:$0x1]
      %v2038 = vsel %vm2003, 0, %v2037
      %2039 = vst [vmem:[#allocation2 + $0x84] sm:$0x1] %v2038
      %v2040 = vld [vmem:[#allocation2 + $0x90] sm:$0x1]
      %v2041 = vsel %vm2003, 0, %v2040
      %2042 = vst [vmem:[#allocation2 + $0x90] sm:$0x1] %v2041
      %v2043 = vld [vmem:[#allocation2 + $0x9c] sm:$0x1]
      %v2044 = vsel %vm2003, 0, %v2043
      %2045 = vst [vmem:[#allocation2 + $0x9c] sm:$0x1] %v2044
      %v2046 = vld [vmem:[#allocation2 + $0xa8] sm:$0x1]
      %v2047 = vsel %vm2003, 0, %v2046
      %2048 = vst [vmem:[#allocation2 + $0xa8] sm:$0x1] %v2047
      %v2049 = vld [vmem:[#allocation2 + $0xb4] sm:$0x1]
      %v2050 = vsel %vm2003, 0, %v2049
      %2051 = vst [vmem:[#allocation2 + $0xb4] sm:$0x1] %v2050
      %v2052 = vld [vmem:[#allocation2 + $0xc0] sm:$0x1]
      %v2053 = vsel %vm2003, 0, %v2052
      %2054 = vst [vmem:[#allocation2 + $0xc0] sm:$0x1] %v2053
      %v2055 = vld [vmem:[#allocation2 + $0xcc] sm:$0x1]
      %v2056 = vsel %vm2003, 0, %v2055
      %2057 = vst [vmem:[#allocation2 + $0xcc] sm:$0x1] %v2056
      %vm2058 = vsmask.f32 7938
      %vm2059 = vmand %vm2001, %vm2058
      %v2060 = vld [vmem:[#allocation2 + $0x8] sm:$0x1]
      %v2061 = vsel %vm2059, 0, %v2060
      %2062 = vst [vmem:[#allocation2 + $0x8] sm:$0x1] %v2061
      %v2063 = vld [vmem:[#allocation2 + $0x14] sm:$0x1]
      %v2064 = vsel %vm2059, 0, %v2063
      %2065 = vst [vmem:[#allocation2 + $0x14] sm:$0x1] %v2064
      %v2066 = vld [vmem:[#allocation2 + $0x20] sm:$0x1]
      %v2067 = vsel %vm2059, 0, %v2066
      %2068 = vst [vmem:[#allocation2 + $0x20] sm:$0x1] %v2067
      %v2069 = vld [vmem:[#allocation2 + $0x2c] sm:$0x1]
      %v2070 = vsel %vm2059, 0, %v2069
      %2071 = vst [vmem:[#allocation2 + $0x2c] sm:$0x1] %v2070
      %v2072 = vld [vmem:[#allocation2 + $0x38] sm:$0x1]
      %v2073 = vsel %vm2059, 0, %v2072
      %2074 = vst [vmem:[#allocation2 + $0x38] sm:$0x1] %v2073
      %v2075 = vld [vmem:[#allocation2 + $0x44] sm:$0x1]
      %v2076 = vsel %vm2059, 0, %v2075
      %2077 = vst [vmem:[#allocation2 + $0x44] sm:$0x1] %v2076
      %v2078 = vld [vmem:[#allocation2 + $0x50] sm:$0x1]
      %v2079 = vsel %vm2059, 0, %v2078
      %2080 = vst [vmem:[#allocation2 + $0x50] sm:$0x1] %v2079
      %v2081 = vld [vmem:[#allocation2 + $0x5c] sm:$0x1]
      %v2082 = vsel %vm2059, 0, %v2081
      %2083 = vst [vmem:[#allocation2 + $0x5c] sm:$0x1] %v2082
      %v2084 = vld [vmem:[#allocation2 + $0x68] sm:$0x1]
      %v2085 = vsel %vm2059, 0, %v2084
      %2086 = vst [vmem:[#allocation2 + $0x68] sm:$0x1] %v2085
      %v2087 = vld [vmem:[#allocation2 + $0x74] sm:$0x1]
      %v2088 = vsel %vm2059, 0, %v2087
      %2089 = vst [vmem:[#allocation2 + $0x74] sm:$0x1] %v2088
      %v2090 = vld [vmem:[#allocation2 + $0x80] sm:$0x1]
      %v2091 = vsel %vm2059, 0, %v2090
      %2092 = vst [vmem:[#allocation2 + $0x80] sm:$0x1] %v2091
      %v2093 = vld [vmem:[#allocation2 + $0x8c] sm:$0x1]
      %v2094 = vsel %vm2059, 0, %v2093
      %2095 = vst [vmem:[#allocation2 + $0x8c] sm:$0x1] %v2094
      %v2096 = vld [vmem:[#allocation2 + $0x98] sm:$0x1]
      %v2097 = vsel %vm2059, 0, %v2096
      %2098 = vst [vmem:[#allocation2 + $0x98] sm:$0x1] %v2097
      %v2099 = vld [vmem:[#allocation2 + $0xa4] sm:$0x1]
      %v2100 = vsel %vm2059, 0, %v2099
      %2101 = vst [vmem:[#allocation2 + $0xa4] sm:$0x1] %v2100
      %v2102 = vld [vmem:[#allocation2 + $0xb0] sm:$0x1]
      %v2103 = vsel %vm2059, 0, %v2102
      %2104 = vst [vmem:[#allocation2 + $0xb0] sm:$0x1] %v2103
      %v2105 = vld [vmem:[#allocation2 + $0xbc] sm:$0x1]
      %v2106 = vsel %vm2059, 0, %v2105
      %2107 = vst [vmem:[#allocation2 + $0xbc] sm:$0x1] %v2106
      %v2108 = vld [vmem:[#allocation2 + $0xc8] sm:$0x1]
      %v2109 = vsel %vm2059, 0, %v2108
      %2110 = vst [vmem:[#allocation2 + $0xc8] sm:$0x1] %v2109
      %v2111 = vld [vmem:[#allocation2 + $0xd4] sm:$0x1]
      %v2112 = vsel %vm2059, 0, %v2111
      %2113 = vst [vmem:[#allocation2 + $0xd4] sm:$0x1] %v2112
      %v2114 = vpack.c.bf16 %v1963, %v1962
      %v2115 = vpack.c.bf16 %v1965, %v1964
      %v2116 = vpack.c.bf16 %v1967, %v1966
      %v2117 = vpack.c.bf16 %v1969, %v1968
      %v2118 = vpack.c.bf16 %v1971, %v1970
      %v2119 = vpack.c.bf16 %v1973, %v1972
      %v2120 = vpack.c.bf16 %v1975, %v1974
      %v2121 = vpack.c.bf16 %v1977, %v1976
      %v2122 = vpack.c.bf16 %v1979, %v1978
      %v2123 = vpack.c.bf16 %v1981, %v1980
      %v2124 = vpack.c.bf16 %v1983, %v1982
      %v2125 = vpack.c.bf16 %v1985, %v1984
      %v2126 = vpack.c.bf16 %v1987, %v1986
      %v2127 = vpack.c.bf16 %v1989, %v1988
      %v2128 = vpack.c.bf16 %v1991, %v1990
      %v2129 = vpack.c.bf16 %v1993, %v1992
      %v2146 = vunpack.c.l.b16 %v2114
      %v2147 = vunpack.c.h.b16 %v2114
      %v2148 = vunpack.c.l.b16 %v2115
      %v2149 = vunpack.c.h.b16 %v2115
      %v2150 = vunpack.c.l.b16 %v2116
      %v2151 = vunpack.c.h.b16 %v2116
      %v2152 = vunpack.c.l.b16 %v2117
      %v2153 = vunpack.c.h.b16 %v2117
      %v2154 = vunpack.c.l.b16 %v2118
      %v2155 = vunpack.c.h.b16 %v2118
      %v2156 = vunpack.c.l.b16 %v2119
      %v2157 = vunpack.c.h.b16 %v2119
      %v2158 = vunpack.c.l.b16 %v2120
      %v2159 = vunpack.c.h.b16 %v2120
      %v2160 = vunpack.c.l.b16 %v2121
      %v2161 = vunpack.c.h.b16 %v2121
      %v2162 = vunpack.c.l.b16 %v2122
      %v2163 = vunpack.c.h.b16 %v2122
      %v2164 = vunpack.c.l.b16 %v2123
      %v2165 = vunpack.c.h.b16 %v2123
      %v2166 = vunpack.c.l.b16 %v2124
      %v2167 = vunpack.c.h.b16 %v2124
      %v2168 = vunpack.c.l.b16 %v2125
      %v2169 = vunpack.c.h.b16 %v2125
      %v2170 = vunpack.c.l.b16 %v2126
      %v2171 = vunpack.c.h.b16 %v2126
      %v2172 = vunpack.c.l.b16 %v2127
      %v2173 = vunpack.c.h.b16 %v2127
      %v2174 = vunpack.c.l.b16 %v2128
      %v2175 = vunpack.c.h.b16 %v2128
      %v2176 = vunpack.c.l.b16 %v2129
      %v2177 = vunpack.c.h.b16 %v2129
      %v2178 = vpack.c.b16 %v2146, %v2146
      %v2179 = vpack.c.b16 %v2147, %v2147
      %v2180 = vpack.c.b16 %v2148, %v2148
      %v2181 = vpack.c.b16 %v2149, %v2149
      %v2182 = vpack.c.b16 %v2150, %v2150
      %v2183 = vpack.c.b16 %v2151, %v2151
      %v2184 = vpack.c.b16 %v2152, %v2152
      %v2185 = vpack.c.b16 %v2153, %v2153
      %v2186 = vpack.c.b16 %v2154, %v2154
      %v2187 = vpack.c.b16 %v2155, %v2155
      %v2188 = vpack.c.b16 %v2156, %v2156
      %v2189 = vpack.c.b16 %v2157, %v2157
      %v2190 = vpack.c.b16 %v2158, %v2158
      %v2191 = vpack.c.b16 %v2159, %v2159
      %v2192 = vpack.c.b16 %v2160, %v2160
      %v2193 = vpack.c.b16 %v2161, %v2161
      %v2194 = vpack.c.b16 %v2162, %v2162
      %v2195 = vpack.c.b16 %v2163, %v2163
      %v2196 = vpack.c.b16 %v2164, %v2164
      %v2197 = vpack.c.b16 %v2165, %v2165
      %v2198 = vpack.c.b16 %v2166, %v2166
      %v2199 = vpack.c.b16 %v2167, %v2167
      %v2200 = vpack.c.b16 %v2168, %v2168
      %v2201 = vpack.c.b16 %v2169, %v2169
      %v2202 = vpack.c.b16 %v2170, %v2170
      %v2203 = vpack.c.b16 %v2171, %v2171
      %v2204 = vpack.c.b16 %v2172, %v2172
      %v2205 = vpack.c.b16 %v2173, %v2173
      %v2206 = vpack.c.b16 %v2174, %v2174
      %v2207 = vpack.c.b16 %v2175, %v2175
      %v2208 = vpack.c.b16 %v2176, %v2176
      %v2209 = vpack.c.b16 %v2177, %v2177
      %vm2210 = vsmask.f32 4368
      %vm2211 = vmor %vm2002, %vm2210
      %v2213 = vshrl.u32 %v2178, 16
      %v2215 = vrot.slane %v2213, 7
      %v2216 = vshll.u32 %v2178, 16
      %v2218 = vor.u32 %v2215, %v2216
      %v2219 = vrot.slane %v2215, 4
      %v2221 = vshrl.u32 %v2179, 16
      %v2223 = vrot.slane %v2221, 7
      %v2224 = vshll.u32 %v2179, 16
      %v2226 = vor.u32 %v2223, %v2224
      %v2227 = vsel %vm2211, %v2219, %v2226
      %v2228 = vrot.slane %v2223, 4
      %v2230 = vshrl.u32 %v2180, 16
      %v2232 = vrot.slane %v2230, 7
      %v2233 = vshll.u32 %v2180, 16
      %v2235 = vor.u32 %v2232, %v2233
      %v2236 = vrot.slane %v2232, 4
      %v2238 = vshrl.u32 %v2181, 16
      %v2240 = vrot.slane %v2238, 7
      %v2241 = vshll.u32 %v2181, 16
      %v2243 = vor.u32 %v2240, %v2241
      %v2244 = vsel %vm2211, %v2236, %v2243
      %v2245 = vrot.slane %v2240, 4
      %v2247 = vshrl.u32 %v2182, 16
      %v2249 = vrot.slane %v2247, 7
      %v2250 = vshll.u32 %v2182, 16
      %v2252 = vor.u32 %v2249, %v2250
      %v2253 = vrot.slane %v2249, 4
      %v2255 = vshrl.u32 %v2183, 16
      %v2257 = vrot.slane %v2255, 7
      %v2258 = vshll.u32 %v2183, 16
      %v2260 = vor.u32 %v2257, %v2258
      %v2261 = vsel %vm2211, %v2253, %v2260
      %v2262 = vrot.slane %v2257, 4
      %v2264 = vshrl.u32 %v2184, 16
      %v2266 = vrot.slane %v2264, 7
      %v2267 = vshll.u32 %v2184, 16
      %v2269 = vor.u32 %v2266, %v2267
      %v2270 = vrot.slane %v2266, 4
      %v2272 = vshrl.u32 %v2185, 16
      %v2274 = vrot.slane %v2272, 7
      %v2275 = vshll.u32 %v2185, 16
      %v2277 = vor.u32 %v2274, %v2275
      %v2278 = vsel %vm2211, %v2270, %v2277
      %v2279 = vrot.slane %v2274, 4
      %v2281 = vshrl.u32 %v2186, 16
      %v2283 = vrot.slane %v2281, 7
      %v2284 = vshll.u32 %v2186, 16
      %v2286 = vor.u32 %v2283, %v2284
      %v2287 = vrot.slane %v2283, 4
      %v2289 = vshrl.u32 %v2187, 16
      %v2291 = vrot.slane %v2289, 7
      %v2292 = vshll.u32 %v2187, 16
      %v2294 = vor.u32 %v2291, %v2292
      %v2295 = vsel %vm2211, %v2287, %v2294
      %v2296 = vrot.slane %v2291, 4
      %v2298 = vshrl.u32 %v2188, 16
      %v2300 = vrot.slane %v2298, 7
      %v2301 = vshll.u32 %v2188, 16
      %v2303 = vor.u32 %v2300, %v2301
      %v2304 = vrot.slane %v2300, 4
      %v2306 = vshrl.u32 %v2189, 16
      %v2308 = vrot.slane %v2306, 7
      %v2309 = vshll.u32 %v2189, 16
      %v2311 = vor.u32 %v2308, %v2309
      %v2312 = vsel %vm2211, %v2304, %v2311
      %v2313 = vrot.slane %v2308, 4
      %v2315 = vshrl.u32 %v2190, 16
      %v2317 = vrot.slane %v2315, 7
      %v2318 = vshll.u32 %v2190, 16
      %v2320 = vor.u32 %v2317, %v2318
      %v2321 = vrot.slane %v2317, 4
      %v2323 = vshrl.u32 %v2191, 16
      %v2325 = vrot.slane %v2323, 7
      %v2326 = vshll.u32 %v2191, 16
      %v2328 = vor.u32 %v2325, %v2326
      %v2329 = vsel %vm2211, %v2321, %v2328
      %v2330 = vrot.slane %v2325, 4
      %v2332 = vshrl.u32 %v2192, 16
      %v2334 = vrot.slane %v2332, 7
      %v2335 = vshll.u32 %v2192, 16
      %v2337 = vor.u32 %v2334, %v2335
      %v2338 = vrot.slane %v2334, 4
      %v2340 = vshrl.u32 %v2193, 16
      %v2342 = vrot.slane %v2340, 7
      %v2343 = vshll.u32 %v2193, 16
      %v2345 = vor.u32 %v2342, %v2343
      %v2346 = vsel %vm2211, %v2338, %v2345
      %v2347 = vrot.slane %v2342, 4
      %v2349 = vshrl.u32 %v2194, 16
      %v2351 = vrot.slane %v2349, 7
      %v2352 = vshll.u32 %v2194, 16
      %v2354 = vor.u32 %v2351, %v2352
      %v2355 = vrot.slane %v2351, 4
      %v2357 = vshrl.u32 %v2195, 16
      %v2359 = vrot.slane %v2357, 7
      %v2360 = vshll.u32 %v2195, 16
      %v2362 = vor.u32 %v2359, %v2360
      %v2363 = vsel %vm2211, %v2355, %v2362
      %v2364 = vrot.slane %v2359, 4
      %v2366 = vshrl.u32 %v2196, 16
      %v2368 = vrot.slane %v2366, 7
      %v2369 = vshll.u32 %v2196, 16
      %v2371 = vor.u32 %v2368, %v2369
      %v2372 = vrot.slane %v2368, 4
      %v2374 = vshrl.u32 %v2197, 16
      %v2376 = vrot.slane %v2374, 7
      %v2377 = vshll.u32 %v2197, 16
      %v2379 = vor.u32 %v2376, %v2377
      %v2380 = vsel %vm2211, %v2372, %v2379
      %v2381 = vrot.slane %v2376, 4
      %v2383 = vshrl.u32 %v2198, 16
      %v2385 = vrot.slane %v2383, 7
      %v2386 = vshll.u32 %v2198, 16
      %v2388 = vor.u32 %v2385, %v2386
      %v2389 = vrot.slane %v2385, 4
      %v2391 = vshrl.u32 %v2199, 16
      %v2393 = vrot.slane %v2391, 7
      %v2394 = vshll.u32 %v2199, 16
      %v2396 = vor.u32 %v2393, %v2394
      %v2397 = vsel %vm2211, %v2389, %v2396
      %v2398 = vrot.slane %v2393, 4
      %v2400 = vshrl.u32 %v2200, 16
      %v2402 = vrot.slane %v2400, 7
      %v2403 = vshll.u32 %v2200, 16
      %v2405 = vor.u32 %v2402, %v2403
      %v2406 = vrot.slane %v2402, 4
      %v2408 = vshrl.u32 %v2201, 16
      %v2410 = vrot.slane %v2408, 7
      %v2411 = vshll.u32 %v2201, 16
      %v2413 = vor.u32 %v2410, %v2411
      %v2414 = vsel %vm2211, %v2406, %v2413
      %v2415 = vrot.slane %v2410, 4
      %v2417 = vshrl.u32 %v2202, 16
      %v2419 = vrot.slane %v2417, 7
      %v2420 = vshll.u32 %v2202, 16
      %v2422 = vor.u32 %v2419, %v2420
      %v2423 = vrot.slane %v2419, 4
      %v2425 = vshrl.u32 %v2203, 16
      %v2427 = vrot.slane %v2425, 7
      %v2428 = vshll.u32 %v2203, 16
      %v2430 = vor.u32 %v2427, %v2428
      %v2431 = vsel %vm2211, %v2423, %v2430
      %v2432 = vrot.slane %v2427, 4
      %v2434 = vshrl.u32 %v2204, 16
      %v2436 = vrot.slane %v2434, 7
      %v2437 = vshll.u32 %v2204, 16
      %v2439 = vor.u32 %v2436, %v2437
      %v2440 = vrot.slane %v2436, 4
      %v2442 = vshrl.u32 %v2205, 16
      %v2444 = vrot.slane %v2442, 7
      %v2445 = vshll.u32 %v2205, 16
      %v2447 = vor.u32 %v2444, %v2445
      %v2448 = vsel %vm2211, %v2440, %v2447
      %v2449 = vrot.slane %v2444, 4
      %v2451 = vshrl.u32 %v2206, 16
      %v2453 = vrot.slane %v2451, 7
      %v2454 = vshll.u32 %v2206, 16
      %v2456 = vor.u32 %v2453, %v2454
      %v2457 = vrot.slane %v2453, 4
      %v2459 = vshrl.u32 %v2207, 16
      %v2461 = vrot.slane %v2459, 7
      %v2462 = vshll.u32 %v2207, 16
      %v2464 = vor.u32 %v2461, %v2462
      %v2465 = vsel %vm2211, %v2457, %v2464
      %v2466 = vrot.slane %v2461, 4
      %v2468 = vshrl.u32 %v2208, 16
      %v2470 = vrot.slane %v2468, 7
      %v2471 = vshll.u32 %v2208, 16
      %v2473 = vor.u32 %v2470, %v2471
      %v2474 = vrot.slane %v2470, 4
      %v2476 = vshrl.u32 %v2209, 16
      %v2478 = vrot.slane %v2476, 7
      %v2479 = vshll.u32 %v2209, 16
      %v2481 = vor.u32 %v2478, %v2479
      %v2482 = vsel %vm2211, %v2474, %v2481
      %v2483 = vrot.slane %v2478, 4
      %s2532 = scalar_lea.vmem [#allocation2], 12
      %vm2533 = vcmask 1043456
      %vm2534 = vmand %vm2533, %vm2058
      %v2535 = vld [vmem:[%s2532] sm:$0xf]
      %v2536 = vsel %vm2534, %v2218, %v2535
      %2537 = vst [vmem:[%s2532] sm:$0xf] %v2536
      %2538 = vst [vmem:[%s2532 + $0x4] sm:$0xf] %v2227
      %v2539 = vld [vmem:[%s2532 + $0x8] sm:$0x1]
      %v2540 = vsel %vm2003, %v2228, %v2539
      %2541 = vst [vmem:[%s2532 + $0x8] sm:$0x1] %v2540
      %v2542 = vld [vmem:[%s2532 + $0xc] sm:$0xf]
      %v2543 = vsel %vm2534, %v2235, %v2542
      %2544 = vst [vmem:[%s2532 + $0xc] sm:$0xf] %v2543
      %2545 = vst [vmem:[%s2532 + $0x10] sm:$0xf] %v2244
      %v2546 = vld [vmem:[%s2532 + $0x14] sm:$0x1]
      %v2547 = vsel %vm2003, %v2245, %v2546
      %2548 = vst [vmem:[%s2532 + $0x14] sm:$0x1] %v2547
      %v2549 = vld [vmem:[%s2532 + $0x18] sm:$0xf]
      %v2550 = vsel %vm2534, %v2252, %v2549
      %2551 = vst [vmem:[%s2532 + $0x18] sm:$0xf] %v2550
      %2552 = vst [vmem:[%s2532 + $0x1c] sm:$0xf] %v2261
      %v2553 = vld [vmem:[%s2532 + $0x20] sm:$0x1]
      %v2554 = vsel %vm2003, %v2262, %v2553
      %2555 = vst [vmem:[%s2532 + $0x20] sm:$0x1] %v2554
      %v2556 = vld [vmem:[%s2532 + $0x24] sm:$0xf]
      %v2557 = vsel %vm2534, %v2269, %v2556
      %2558 = vst [vmem:[%s2532 + $0x24] sm:$0xf] %v2557
      %2559 = vst [vmem:[%s2532 + $0x28] sm:$0xf] %v2278
      %v2560 = vld [vmem:[%s2532 + $0x2c] sm:$0x1]
      %v2561 = vsel %vm2003, %v2279, %v2560
      %2562 = vst [vmem:[%s2532 + $0x2c] sm:$0x1] %v2561
      %v2563 = vld [vmem:[%s2532 + $0x30] sm:$0xf]
      %v2564 = vsel %vm2534, %v2286, %v2563
      %2565 = vst [vmem:[%s2532 + $0x30] sm:$0xf] %v2564
      %2566 = vst [vmem:[%s2532 + $0x34] sm:$0xf] %v2295
      %v2567 = vld [vmem:[%s2532 + $0x38] sm:$0x1]
      %v2568 = vsel %vm2003, %v2296, %v2567
      %2569 = vst [vmem:[%s2532 + $0x38] sm:$0x1] %v2568
      %v2570 = vld [vmem:[%s2532 + $0x3c] sm:$0xf]
      %v2571 = vsel %vm2534, %v2303, %v2570
      %2572 = vst [vmem:[%s2532 + $0x3c] sm:$0xf] %v2571
      %2573 = vst [vmem:[%s2532 + $0x40] sm:$0xf] %v2312
      %v2574 = vld [vmem:[%s2532 + $0x44] sm:$0x1]
      %v2575 = vsel %vm2003, %v2313, %v2574
      %2576 = vst [vmem:[%s2532 + $0x44] sm:$0x1] %v2575
      %v2577 = vld [vmem:[%s2532 + $0x48] sm:$0xf]
      %v2578 = vsel %vm2534, %v2320, %v2577
      %2579 = vst [vmem:[%s2532 + $0x48] sm:$0xf] %v2578
      %2580 = vst [vmem:[%s2532 + $0x4c] sm:$0xf] %v2329
      %v2581 = vld [vmem:[%s2532 + $0x50] sm:$0x1]
      %v2582 = vsel %vm2003, %v2330, %v2581
      %2583 = vst [vmem:[%s2532 + $0x50] sm:$0x1] %v2582
      %v2584 = vld [vmem:[%s2532 + $0x54] sm:$0xf]
      %v2585 = vsel %vm2534, %v2337, %v2584
      %2586 = vst [vmem:[%s2532 + $0x54] sm:$0xf] %v2585
      %2587 = vst [vmem:[%s2532 + $0x58] sm:$0xf] %v2346
      %v2588 = vld [vmem:[%s2532 + $0x5c] sm:$0x1]
      %v2589 = vsel %vm2003, %v2347, %v2588
      %2590 = vst [vmem:[%s2532 + $0x5c] sm:$0x1] %v2589
      %v2591 = vld [vmem:[%s2532 + $0x60] sm:$0xf]
      %v2592 = vsel %vm2534, %v2354, %v2591
      %2593 = vst [vmem:[%s2532 + $0x60] sm:$0xf] %v2592
      %2594 = vst [vmem:[%s2532 + $0x64] sm:$0xf] %v2363
      %v2595 = vld [vmem:[%s2532 + $0x68] sm:$0x1]
      %v2596 = vsel %vm2003, %v2364, %v2595
      %2597 = vst [vmem:[%s2532 + $0x68] sm:$0x1] %v2596
      %v2598 = vld [vmem:[%s2532 + $0x6c] sm:$0xf]
      %v2599 = vsel %vm2534, %v2371, %v2598
      %2600 = vst [vmem:[%s2532 + $0x6c] sm:$0xf] %v2599
      %2601 = vst [vmem:[%s2532 + $0x70] sm:$0xf] %v2380
      %v2602 = vld [vmem:[%s2532 + $0x74] sm:$0x1]
      %v2603 = vsel %vm2003, %v2381, %v2602
      %2604 = vst [vmem:[%s2532 + $0x74] sm:$0x1] %v2603
      %v2605 = vld [vmem:[%s2532 + $0x78] sm:$0xf]
      %v2606 = vsel %vm2534, %v2388, %v2605
      %2607 = vst [vmem:[%s2532 + $0x78] sm:$0xf] %v2606
      %2608 = vst [vmem:[%s2532 + $0x7c] sm:$0xf] %v2397
      %v2609 = vld [vmem:[%s2532 + $0x80] sm:$0x1]
      %v2610 = vsel %vm2003, %v2398, %v2609
      %2611 = vst [vmem:[%s2532 + $0x80] sm:$0x1] %v2610
      %v2612 = vld [vmem:[%s2532 + $0x84] sm:$0xf]
      %v2613 = vsel %vm2534, %v2405, %v2612
      %2614 = vst [vmem:[%s2532 + $0x84] sm:$0xf] %v2613
      %2615 = vst [vmem:[%s2532 + $0x88] sm:$0xf] %v2414
      %v2616 = vld [vmem:[%s2532 + $0x8c] sm:$0x1]
      %v2617 = vsel %vm2003, %v2415, %v2616
      %2618 = vst [vmem:[%s2532 + $0x8c] sm:$0x1] %v2617
      %v2619 = vld [vmem:[%s2532 + $0x90] sm:$0xf]
      %v2620 = vsel %vm2534, %v2422, %v2619
      %2621 = vst [vmem:[%s2532 + $0x90] sm:$0xf] %v2620
      %2622 = vst [vmem:[%s2532 + $0x94] sm:$0xf] %v2431
      %v2623 = vld [vmem:[%s2532 + $0x98] sm:$0x1]
      %v2624 = vsel %vm2003, %v2432, %v2623
      %2625 = vst [vmem:[%s2532 + $0x98] sm:$0x1] %v2624
      %v2626 = vld [vmem:[%s2532 + $0x9c] sm:$0xf]
      %v2627 = vsel %vm2534, %v2439, %v2626
      %2628 = vst [vmem:[%s2532 + $0x9c] sm:$0xf] %v2627
      %2629 = vst [vmem:[%s2532 + $0xa0] sm:$0xf] %v2448
      %v2630 = vld [vmem:[%s2532 + $0xa4] sm:$0x1]
      %v2631 = vsel %vm2003, %v2449, %v2630
      %2632 = vst [vmem:[%s2532 + $0xa4] sm:$0x1] %v2631
      %v2633 = vld [vmem:[%s2532 + $0xa8] sm:$0xf]
      %v2634 = vsel %vm2534, %v2456, %v2633
      %2635 = vst [vmem:[%s2532 + $0xa8] sm:$0xf] %v2634
      %2636 = vst [vmem:[%s2532 + $0xac] sm:$0xf] %v2465
      %v2637 = vld [vmem:[%s2532 + $0xb0] sm:$0x1]
      %v2638 = vsel %vm2003, %v2466, %v2637
      %2639 = vst [vmem:[%s2532 + $0xb0] sm:$0x1] %v2638
      %v2640 = vld [vmem:[%s2532 + $0xb4] sm:$0xf]
      %v2641 = vsel %vm2534, %v2473, %v2640
      %2642 = vst [vmem:[%s2532 + $0xb4] sm:$0xf] %v2641
      %2643 = vst [vmem:[%s2532 + $0xb8] sm:$0xf] %v2482
      %v2644 = vld [vmem:[%s2532 + $0xbc] sm:$0x1]
      %v2645 = vsel %vm2003, %v2483, %v2644
      %2646 = vst [vmem:[%s2532 + $0xbc] sm:$0x1] %v2645
      %v2647 = vld [vmem:[#allocation2] sm:$0xf]
      %v2648 = vld [vmem:[#allocation2 + $0x4] sm:$0xf]
      %v2649 = vld [vmem:[#allocation2 + $0x8] sm:$0x1]
      %v2650 = vld [vmem:[#allocation2 + $0xc] sm:$0xf]
      %v2651 = vld [vmem:[#allocation2 + $0x10] sm:$0xf]
      %v2652 = vld [vmem:[#allocation2 + $0x14] sm:$0x1]
      %v2653 = vld [vmem:[#allocation2 + $0x18] sm:$0xf]
      %v2654 = vld [vmem:[#allocation2 + $0x1c] sm:$0xf]
      %v2655 = vld [vmem:[#allocation2 + $0x20] sm:$0x1]
      %v2656 = vld [vmem:[#allocation2 + $0x24] sm:$0xf]
      %v2657 = vld [vmem:[#allocation2 + $0x28] sm:$0xf]
      %v2658 = vld [vmem:[#allocation2 + $0x2c] sm:$0x1]
      %v2659 = vld [vmem:[#allocation2 + $0x30] sm:$0xf]
      %v2660 = vld [vmem:[#allocation2 + $0x34] sm:$0xf]
      %v2661 = vld [vmem:[#allocation2 + $0x38] sm:$0x1]
      %v2662 = vld [vmem:[#allocation2 + $0x3c] sm:$0xf]
      %v2663 = vld [vmem:[#allocation2 + $0x40] sm:$0xf]
      %v2664 = vld [vmem:[#allocation2 + $0x44] sm:$0x1]
      %v2665 = vld [vmem:[#allocation2 + $0x48] sm:$0xf]
      %v2666 = vld [vmem:[#allocation2 + $0x4c] sm:$0xf]
      %v2667 = vld [vmem:[#allocation2 + $0x50] sm:$0x1]
      %v2668 = vld [vmem:[#allocation2 + $0x54] sm:$0xf]
      %v2669 = vld [vmem:[#allocation2 + $0x58] sm:$0xf]
      %v2670 = vld [vmem:[#allocation2 + $0x5c] sm:$0x1]
      %v2671 = vld [vmem:[#allocation2 + $0x60] sm:$0xf]
      %v2672 = vld [vmem:[#allocation2 + $0x64] sm:$0xf]
      %v2673 = vld [vmem:[#allocation2 + $0x68] sm:$0x1]
      %v2674 = vld [vmem:[#allocation2 + $0x6c] sm:$0xf]
      %v2675 = vld [vmem:[#allocation2 + $0x70] sm:$0xf]
      %v2676 = vld [vmem:[#allocation2 + $0x74] sm:$0x1]
      %v2677 = vld [vmem:[#allocation2 + $0x78] sm:$0xf]
      %v2678 = vld [vmem:[#allocation2 + $0x7c] sm:$0xf]
      %v2679 = vld [vmem:[#allocation2 + $0x80] sm:$0x1]
      %v2680 = vld [vmem:[#allocation2 + $0x84] sm:$0xf]
      %v2681 = vld [vmem:[#allocation2 + $0x88] sm:$0xf]
      %v2682 = vld [vmem:[#allocation2 + $0x8c] sm:$0x1]
      %v2683 = vld [vmem:[#allocation2 + $0x90] sm:$0xf]
      %v2684 = vld [vmem:[#allocation2 + $0x94] sm:$0xf]
      %v2685 = vld [vmem:[#allocation2 + $0x98] sm:$0x1]
      %v2686 = vld [vmem:[#allocation2 + $0x9c] sm:$0xf]
      %v2687 = vld [vmem:[#allocation2 + $0xa0] sm:$0xf]
      %v2688 = vld [vmem:[#allocation2 + $0xa4] sm:$0x1]
      %v2689 = vld [vmem:[#allocation2 + $0xa8] sm:$0xf]
      %v2690 = vld [vmem:[#allocation2 + $0xac] sm:$0xf]
      %v2691 = vld [vmem:[#allocation2 + $0xb0] sm:$0x1]
      %v2692 = vld [vmem:[#allocation2 + $0xb4] sm:$0xf]
      %v2693 = vld [vmem:[#allocation2 + $0xb8] sm:$0xf]
      %v2694 = vld [vmem:[#allocation2 + $0xbc] sm:$0x1]
      %v2695 = vld [vmem:[#allocation2 + $0xc0] sm:$0xf]
      %v2696 = vld [vmem:[#allocation2 + $0xc4] sm:$0xf]
      %v2697 = vld [vmem:[#allocation2 + $0xc8] sm:$0x1]
      %v2698 = vld [vmem:[#allocation2 + $0xcc] sm:$0xf]
      %v2699 = vld [vmem:[#allocation2 + $0xd0] sm:$0xf]
      %v2700 = vld [vmem:[#allocation2 + $0xd4] sm:$0x1]
      %v2702 = vshrl.u32 %v2647, 16
      %v2704 = vrot.slane %v2702, 4
      %v2705 = vshll.u32 %v2647, 16
      %v2707 = vrot.slane %v2705, 5
      %v2708 = vor.u32 %v2704, %v2707
      %v2709 = vrot.slane %v2708, 4
      %v2711 = vshll.u32 %v2648, 16
      %v2713 = vrot.slane %v2711, 5
      %v2714 = vsel %vm336, %v2709, %v2713
      %v2715 = vshrl.u32 %v2648, 16
      %v2717 = vrot.slane %v2715, 4
      %v2718 = vor.u32 %v2717, %v2713
      %v2719 = vrot.slane %v2718, 4
      %v2721 = vshll.u32 %v2649, 16
      %v2723 = vrot.slane %v2721, 5
      %v2724 = vsel %vm336, %v2719, %v2723
      %v2726 = vshrl.u32 %v2650, 16
      %v2728 = vrot.slane %v2726, 4
      %v2729 = vshll.u32 %v2650, 16
      %v2731 = vrot.slane %v2729, 5
      %v2732 = vor.u32 %v2728, %v2731
      %v2733 = vrot.slane %v2732, 4
      %v2735 = vshll.u32 %v2651, 16
      %v2737 = vrot.slane %v2735, 5
      %v2738 = vsel %vm336, %v2733, %v2737
      %v2739 = vshrl.u32 %v2651, 16
      %v2741 = vrot.slane %v2739, 4
      %v2742 = vor.u32 %v2741, %v2737
      %v2743 = vrot.slane %v2742, 4
      %v2745 = vshll.u32 %v2652, 16
      %v2747 = vrot.slane %v2745, 5
      %v2748 = vsel %vm336, %v2743, %v2747
      %v2750 = vshrl.u32 %v2653, 16
      %v2752 = vrot.slane %v2750, 4
      %v2753 = vshll.u32 %v2653, 16
      %v2755 = vrot.slane %v2753, 5
      %v2756 = vor.u32 %v2752, %v2755
      %v2757 = vrot.slane %v2756, 4
      %v2759 = vshll.u32 %v2654, 16
      %v2761 = vrot.slane %v2759, 5
      %v2762 = vsel %vm336, %v2757, %v2761
      %v2763 = vshrl.u32 %v2654, 16
      %v2765 = vrot.slane %v2763, 4
      %v2766 = vor.u32 %v2765, %v2761
      %v2767 = vrot.slane %v2766, 4
      %v2769 = vshll.u32 %v2655, 16
      %v2771 = vrot.slane %v2769, 5
      %v2772 = vsel %vm336, %v2767, %v2771
      %v2774 = vshrl.u32 %v2656, 16
      %v2776 = vrot.slane %v2774, 4
      %v2777 = vshll.u32 %v2656, 16
      %v2779 = vrot.slane %v2777, 5
      %v2780 = vor.u32 %v2776, %v2779
      %v2781 = vrot.slane %v2780, 4
      %v2783 = vshll.u32 %v2657, 16
      %v2785 = vrot.slane %v2783, 5
      %v2786 = vsel %vm336, %v2781, %v2785
      %v2787 = vshrl.u32 %v2657, 16
      %v2789 = vrot.slane %v2787, 4
      %v2790 = vor.u32 %v2789, %v2785
      %v2791 = vrot.slane %v2790, 4
      %v2793 = vshll.u32 %v2658, 16
      %v2795 = vrot.slane %v2793, 5
      %v2796 = vsel %vm336, %v2791, %v2795
      %v2798 = vshrl.u32 %v2659, 16
      %v2800 = vrot.slane %v2798, 4
      %v2801 = vshll.u32 %v2659, 16
      %v2803 = vrot.slane %v2801, 5
      %v2804 = vor.u32 %v2800, %v2803
      %v2805 = vrot.slane %v2804, 4
      %v2807 = vshll.u32 %v2660, 16
      %v2809 = vrot.slane %v2807, 5
      %v2810 = vsel %vm336, %v2805, %v2809
      %v2811 = vshrl.u32 %v2660, 16
      %v2813 = vrot.slane %v2811, 4
      %v2814 = vor.u32 %v2813, %v2809
      %v2815 = vrot.slane %v2814, 4
      %v2817 = vshll.u32 %v2661, 16
      %v2819 = vrot.slane %v2817, 5
      %v2820 = vsel %vm336, %v2815, %v2819
      %v2822 = vshrl.u32 %v2662, 16
      %v2824 = vrot.slane %v2822, 4
      %v2825 = vshll.u32 %v2662, 16
      %v2827 = vrot.slane %v2825, 5
      %v2828 = vor.u32 %v2824, %v2827
      %v2829 = vrot.slane %v2828, 4
      %v2831 = vshll.u32 %v2663, 16
      %v2833 = vrot.slane %v2831, 5
      %v2834 = vsel %vm336, %v2829, %v2833
      %v2835 = vshrl.u32 %v2663, 16
      %v2837 = vrot.slane %v2835, 4
      %v2838 = vor.u32 %v2837, %v2833
      %v2839 = vrot.slane %v2838, 4
      %v2841 = vshll.u32 %v2664, 16
      %v2843 = vrot.slane %v2841, 5
      %v2844 = vsel %vm336, %v2839, %v2843
      %v2846 = vshrl.u32 %v2665, 16
      %v2848 = vrot.slane %v2846, 4
      %v2849 = vshll.u32 %v2665, 16
      %v2851 = vrot.slane %v2849, 5
      %v2852 = vor.u32 %v2848, %v2851
      %v2853 = vrot.slane %v2852, 4
      %v2855 = vshll.u32 %v2666, 16
      %v2857 = vrot.slane %v2855, 5
      %v2858 = vsel %vm336, %v2853, %v2857
      %v2859 = vshrl.u32 %v2666, 16
      %v2861 = vrot.slane %v2859, 4
      %v2862 = vor.u32 %v2861, %v2857
      %v2863 = vrot.slane %v2862, 4
      %v2865 = vshll.u32 %v2667, 16
      %v2867 = vrot.slane %v2865, 5
      %v2868 = vsel %vm336, %v2863, %v2867
      %v2870 = vshrl.u32 %v2668, 16
      %v2872 = vrot.slane %v2870, 4
      %v2873 = vshll.u32 %v2668, 16
      %v2875 = vrot.slane %v2873, 5
      %v2876 = vor.u32 %v2872, %v2875
      %v2877 = vrot.slane %v2876, 4
      %v2879 = vshll.u32 %v2669, 16
      %v2881 = vrot.slane %v2879, 5
      %v2882 = vsel %vm336, %v2877, %v2881
      %v2883 = vshrl.u32 %v2669, 16
      %v2885 = vrot.slane %v2883, 4
      %v2886 = vor.u32 %v2885, %v2881
      %v2887 = vrot.slane %v2886, 4
      %v2889 = vshll.u32 %v2670, 16
      %v2891 = vrot.slane %v2889, 5
      %v2892 = vsel %vm336, %v2887, %v2891
      %v2894 = vshrl.u32 %v2671, 16
      %v2896 = vrot.slane %v2894, 4
      %v2897 = vshll.u32 %v2671, 16
      %v2899 = vrot.slane %v2897, 5
      %v2900 = vor.u32 %v2896, %v2899
      %v2901 = vrot.slane %v2900, 4
      %v2903 = vshll.u32 %v2672, 16
      %v2905 = vrot.slane %v2903, 5
      %v2906 = vsel %vm336, %v2901, %v2905
      %v2907 = vshrl.u32 %v2672, 16
      %v2909 = vrot.slane %v2907, 4
      %v2910 = vor.u32 %v2909, %v2905
      %v2911 = vrot.slane %v2910, 4
      %v2913 = vshll.u32 %v2673, 16
      %v2915 = vrot.slane %v2913, 5
      %v2916 = vsel %vm336, %v2911, %v2915
      %v2918 = vshrl.u32 %v2674, 16
      %v2920 = vrot.slane %v2918, 4
      %v2921 = vshll.u32 %v2674, 16
      %v2923 = vrot.slane %v2921, 5
      %v2924 = vor.u32 %v2920, %v2923
      %v2925 = vrot.slane %v2924, 4
      %v2927 = vshll.u32 %v2675, 16
      %v2929 = vrot.slane %v2927, 5
      %v2930 = vsel %vm336, %v2925, %v2929
      %v2931 = vshrl.u32 %v2675, 16
      %v2933 = vrot.slane %v2931, 4
      %v2934 = vor.u32 %v2933, %v2929
      %v2935 = vrot.slane %v2934, 4
      %v2937 = vshll.u32 %v2676, 16
      %v2939 = vrot.slane %v2937, 5
      %v2940 = vsel %vm336, %v2935, %v2939
      %v2942 = vshrl.u32 %v2677, 16
      %v2944 = vrot.slane %v2942, 4
      %v2945 = vshll.u32 %v2677, 16
      %v2947 = vrot.slane %v2945, 5
      %v2948 = vor.u32 %v2944, %v2947
      %v2949 = vrot.slane %v2948, 4
      %v2951 = vshll.u32 %v2678, 16
      %v2953 = vrot.slane %v2951, 5
      %v2954 = vsel %vm336, %v2949, %v2953
      %v2955 = vshrl.u32 %v2678, 16
      %v2957 = vrot.slane %v2955, 4
      %v2958 = vor.u32 %v2957, %v2953
      %v2959 = vrot.slane %v2958, 4
      %v2961 = vshll.u32 %v2679, 16
      %v2963 = vrot.slane %v2961, 5
      %v2964 = vsel %vm336, %v2959, %v2963
      %v2966 = vshrl.u32 %v2680, 16
      %v2968 = vrot.slane %v2966, 4
      %v2969 = vshll.u32 %v2680, 16
      %v2971 = vrot.slane %v2969, 5
      %v2972 = vor.u32 %v2968, %v2971
      %v2973 = vrot.slane %v2972, 4
      %v2975 = vshll.u32 %v2681, 16
      %v2977 = vrot.slane %v2975, 5
      %v2978 = vsel %vm336, %v2973, %v2977
      %v2979 = vshrl.u32 %v2681, 16
      %v2981 = vrot.slane %v2979, 4
      %v2982 = vor.u32 %v2981, %v2977
      %v2983 = vrot.slane %v2982, 4
      %v2985 = vshll.u32 %v2682, 16
      %v2987 = vrot.slane %v2985, 5
      %v2988 = vsel %vm336, %v2983, %v2987
      %v2990 = vshrl.u32 %v2683, 16
      %v2992 = vrot.slane %v2990, 4
      %v2993 = vshll.u32 %v2683, 16
      %v2995 = vrot.slane %v2993, 5
      %v2996 = vor.u32 %v2992, %v2995
      %v2997 = vrot.slane %v2996, 4
      %v2999 = vshll.u32 %v2684, 16
      %v3001 = vrot.slane %v2999, 5
      %v3002 = vsel %vm336, %v2997, %v3001
      %v3003 = vshrl.u32 %v2684, 16
      %v3005 = vrot.slane %v3003, 4
      %v3006 = vor.u32 %v3005, %v3001
      %v3007 = vrot.slane %v3006, 4
      %v3009 = vshll.u32 %v2685, 16
      %v3011 = vrot.slane %v3009, 5
      %v3012 = vsel %vm336, %v3007, %v3011
      %v3014 = vshrl.u32 %v2686, 16
      %v3016 = vrot.slane %v3014, 4
      %v3017 = vshll.u32 %v2686, 16
      %v3019 = vrot.slane %v3017, 5
      %v3020 = vor.u32 %v3016, %v3019
      %v3021 = vrot.slane %v3020, 4
      %v3023 = vshll.u32 %v2687, 16
      %v3025 = vrot.slane %v3023, 5
      %v3026 = vsel %vm336, %v3021, %v3025
      %v3027 = vshrl.u32 %v2687, 16
      %v3029 = vrot.slane %v3027, 4
      %v3030 = vor.u32 %v3029, %v3025
      %v3031 = vrot.slane %v3030, 4
      %v3033 = vshll.u32 %v2688, 16
      %v3035 = vrot.slane %v3033, 5
      %v3036 = vsel %vm336, %v3031, %v3035
      %v3038 = vshrl.u32 %v2689, 16
      %v3040 = vrot.slane %v3038, 4
      %v3041 = vshll.u32 %v2689, 16
      %v3043 = vrot.slane %v3041, 5
      %v3044 = vor.u32 %v3040, %v3043
      %v3045 = vrot.slane %v3044, 4
      %v3047 = vshll.u32 %v2690, 16
      %v3049 = vrot.slane %v3047, 5
      %v3050 = vsel %vm336, %v3045, %v3049
      %v3051 = vshrl.u32 %v2690, 16
      %v3053 = vrot.slane %v3051, 4
      %v3054 = vor.u32 %v3053, %v3049
      %v3055 = vrot.slane %v3054, 4
      %v3057 = vshll.u32 %v2691, 16
      %v3059 = vrot.slane %v3057, 5
      %v3060 = vsel %vm336, %v3055, %v3059
      %v3062 = vshrl.u32 %v2692, 16
      %v3064 = vrot.slane %v3062, 4
      %v3065 = vshll.u32 %v2692, 16
      %v3067 = vrot.slane %v3065, 5
      %v3068 = vor.u32 %v3064, %v3067
      %v3069 = vrot.slane %v3068, 4
      %v3071 = vshll.u32 %v2693, 16
      %v3073 = vrot.slane %v3071, 5
      %v3074 = vsel %vm336, %v3069, %v3073
      %v3075 = vshrl.u32 %v2693, 16
      %v3077 = vrot.slane %v3075, 4
      %v3078 = vor.u32 %v3077, %v3073
      %v3079 = vrot.slane %v3078, 4
      %v3081 = vshll.u32 %v2694, 16
      %v3083 = vrot.slane %v3081, 5
      %v3084 = vsel %vm336, %v3079, %v3083
      %v3133 = vrot.slane %v2647, 5
      %v3134 = vrot.slane %v3133, 4
      %v3135 = vrot.slane %v2648, 5
      %v3136 = vsel %vm771, %v3134, %v3135
      %v3137 = vrot.slane %v3135, 4
      %v3138 = vrot.slane %v2649, 5
      %v3139 = vsel %vm771, %v3137, %v3138
      %v3140 = vrot.slane %v2650, 5
      %v3141 = vrot.slane %v3140, 4
      %v3142 = vrot.slane %v2651, 5
      %v3143 = vsel %vm771, %v3141, %v3142
      %v3144 = vrot.slane %v3142, 4
      %v3145 = vrot.slane %v2652, 5
      %v3146 = vsel %vm771, %v3144, %v3145
      %v3147 = vrot.slane %v2653, 5
      %v3148 = vrot.slane %v3147, 4
      %v3149 = vrot.slane %v2654, 5
      %v3150 = vsel %vm771, %v3148, %v3149
      %v3151 = vrot.slane %v3149, 4
      %v3152 = vrot.slane %v2655, 5
      %v3153 = vsel %vm771, %v3151, %v3152
      %v3154 = vrot.slane %v2656, 5
      %v3155 = vrot.slane %v3154, 4
      %v3156 = vrot.slane %v2657, 5
      %v3157 = vsel %vm771, %v3155, %v3156
      %v3158 = vrot.slane %v3156, 4
      %v3159 = vrot.slane %v2658, 5
      %v3160 = vsel %vm771, %v3158, %v3159
      %v3161 = vrot.slane %v2659, 5
      %v3162 = vrot.slane %v3161, 4
      %v3163 = vrot.slane %v2660, 5
      %v3164 = vsel %vm771, %v3162, %v3163
      %v3165 = vrot.slane %v3163, 4
      %v3166 = vrot.slane %v2661, 5
      %v3167 = vsel %vm771, %v3165, %v3166
      %v3168 = vrot.slane %v2662, 5
      %v3169 = vrot.slane %v3168, 4
      %v3170 = vrot.slane %v2663, 5
      %v3171 = vsel %vm771, %v3169, %v3170
      %v3172 = vrot.slane %v3170, 4
      %v3173 = vrot.slane %v2664, 5
      %v3174 = vsel %vm771, %v3172, %v3173
      %v3175 = vrot.slane %v2665, 5
      %v3176 = vrot.slane %v3175, 4
      %v3177 = vrot.slane %v2666, 5
      %v3178 = vsel %vm771, %v3176, %v3177
      %v3179 = vrot.slane %v3177, 4
      %v3180 = vrot.slane %v2667, 5
      %v3181 = vsel %vm771, %v3179, %v3180
      %v3182 = vrot.slane %v2668, 5
      %v3183 = vrot.slane %v3182, 4
      %v3184 = vrot.slane %v2669, 5
      %v3185 = vsel %vm771, %v3183, %v3184
      %v3186 = vrot.slane %v3184, 4
      %v3187 = vrot.slane %v2670, 5
      %v3188 = vsel %vm771, %v3186, %v3187
      %v3189 = vrot.slane %v2671, 5
      %v3190 = vrot.slane %v3189, 4
      %v3191 = vrot.slane %v2672, 5
      %v3192 = vsel %vm771, %v3190, %v3191
      %v3193 = vrot.slane %v3191, 4
      %v3194 = vrot.slane %v2673, 5
      %v3195 = vsel %vm771, %v3193, %v3194
      %v3196 = vrot.slane %v2674, 5
      %v3197 = vrot.slane %v3196, 4
      %v3198 = vrot.slane %v2675, 5
      %v3199 = vsel %vm771, %v3197, %v3198
      %v3200 = vrot.slane %v3198, 4
      %v3201 = vrot.slane %v2676, 5
      %v3202 = vsel %vm771, %v3200, %v3201
      %v3203 = vrot.slane %v2677, 5
      %v3204 = vrot.slane %v3203, 4
      %v3205 = vrot.slane %v2678, 5
      %v3206 = vsel %vm771, %v3204, %v3205
      %v3207 = vrot.slane %v3205, 4
      %v3208 = vrot.slane %v2679, 5
      %v3209 = vsel %vm771, %v3207, %v3208
      %v3210 = vrot.slane %v2680, 5
      %v3211 = vrot.slane %v3210, 4
      %v3212 = vrot.slane %v2681, 5
      %v3213 = vsel %vm771, %v3211, %v3212
      %v3214 = vrot.slane %v3212, 4
      %v3215 = vrot.slane %v2682, 5
      %v3216 = vsel %vm771, %v3214, %v3215
      %v3217 = vrot.slane %v2683, 5
      %v3218 = vrot.slane %v3217, 4
      %v3219 = vrot.slane %v2684, 5
      %v3220 = vsel %vm771, %v3218, %v3219
      %v3221 = vrot.slane %v3219, 4
      %v3222 = vrot.slane %v2685, 5
      %v3223 = vsel %vm771, %v3221, %v3222
      %v3224 = vrot.slane %v2686, 5
      %v3225 = vrot.slane %v3224, 4
      %v3226 = vrot.slane %v2687, 5
      %v3227 = vsel %vm771, %v3225, %v3226
      %v3228 = vrot.slane %v3226, 4
      %v3229 = vrot.slane %v2688, 5
      %v3230 = vsel %vm771, %v3228, %v3229
      %v3231 = vrot.slane %v2689, 5
      %v3232 = vrot.slane %v3231, 4
      %v3233 = vrot.slane %v2690, 5
      %v3234 = vsel %vm771, %v3232, %v3233
      %v3235 = vrot.slane %v3233, 4
      %v3236 = vrot.slane %v2691, 5
      %v3237 = vsel %vm771, %v3235, %v3236
      %v3238 = vrot.slane %v2692, 5
      %v3239 = vrot.slane %v3238, 4
      %v3240 = vrot.slane %v2693, 5
      %v3241 = vsel %vm771, %v3239, %v3240
      %v3242 = vrot.slane %v3240, 4
      %v3243 = vrot.slane %v2694, 5
      %v3244 = vsel %vm771, %v3242, %v3243
      %v3246 = vshrl.u32 %v2695, 16
      %v3248 = vrot.slane %v3246, 4
      %v3249 = vshll.u32 %v2695, 16
      %v3251 = vrot.slane %v3249, 5
      %v3252 = vor.u32 %v3248, %v3251
      %v3253 = vrot.slane %v3252, 4
      %v3255 = vshll.u32 %v2696, 16
      %v3257 = vrot.slane %v3255, 5
      %v3258 = vsel %vm336, %v3253, %v3257
      %v3259 = vshrl.u32 %v2696, 16
      %v3261 = vrot.slane %v3259, 4
      %v3262 = vor.u32 %v3261, %v3257
      %v3263 = vrot.slane %v3262, 4
      %v3265 = vshll.u32 %v2697, 16
      %v3267 = vrot.slane %v3265, 5
      %v3268 = vsel %vm336, %v3263, %v3267
      %v3272 = vrot.slane %v2695, 5
      %v3273 = vrot.slane %v3272, 4
      %v3274 = vrot.slane %v2696, 5
      %v3275 = vsel %vm771, %v3273, %v3274
      %v3276 = vrot.slane %v3274, 4
      %v3277 = vrot.slane %v2697, 5
      %v3278 = vsel %vm771, %v3276, %v3277
      %v3280 = vshrl.u32 %v2698, 16
      %v3282 = vrot.slane %v3280, 4
      %v3283 = vshll.u32 %v2698, 16
      %v3285 = vrot.slane %v3283, 5
      %v3286 = vor.u32 %v3282, %v3285
      %v3287 = vrot.slane %v3286, 4
      %v3289 = vshll.u32 %v2699, 16
      %v3291 = vrot.slane %v3289, 5
      %v3292 = vsel %vm336, %v3287, %v3291
      %v3293 = vshrl.u32 %v2699, 16
      %v3295 = vrot.slane %v3293, 4
      %v3296 = vor.u32 %v3295, %v3291
      %v3297 = vrot.slane %v3296, 4
      %v3299 = vshll.u32 %v2700, 16
      %v3301 = vrot.slane %v3299, 5
      %v3302 = vsel %vm336, %v3297, %v3301
      %v3306 = vrot.slane %v2698, 5
      %v3307 = vrot.slane %v3306, 4
      %v3308 = vrot.slane %v2699, 5
      %v3309 = vsel %vm771, %v3307, %v3308
      %v3310 = vrot.slane %v3308, 4
      %v3311 = vrot.slane %v2700, 5
      %v3312 = vsel %vm771, %v3310, %v3311
      %v3313 = vunpack.c.l.b16 %v2647
      %v3314 = vunpack.c.l.b16 %v2648
      %v3315 = vunpack.c.l.b16 %v2650
      %v3316 = vunpack.c.l.b16 %v2651
      %v3317 = vunpack.c.l.b16 %v2653
      %v3318 = vunpack.c.l.b16 %v2654
      %v3319 = vunpack.c.l.b16 %v2656
      %v3320 = vunpack.c.l.b16 %v2657
      %v3321 = vunpack.c.l.b16 %v2659
      %v3322 = vunpack.c.l.b16 %v2660
      %v3323 = vunpack.c.l.b16 %v2662
      %v3324 = vunpack.c.l.b16 %v2663
      %v3325 = vunpack.c.l.b16 %v2665
      %v3326 = vunpack.c.l.b16 %v2666
      %v3327 = vunpack.c.l.b16 %v2668
      %v3328 = vunpack.c.l.b16 %v2669
      %v3329 = vunpack.c.l.b16 %v2671
      %v3330 = vunpack.c.l.b16 %v2672
      %v3331 = vunpack.c.l.b16 %v2674
      %v3332 = vunpack.c.l.b16 %v2675
      %v3333 = vunpack.c.l.b16 %v2677
      %v3334 = vunpack.c.l.b16 %v2678
      %v3335 = vunpack.c.l.b16 %v2680
      %v3336 = vunpack.c.l.b16 %v2681
      %v3337 = vunpack.c.l.b16 %v2683
      %v3338 = vunpack.c.l.b16 %v2684
      %v3339 = vunpack.c.l.b16 %v2686
      %v3340 = vunpack.c.l.b16 %v2687
      %v3341 = vunpack.c.l.b16 %v2689
      %v3342 = vunpack.c.l.b16 %v2690
      %v3343 = vunpack.c.l.b16 %v2692
      %v3344 = vunpack.c.l.b16 %v2693
      %v3345 = vpack.c.b16 %v3314, %v3313
      %v3346 = vpack.c.b16 %v3316, %v3315
      %v3347 = vpack.c.b16 %v3318, %v3317
      %v3348 = vpack.c.b16 %v3320, %v3319
      %v3349 = vpack.c.b16 %v3322, %v3321
      %v3350 = vpack.c.b16 %v3324, %v3323
      %v3351 = vpack.c.b16 %v3326, %v3325
      %v3352 = vpack.c.b16 %v3328, %v3327
      %v3353 = vpack.c.b16 %v3330, %v3329
      %v3354 = vpack.c.b16 %v3332, %v3331
      %v3355 = vpack.c.b16 %v3334, %v3333
      %v3356 = vpack.c.b16 %v3336, %v3335
      %v3357 = vpack.c.b16 %v3338, %v3337
      %v3358 = vpack.c.b16 %v3340, %v3339
      %v3359 = vpack.c.b16 %v3342, %v3341
      %v3360 = vpack.c.b16 %v3344, %v3343
      %v3377 = vunpack.c.l.b16 %v2714
      %v3378 = vunpack.c.l.b16 %v2724
      %v3379 = vunpack.c.l.b16 %v2738
      %v3380 = vunpack.c.l.b16 %v2748
      %v3381 = vunpack.c.l.b16 %v2762
      %v3382 = vunpack.c.l.b16 %v2772
      %v3383 = vunpack.c.l.b16 %v2786
      %v3384 = vunpack.c.l.b16 %v2796
      %v3385 = vunpack.c.l.b16 %v2810
      %v3386 = vunpack.c.l.b16 %v2820
      %v3387 = vunpack.c.l.b16 %v2834
      %v3388 = vunpack.c.l.b16 %v2844
      %v3389 = vunpack.c.l.b16 %v2858
      %v3390 = vunpack.c.l.b16 %v2868
      %v3391 = vunpack.c.l.b16 %v2882
      %v3392 = vunpack.c.l.b16 %v2892
      %v3393 = vunpack.c.l.b16 %v2906
      %v3394 = vunpack.c.l.b16 %v2916
      %v3395 = vunpack.c.l.b16 %v2930
      %v3396 = vunpack.c.l.b16 %v2940
      %v3397 = vunpack.c.l.b16 %v2954
      %v3398 = vunpack.c.l.b16 %v2964
      %v3399 = vunpack.c.l.b16 %v2978
      %v3400 = vunpack.c.l.b16 %v2988
      %v3401 = vunpack.c.l.b16 %v3002
      %v3402 = vunpack.c.l.b16 %v3012
      %v3403 = vunpack.c.l.b16 %v3026
      %v3404 = vunpack.c.l.b16 %v3036
      %v3405 = vunpack.c.l.b16 %v3050
      %v3406 = vunpack.c.l.b16 %v3060
      %v3407 = vunpack.c.l.b16 %v3074
      %v3408 = vunpack.c.l.b16 %v3084
      %v3409 = vpack.c.b16 %v3378, %v3377
      %v3410 = vpack.c.b16 %v3380, %v3379
      %v3411 = vpack.c.b16 %v3382, %v3381
      %v3412 = vpack.c.b16 %v3384, %v3383
      %v3413 = vpack.c.b16 %v3386, %v3385
      %v3414 = vpack.c.b16 %v3388, %v3387
      %v3415 = vpack.c.b16 %v3390, %v3389
      %v3416 = vpack.c.b16 %v3392, %v3391
      %v3417 = vpack.c.b16 %v3394, %v3393
      %v3418 = vpack.c.b16 %v3396, %v3395
      %v3419 = vpack.c.b16 %v3398, %v3397
      %v3420 = vpack.c.b16 %v3400, %v3399
      %v3421 = vpack.c.b16 %v3402, %v3401
      %v3422 = vpack.c.b16 %v3404, %v3403
      %v3423 = vpack.c.b16 %v3406, %v3405
      %v3424 = vpack.c.b16 %v3408, %v3407
      %v3441 = vunpack.c.l.b16 %v3136
      %v3442 = vunpack.c.l.b16 %v3139
      %v3443 = vunpack.c.l.b16 %v3143
      %v3444 = vunpack.c.l.b16 %v3146
      %v3445 = vunpack.c.l.b16 %v3150
      %v3446 = vunpack.c.l.b16 %v3153
      %v3447 = vunpack.c.l.b16 %v3157
      %v3448 = vunpack.c.l.b16 %v3160
      %v3449 = vunpack.c.l.b16 %v3164
      %v3450 = vunpack.c.l.b16 %v3167
      %v3451 = vunpack.c.l.b16 %v3171
      %v3452 = vunpack.c.l.b16 %v3174
      %v3453 = vunpack.c.l.b16 %v3178
      %v3454 = vunpack.c.l.b16 %v3181
      %v3455 = vunpack.c.l.b16 %v3185
      %v3456 = vunpack.c.l.b16 %v3188
      %v3457 = vunpack.c.l.b16 %v3192
      %v3458 = vunpack.c.l.b16 %v3195
      %v3459 = vunpack.c.l.b16 %v3199
      %v3460 = vunpack.c.l.b16 %v3202
      %v3461 = vunpack.c.l.b16 %v3206
      %v3462 = vunpack.c.l.b16 %v3209
      %v3463 = vunpack.c.l.b16 %v3213
      %v3464 = vunpack.c.l.b16 %v3216
      %v3465 = vunpack.c.l.b16 %v3220
      %v3466 = vunpack.c.l.b16 %v3223
      %v3467 = vunpack.c.l.b16 %v3227
      %v3468 = vunpack.c.l.b16 %v3230
      %v3469 = vunpack.c.l.b16 %v3234
      %v3470 = vunpack.c.l.b16 %v3237
      %v3471 = vunpack.c.l.b16 %v3241
      %v3472 = vunpack.c.l.b16 %v3244
      %v3473 = vpack.c.b16 %v3442, %v3441
      %v3474 = vpack.c.b16 %v3444, %v3443
      %v3475 = vpack.c.b16 %v3446, %v3445
      %v3476 = vpack.c.b16 %v3448, %v3447
      %v3477 = vpack.c.b16 %v3450, %v3449
      %v3478 = vpack.c.b16 %v3452, %v3451
      %v3479 = vpack.c.b16 %v3454, %v3453
      %v3480 = vpack.c.b16 %v3456, %v3455
      %v3481 = vpack.c.b16 %v3458, %v3457
      %v3482 = vpack.c.b16 %v3460, %v3459
      %v3483 = vpack.c.b16 %v3462, %v3461
      %v3484 = vpack.c.b16 %v3464, %v3463
      %v3485 = vpack.c.b16 %v3466, %v3465
      %v3486 = vpack.c.b16 %v3468, %v3467
      %v3487 = vpack.c.b16 %v3470, %v3469
      %v3488 = vpack.c.b16 %v3472, %v3471
      %v3505 = vunpack.c.l.b16 %v2695
      %v3506 = vunpack.c.l.b16 %v2696
      %v3507 = vpack.c.b16 %v3506, %v3505
      %v3509 = vunpack.c.l.b16 %v3258
      %v3510 = vunpack.c.l.b16 %v3268
      %v3511 = vpack.c.b16 %v3510, %v3509
      %v3513 = vunpack.c.l.b16 %v3275
      %v3514 = vunpack.c.l.b16 %v3278
      %v3515 = vpack.c.b16 %v3514, %v3513
      %v3517 = vunpack.c.l.b16 %v2698
      %v3518 = vunpack.c.l.b16 %v2699
      %v3519 = vpack.c.b16 %v3518, %v3517
      %v3521 = vunpack.c.l.b16 %v3292
      %v3522 = vunpack.c.l.b16 %v3302
      %v3523 = vpack.c.b16 %v3522, %v3521
      %v3525 = vunpack.c.l.b16 %v3309
      %v3526 = vunpack.c.l.b16 %v3312
      %v3527 = vpack.c.b16 %v3526, %v3525
      %v3529 = vld [vmem:[%s4] sm:$0xf]
      %v3530 = vld [vmem:[%s4 + $0x4] sm:$0xf]
      %v3531 = vld [vmem:[%s4 + $0x8] sm:$0xf]
      %v3532 = vld [vmem:[%s4 + $0xc] sm:$0xf]
      %v3533 = vld [vmem:[%s4 + $0x10] sm:$0xf]
      %v3534 = vld [vmem:[%s4 + $0x14] sm:$0xf]
      %v3535 = vld [vmem:[%s4 + $0x18] sm:$0xf]
      %v3536 = vld [vmem:[%s4 + $0x1c] sm:$0xf]
      %v3537 = vld [vmem:[%s4 + $0x20] sm:$0xf]
      %v3538 = vld [vmem:[%s4 + $0x24] sm:$0xf]
      %v3539 = vld [vmem:[%s4 + $0x28] sm:$0xf]
      %v3540 = vld [vmem:[%s4 + $0x2c] sm:$0xf]
      %v3541 = vld [vmem:[%s4 + $0x30] sm:$0xf]
      %v3542 = vld [vmem:[%s4 + $0x34] sm:$0xf]
      %v3543 = vld [vmem:[%s4 + $0x38] sm:$0xf]
      %v3544 = vld [vmem:[%s4 + $0x3c] sm:$0xf]
      %v3545 = vld [vmem:[%s4 + $0x40] sm:$0xf]
      %v3546 = vld [vmem:[%s4 + $0x44] sm:$0xf]
      %v3547 = vld [vmem:[%s4 + $0x48] sm:$0xf]
      %v3548 = vld [vmem:[%s4 + $0x4c] sm:$0xf]
      %v3549 = vld [vmem:[%s4 + $0x50] sm:$0xf]
      %v3550 = vld [vmem:[%s4 + $0x54] sm:$0xf]
      %v3551 = vld [vmem:[%s4 + $0x58] sm:$0xf]
      %v3552 = vld [vmem:[%s4 + $0x5c] sm:$0xf]
      %v3553 = vld [vmem:[%s4 + $0x60] sm:$0xf]
      %v3554 = vld [vmem:[%s4 + $0x64] sm:$0xf]
      %v3555 = vld [vmem:[%s4 + $0x68] sm:$0xf]
      %v3556 = vld [vmem:[%s4 + $0x6c] sm:$0xf]
      %v3557 = vld [vmem:[%s4 + $0x70] sm:$0xf]
      %v3558 = vld [vmem:[%s4 + $0x74] sm:$0xf]
      %v3559 = vld [vmem:[%s4 + $0x78] sm:$0xf]
      %v3560 = vld [vmem:[%s4 + $0x7c] sm:$0xf]
      %v3561 = vld [vmem:[%s4 + $0x80] sm:$0xf]
      %v3562 = vld [vmem:[%s4 + $0x84] sm:$0xf]
      %v3563 = vld [vmem:[%s4 + $0x88] sm:$0xf]
      %v3564 = vld [vmem:[%s4 + $0x8c] sm:$0xf]
      %v3565 = vld [vmem:[%s4 + $0x90] sm:$0xf]
      %v3566 = vld [vmem:[%s4 + $0x94] sm:$0xf]
      %v3567 = vld [vmem:[%s4 + $0x98] sm:$0xf]
      %v3568 = vld [vmem:[%s4 + $0x9c] sm:$0xf]
      %v3569 = vld [vmem:[%s4 + $0xa0] sm:$0xf]
      %v3570 = vld [vmem:[%s4 + $0xa4] sm:$0xf]
      %v3571 = vld [vmem:[%s4 + $0xa8] sm:$0xf]
      %v3572 = vld [vmem:[%s4 + $0xac] sm:$0xf]
      %v3573 = vld [vmem:[%s4 + $0xb0] sm:$0xf]
      %v3574 = vld [vmem:[%s4 + $0xb4] sm:$0xf]
      %v3575 = vld [vmem:[%s4 + $0xb8] sm:$0xf]
      %v3576 = vld [vmem:[%s4 + $0xbc] sm:$0xf]
      %v3577 = vld [vmem:[%s4 + $0xc0] sm:$0xf]
      %v3578 = vld [vmem:[%s4 + $0xc4] sm:$0xf]
      %v3579 = vld [vmem:[%s4 + $0xc8] sm:$0xf]
      %v3580 = vld [vmem:[%s4 + $0xcc] sm:$0xf]
      %v3581 = vld [vmem:[%s4 + $0xd0] sm:$0xf]
      %v3582 = vld [vmem:[%s4 + $0xd4] sm:$0xf]
      %v3583 = vld [vmem:[%s4 + $0xd8] sm:$0xf]
      %v3584 = vld [vmem:[%s4 + $0xdc] sm:$0xf]
      %v3585 = vld [vmem:[%s4 + $0xe0] sm:$0xf]
      %v3586 = vld [vmem:[%s4 + $0xe4] sm:$0xf]
      %v3587 = vld [vmem:[%s4 + $0xe8] sm:$0xf]
      %v3588 = vld [vmem:[%s4 + $0xec] sm:$0xf]
      %v3589 = vld [vmem:[%s4 + $0xf0] sm:$0xf]
      %v3590 = vld [vmem:[%s4 + $0xf4] sm:$0xf]
      %v3591 = vld [vmem:[%s4 + $0xf8] sm:$0xf]
      %v3592 = vld [vmem:[%s4 + $0xfc] sm:$0xf]
      %v3593 = vld [vmem:[%s4 + $0x100] sm:$0xf]
      %v3594 = vld [vmem:[%s4 + $0x104] sm:$0xf]
      %v3595 = vld [vmem:[%s4 + $0x108] sm:$0xf]
      %v3596 = vld [vmem:[%s4 + $0x10c] sm:$0xf]
      %v3597 = vld [vmem:[%s4 + $0x110] sm:$0xf]
      %v3598 = vld [vmem:[%s4 + $0x114] sm:$0xf]
      %v3599 = vld [vmem:[%s4 + $0x118] sm:$0xf]
      %v3600 = vld [vmem:[%s4 + $0x11c] sm:$0xf]
      %v3601 = vld [vmem:[%s4 + $0x120] sm:$0xf]
      %v3602 = vld [vmem:[%s4 + $0x124] sm:$0xf]
      %v3603 = vld [vmem:[%s4 + $0x128] sm:$0xf]
      %v3604 = vld [vmem:[%s4 + $0x12c] sm:$0xf]
      %v3605 = vld [vmem:[%s4 + $0x130] sm:$0xf]
      %v3606 = vld [vmem:[%s4 + $0x134] sm:$0xf]
      %v3607 = vld [vmem:[%s4 + $0x138] sm:$0xf]
      %v3608 = vld [vmem:[%s4 + $0x13c] sm:$0xf]
      %v3609 = vld [vmem:[%s4 + $0x140] sm:$0xf]
      %v3610 = vld [vmem:[%s4 + $0x144] sm:$0xf]
      %v3611 = vld [vmem:[%s4 + $0x148] sm:$0xf]
      %v3612 = vld [vmem:[%s4 + $0x14c] sm:$0xf]
      %v3613 = vld [vmem:[%s4 + $0x150] sm:$0xf]
      %v3614 = vld [vmem:[%s4 + $0x154] sm:$0xf]
      %v3615 = vld [vmem:[%s4 + $0x158] sm:$0xf]
      %v3616 = vld [vmem:[%s4 + $0x15c] sm:$0xf]
      %v3617 = vld [vmem:[%s4 + $0x160] sm:$0xf]
      %v3618 = vld [vmem:[%s4 + $0x164] sm:$0xf]
      %v3619 = vld [vmem:[%s4 + $0x168] sm:$0xf]
      %v3620 = vld [vmem:[%s4 + $0x16c] sm:$0xf]
      %v3621 = vld [vmem:[%s4 + $0x170] sm:$0xf]
      %v3622 = vld [vmem:[%s4 + $0x174] sm:$0xf]
      %v3623 = vld [vmem:[%s4 + $0x178] sm:$0xf]
      %v3624 = vld [vmem:[%s4 + $0x17c] sm:$0xf]
      %v3625 = vld [vmem:[%s4 + $0x180] sm:$0xf]
      %v3626 = vld [vmem:[%s4 + $0x184] sm:$0xf]
      %v3627 = vld [vmem:[%s4 + $0x188] sm:$0xf]
      %v3628 = vld [vmem:[%s4 + $0x18c] sm:$0xf]
      %v3629 = vld [vmem:[%s4 + $0x190] sm:$0xf]
      %v3630 = vld [vmem:[%s4 + $0x194] sm:$0xf]
      %v3631 = vld [vmem:[%s4 + $0x198] sm:$0xf]
      %v3632 = vld [vmem:[%s4 + $0x19c] sm:$0xf]
      %v3633 = vld [vmem:[%s4 + $0x1a0] sm:$0xf]
      %v3634 = vld [vmem:[%s4 + $0x1a4] sm:$0xf]
      %v3635 = vld [vmem:[%s4 + $0x1a8] sm:$0xf]
      %v3636 = vld [vmem:[%s4 + $0x1ac] sm:$0xf]
      %v3637 = vld [vmem:[%s4 + $0x1b0] sm:$0xf]
      %v3638 = vld [vmem:[%s4 + $0x1b4] sm:$0xf]
      %v3639 = vld [vmem:[%s4 + $0x1b8] sm:$0xf]
      %v3640 = vld [vmem:[%s4 + $0x1bc] sm:$0xf]
      %v3641 = vld [vmem:[%s4 + $0x1c0] sm:$0xf]
      %v3642 = vld [vmem:[%s4 + $0x1c4] sm:$0xf]
      %v3643 = vld [vmem:[%s4 + $0x1c8] sm:$0xf]
      %v3644 = vld [vmem:[%s4 + $0x1cc] sm:$0xf]
      %v3645 = vld [vmem:[%s4 + $0x1d0] sm:$0xf]
      %v3646 = vld [vmem:[%s4 + $0x1d4] sm:$0xf]
      %v3647 = vld [vmem:[%s4 + $0x1d8] sm:$0xf]
      %v3648 = vld [vmem:[%s4 + $0x1dc] sm:$0xf]
      %v3649 = vld [vmem:[%s4 + $0x1e0] sm:$0xf]
      %v3650 = vld [vmem:[%s4 + $0x1e4] sm:$0xf]
      %v3651 = vld [vmem:[%s4 + $0x1e8] sm:$0xf]
      %v3652 = vld [vmem:[%s4 + $0x1ec] sm:$0xf]
      %v3653 = vld [vmem:[%s4 + $0x1f0] sm:$0xf]
      %v3654 = vld [vmem:[%s4 + $0x1f4] sm:$0xf]
      %v3655 = vld [vmem:[%s4 + $0x1f8] sm:$0xf]
      %v3656 = vld [vmem:[%s4 + $0x1fc] sm:$0xf]
      %v3657 = vld [vmem:[%s4 + $0x200] sm:$0xf]
      %v3658 = vld [vmem:[%s4 + $0x204] sm:$0xf]
      %v3659 = vld [vmem:[%s4 + $0x208] sm:$0xf]
      %v3660 = vld [vmem:[%s4 + $0x20c] sm:$0xf]
      %v3661 = vld [vmem:[%s4 + $0x210] sm:$0xf]
      %v3662 = vld [vmem:[%s4 + $0x214] sm:$0xf]
      %v3663 = vld [vmem:[%s4 + $0x218] sm:$0xf]
      %v3664 = vld [vmem:[%s4 + $0x21c] sm:$0xf]
      %v3665 = vld [vmem:[%s4 + $0x220] sm:$0xf]
      %v3666 = vld [vmem:[%s4 + $0x224] sm:$0xf]
      %v3667 = vld [vmem:[%s4 + $0x228] sm:$0xf]
      %v3668 = vld [vmem:[%s4 + $0x22c] sm:$0xf]
      %v3669 = vld [vmem:[%s4 + $0x230] sm:$0xf]
      %v3670 = vld [vmem:[%s4 + $0x234] sm:$0xf]
      %v3671 = vld [vmem:[%s4 + $0x238] sm:$0xf]
      %v3672 = vld [vmem:[%s4 + $0x23c] sm:$0xf]
      %v3817 = vunpack.c.l.b16 %v3529
      %v3818 = vunpack.c.l.b16 %v3530
      %v3819 = vunpack.c.l.b16 %v3531
      %v3820 = vunpack.c.l.b16 %v3532
      %v3821 = vunpack.c.l.b16 %v3533
      %v3822 = vunpack.c.l.b16 %v3534
      %v3823 = vunpack.c.l.b16 %v3535
      %v3824 = vunpack.c.l.b16 %v3536
      %v3825 = vunpack.c.l.b16 %v3537
      %v3826 = vunpack.c.l.b16 %v3538
      %v3827 = vunpack.c.l.b16 %v3539
      %v3828 = vunpack.c.l.b16 %v3540
      %v3829 = vunpack.c.l.b16 %v3541
      %v3830 = vunpack.c.l.b16 %v3542
      %v3831 = vunpack.c.l.b16 %v3543
      %v3832 = vunpack.c.l.b16 %v3544
      %v3833 = vunpack.c.l.b16 %v3545
      %v3834 = vunpack.c.l.b16 %v3546
      %v3835 = vunpack.c.l.b16 %v3547
      %v3836 = vunpack.c.l.b16 %v3548
      %v3837 = vunpack.c.l.b16 %v3549
      %v3838 = vunpack.c.l.b16 %v3550
      %v3839 = vunpack.c.l.b16 %v3551
      %v3840 = vunpack.c.l.b16 %v3552
      %v3841 = vunpack.c.l.b16 %v3553
      %v3842 = vunpack.c.l.b16 %v3554
      %v3843 = vunpack.c.l.b16 %v3555
      %v3844 = vunpack.c.l.b16 %v3556
      %v3845 = vunpack.c.l.b16 %v3557
      %v3846 = vunpack.c.l.b16 %v3558
      %v3847 = vunpack.c.l.b16 %v3559
      %v3848 = vunpack.c.l.b16 %v3560
      %v3849 = vunpack.c.l.b16 %v3561
      %v3850 = vunpack.c.l.b16 %v3562
      %v3851 = vunpack.c.l.b16 %v3563
      %v3852 = vunpack.c.l.b16 %v3564
      %v3853 = vunpack.c.l.b16 %v3565
      %v3854 = vunpack.c.l.b16 %v3566
      %v3855 = vunpack.c.l.b16 %v3567
      %v3856 = vunpack.c.l.b16 %v3568
      %v3857 = vunpack.c.l.b16 %v3569
      %v3858 = vunpack.c.l.b16 %v3570
      %v3859 = vunpack.c.l.b16 %v3571
      %v3860 = vunpack.c.l.b16 %v3572
      %v3861 = vunpack.c.l.b16 %v3573
      %v3862 = vunpack.c.l.b16 %v3574
      %v3863 = vunpack.c.l.b16 %v3575
      %v3864 = vunpack.c.l.b16 %v3576
      %v3865 = vunpack.c.l.b16 %v3577
      %v3866 = vunpack.c.l.b16 %v3578
      %v3867 = vunpack.c.l.b16 %v3579
      %v3868 = vunpack.c.l.b16 %v3580
      %v3869 = vunpack.c.l.b16 %v3581
      %v3870 = vunpack.c.l.b16 %v3582
      %v3871 = vunpack.c.l.b16 %v3583
      %v3872 = vunpack.c.l.b16 %v3584
      %v3873 = vunpack.c.l.b16 %v3585
      %v3874 = vunpack.c.l.b16 %v3586
      %v3875 = vunpack.c.l.b16 %v3587
      %v3876 = vunpack.c.l.b16 %v3588
      %v3877 = vunpack.c.l.b16 %v3589
      %v3878 = vunpack.c.l.b16 %v3590
      %v3879 = vunpack.c.l.b16 %v3591
      %v3880 = vunpack.c.l.b16 %v3592
      %v3881 = vunpack.c.l.b16 %v3593
      %v3882 = vunpack.c.l.b16 %v3594
      %v3883 = vunpack.c.l.b16 %v3595
      %v3884 = vunpack.c.l.b16 %v3596
      %v3885 = vunpack.c.l.b16 %v3597
      %v3886 = vunpack.c.l.b16 %v3598
      %v3887 = vunpack.c.l.b16 %v3599
      %v3888 = vunpack.c.l.b16 %v3600
      %v3889 = vunpack.c.l.b16 %v3601
      %v3890 = vunpack.c.l.b16 %v3602
      %v3891 = vunpack.c.l.b16 %v3603
      %v3892 = vunpack.c.l.b16 %v3604
      %v3893 = vunpack.c.l.b16 %v3605
      %v3894 = vunpack.c.l.b16 %v3606
      %v3895 = vunpack.c.l.b16 %v3607
      %v3896 = vunpack.c.l.b16 %v3608
      %v3897 = vunpack.c.l.b16 %v3609
      %v3898 = vunpack.c.l.b16 %v3610
      %v3899 = vunpack.c.l.b16 %v3611
      %v3900 = vunpack.c.l.b16 %v3612
      %v3901 = vunpack.c.l.b16 %v3613
      %v3902 = vunpack.c.l.b16 %v3614
      %v3903 = vunpack.c.l.b16 %v3615
      %v3904 = vunpack.c.l.b16 %v3616
      %v3905 = vunpack.c.l.b16 %v3617
      %v3906 = vunpack.c.l.b16 %v3618
      %v3907 = vunpack.c.l.b16 %v3619
      %v3908 = vunpack.c.l.b16 %v3620
      %v3909 = vunpack.c.l.b16 %v3621
      %v3910 = vunpack.c.l.b16 %v3622
      %v3911 = vunpack.c.l.b16 %v3623
      %v3912 = vunpack.c.l.b16 %v3624
      %v3913 = vunpack.c.l.b16 %v3625
      %v3914 = vunpack.c.l.b16 %v3626
      %v3915 = vunpack.c.l.b16 %v3627
      %v3916 = vunpack.c.l.b16 %v3628
      %v3917 = vunpack.c.l.b16 %v3629
      %v3918 = vunpack.c.l.b16 %v3630
      %v3919 = vunpack.c.l.b16 %v3631
      %v3920 = vunpack.c.l.b16 %v3632
      %v3921 = vunpack.c.l.b16 %v3633
      %v3922 = vunpack.c.l.b16 %v3634
      %v3923 = vunpack.c.l.b16 %v3635
      %v3924 = vunpack.c.l.b16 %v3636
      %v3925 = vunpack.c.l.b16 %v3637
      %v3926 = vunpack.c.l.b16 %v3638
      %v3927 = vunpack.c.l.b16 %v3639
      %v3928 = vunpack.c.l.b16 %v3640
      %v3929 = vunpack.c.l.b16 %v3641
      %v3930 = vunpack.c.l.b16 %v3642
      %v3931 = vunpack.c.l.b16 %v3643
      %v3932 = vunpack.c.l.b16 %v3644
      %v3933 = vunpack.c.l.b16 %v3645
      %v3934 = vunpack.c.l.b16 %v3646
      %v3935 = vunpack.c.l.b16 %v3647
      %v3936 = vunpack.c.l.b16 %v3648
      %v3937 = vunpack.c.l.b16 %v3649
      %v3938 = vunpack.c.l.b16 %v3650
      %v3939 = vunpack.c.l.b16 %v3651
      %v3940 = vunpack.c.l.b16 %v3652
      %v3941 = vunpack.c.l.b16 %v3653
      %v3942 = vunpack.c.l.b16 %v3654
      %v3943 = vunpack.c.l.b16 %v3655
      %v3944 = vunpack.c.l.b16 %v3656
      %v3945 = vunpack.c.l.b16 %v3657
      %v3946 = vunpack.c.l.b16 %v3658
      %v3947 = vunpack.c.l.b16 %v3659
      %v3948 = vunpack.c.l.b16 %v3660
      %v3949 = vunpack.c.l.b16 %v3661
      %v3950 = vunpack.c.l.b16 %v3662
      %v3951 = vunpack.c.l.b16 %v3663
      %v3952 = vunpack.c.l.b16 %v3664
      %v3953 = vunpack.c.l.b16 %v3665
      %v3954 = vunpack.c.l.b16 %v3666
      %v3955 = vunpack.c.l.b16 %v3667
      %v3956 = vunpack.c.l.b16 %v3668
      %v3957 = vunpack.c.l.b16 %v3669
      %v3958 = vunpack.c.l.b16 %v3670
      %v3959 = vunpack.c.l.b16 %v3671
      %v3960 = vunpack.c.l.b16 %v3672
      %v3961 = vpack.c.b16 %v3818, %v3817
      %v3962 = vpack.c.b16 %v3820, %v3819
      %v3963 = vpack.c.b16 %v3822, %v3821
      %v3964 = vpack.c.b16 %v3824, %v3823
      %v3965 = vpack.c.b16 %v3826, %v3825
      %v3966 = vpack.c.b16 %v3828, %v3827
      %v3967 = vpack.c.b16 %v3830, %v3829
      %v3968 = vpack.c.b16 %v3832, %v3831
      %v3969 = vpack.c.b16 %v3834, %v3833
      %v3970 = vpack.c.b16 %v3836, %v3835
      %v3971 = vpack.c.b16 %v3838, %v3837
      %v3972 = vpack.c.b16 %v3840, %v3839
      %v3973 = vpack.c.b16 %v3842, %v3841
      %v3974 = vpack.c.b16 %v3844, %v3843
      %v3975 = vpack.c.b16 %v3846, %v3845
      %v3976 = vpack.c.b16 %v3848, %v3847
      %v3977 = vpack.c.b16 %v3850, %v3849
      %v3978 = vpack.c.b16 %v3852, %v3851
      %v3979 = vpack.c.b16 %v3854, %v3853
      %v3980 = vpack.c.b16 %v3856, %v3855
      %v3981 = vpack.c.b16 %v3858, %v3857
      %v3982 = vpack.c.b16 %v3860, %v3859
      %v3983 = vpack.c.b16 %v3862, %v3861
      %v3984 = vpack.c.b16 %v3864, %v3863
      %v3985 = vpack.c.b16 %v3866, %v3865
      %v3986 = vpack.c.b16 %v3868, %v3867
      %v3987 = vpack.c.b16 %v3870, %v3869
      %v3988 = vpack.c.b16 %v3872, %v3871
      %v3989 = vpack.c.b16 %v3874, %v3873
      %v3990 = vpack.c.b16 %v3876, %v3875
      %v3991 = vpack.c.b16 %v3878, %v3877
      %v3992 = vpack.c.b16 %v3880, %v3879
      %v3993 = vpack.c.b16 %v3882, %v3881
      %v3994 = vpack.c.b16 %v3884, %v3883
      %v3995 = vpack.c.b16 %v3886, %v3885
      %v3996 = vpack.c.b16 %v3888, %v3887
      %v3997 = vpack.c.b16 %v3890, %v3889
      %v3998 = vpack.c.b16 %v3892, %v3891
      %v3999 = vpack.c.b16 %v3894, %v3893
      %v4000 = vpack.c.b16 %v3896, %v3895
      %v4001 = vpack.c.b16 %v3898, %v3897
      %v4002 = vpack.c.b16 %v3900, %v3899
      %v4003 = vpack.c.b16 %v3902, %v3901
      %v4004 = vpack.c.b16 %v3904, %v3903
      %v4005 = vpack.c.b16 %v3906, %v3905
      %v4006 = vpack.c.b16 %v3908, %v3907
      %v4007 = vpack.c.b16 %v3910, %v3909
      %v4008 = vpack.c.b16 %v3912, %v3911
      %v4009 = vpack.c.b16 %v3914, %v3913
      %v4010 = vpack.c.b16 %v3916, %v3915
      %v4011 = vpack.c.b16 %v3918, %v3917
      %v4012 = vpack.c.b16 %v3920, %v3919
      %v4013 = vpack.c.b16 %v3922, %v3921
      %v4014 = vpack.c.b16 %v3924, %v3923
      %v4015 = vpack.c.b16 %v3926, %v3925
      %v4016 = vpack.c.b16 %v3928, %v3927
      %v4017 = vpack.c.b16 %v3930, %v3929
      %v4018 = vpack.c.b16 %v3932, %v3931
      %v4019 = vpack.c.b16 %v3934, %v3933
      %v4020 = vpack.c.b16 %v3936, %v3935
      %v4021 = vpack.c.b16 %v3938, %v3937
      %v4022 = vpack.c.b16 %v3940, %v3939
      %v4023 = vpack.c.b16 %v3942, %v3941
      %v4024 = vpack.c.b16 %v3944, %v3943
      %v4025 = vpack.c.b16 %v3946, %v3945
      %v4026 = vpack.c.b16 %v3948, %v3947
      %v4027 = vpack.c.b16 %v3950, %v3949
      %v4028 = vpack.c.b16 %v3952, %v3951
      %v4029 = vpack.c.b16 %v3954, %v3953
      %v4030 = vpack.c.b16 %v3956, %v3955
      %v4031 = vpack.c.b16 %v3958, %v3957
      %v4032 = vpack.c.b16 %v3960, %v3959
      %4105 = vmatprep.subr.bf16.mxu0 0
      %4106 = vmatpush1.bf16.msra.mxu0 %v3968
      %4107 = vmatprep.subr.bf16.mxu0 0
      %4108 = vmatpush1.bf16.msra.mxu0 %v3967
      %4109 = vmatprep.subr.bf16.mxu0 0
      %4110 = vmatpush1.bf16.msra.mxu0 %v3966
      %4111 = vmatprep.subr.bf16.mxu0 0
      %4112 = vmatpush1.bf16.msra.mxu0 %v3965
      %4113 = vmatprep.subr.bf16.mxu0 0
      %4114 = vmatpush1.bf16.msra.mxu0 %v3964
      %4115 = vmatprep.subr.bf16.mxu0 0
      %4116 = vmatpush1.bf16.msra.mxu0 %v3963
      %4117 = vmatprep.subr.bf16.mxu0 0
      %4118 = vmatpush1.bf16.msra.mxu0 %v3962
      %4119 = vmatprep.subr.bf16.mxu0 0
      %4120 = vmatpush1.bf16.msra.mxu0 %v3961
      %4121 = vmatprep.subr.bf16.mxu0 0
      %4122 = vmatpush2.bf16.msra.mxu0 %v3976
      %4123 = vmatprep.subr.bf16.mxu0 0
      %4124 = vmatpush2.bf16.msra.mxu0 %v3975
      %4125 = vmatprep.subr.bf16.mxu0 0
      %4126 = vmatpush2.bf16.msra.mxu0 %v3974
      %4127 = vmatprep.subr.bf16.mxu0 0
      %4128 = vmatpush2.bf16.msra.mxu0 %v3973
      %4129 = vmatprep.subr.bf16.mxu0 0
      %4130 = vmatpush2.bf16.msra.mxu0 %v3972
      %4131 = vmatprep.subr.bf16.mxu0 0
      %4132 = vmatpush2.bf16.msra.mxu0 %v3971
      %4133 = vmatprep.subr.bf16.mxu0 0
      %4134 = vmatpush2.bf16.msra.mxu0 %v3970
      %4135 = vmatprep.subr.bf16.mxu0 0
      %4136 = vmatpush2.bf16.msra.mxu0 %v3969
      %4137 = vmatprep.mubr.bf16.mxu0 %v3409
      %4138 = vmatmul.mubr.bf16.gmra.mxu0 %v3345
      %v4139 = vpop.f32.mrf.mxu0
      %v4140 = vadd.f32 0.0, %v4139
      %v4141 = vpop.f32.mrf.mxu0
      %v4142 = vpop.f32.mrf.mxu0
      %v4143 = vadd.f32 0.0, %v4142
      %v4144 = vpop.f32.mrf.mxu0
      %4145 = vmatprep.mubr.bf16.mxu0 %v3410
      %4146 = vmatmul.mubr.bf16.gmra.mxu0 %v3346
      %v4147 = vpop.f32.mrf.mxu0
      %v4148 = vadd.f32 0.0, %v4147
      %v4149 = vpop.f32.mrf.mxu0
      %v4150 = vpop.f32.mrf.mxu0
      %v4151 = vadd.f32 0.0, %v4150
      %v4152 = vpop.f32.mrf.mxu0
      %4153 = vmatprep.mubr.bf16.mxu0 %v3411
      %4154 = vmatmul.mubr.bf16.gmra.mxu0 %v3347
      %v4155 = vpop.f32.mrf.mxu0
      %v4156 = vadd.f32 0.0, %v4155
      %v4157 = vpop.f32.mrf.mxu0
      %v4158 = vpop.f32.mrf.mxu0
      %v4159 = vadd.f32 0.0, %v4158
      %v4160 = vpop.f32.mrf.mxu0
      %4161 = vmatprep.mubr.bf16.mxu0 %v3412
      %4162 = vmatmul.mubr.bf16.gmra.mxu0 %v3348
      %v4163 = vpop.f32.mrf.mxu0
      %v4164 = vadd.f32 0.0, %v4163
      %v4165 = vpop.f32.mrf.mxu0
      %v4166 = vpop.f32.mrf.mxu0
      %v4167 = vadd.f32 0.0, %v4166
      %v4168 = vpop.f32.mrf.mxu0
      %4169 = vmatprep.mubr.bf16.mxu0 %v3413
      %4170 = vmatmul.mubr.bf16.gmra.mxu0 %v3349
      %v4171 = vpop.f32.mrf.mxu0
      %v4172 = vadd.f32 0.0, %v4171
      %v4173 = vpop.f32.mrf.mxu0
      %v4174 = vpop.f32.mrf.mxu0
      %v4175 = vadd.f32 0.0, %v4174
      %v4176 = vpop.f32.mrf.mxu0
      %4177 = vmatprep.mubr.bf16.mxu0 %v3414
      %4178 = vmatmul.mubr.bf16.gmra.mxu0 %v3350
      %v4179 = vpop.f32.mrf.mxu0
      %v4180 = vadd.f32 0.0, %v4179
      %v4181 = vpop.f32.mrf.mxu0
      %v4182 = vpop.f32.mrf.mxu0
      %v4183 = vadd.f32 0.0, %v4182
      %v4184 = vpop.f32.mrf.mxu0
      %4185 = vmatprep.mubr.bf16.mxu0 %v3415
      %4186 = vmatmul.mubr.bf16.gmra.mxu0 %v3351
      %v4187 = vpop.f32.mrf.mxu0
      %v4188 = vadd.f32 0.0, %v4187
      %v4189 = vpop.f32.mrf.mxu0
      %v4190 = vpop.f32.mrf.mxu0
      %v4191 = vadd.f32 0.0, %v4190
      %v4192 = vpop.f32.mrf.mxu0
      %4193 = vmatprep.mubr.bf16.mxu0 %v3416
      %4194 = vmatmul.mubr.bf16.gmra.mxu0 %v3352
      %v4195 = vpop.f32.mrf.mxu0
      %v4196 = vadd.f32 0.0, %v4195
      %v4197 = vpop.f32.mrf.mxu0
      %v4198 = vpop.f32.mrf.mxu0
      %v4199 = vadd.f32 0.0, %v4198
      %v4200 = vpop.f32.mrf.mxu0
      %4201 = vmatprep.mubr.bf16.mxu0 %v3417
      %4202 = vmatmul.mubr.bf16.gmra.mxu0 %v3353
      %v4203 = vpop.f32.mrf.mxu0
      %v4204 = vadd.f32 0.0, %v4203
      %v4205 = vpop.f32.mrf.mxu0
      %v4206 = vpop.f32.mrf.mxu0
      %v4207 = vadd.f32 0.0, %v4206
      %v4208 = vpop.f32.mrf.mxu0
      %4209 = vmatprep.mubr.bf16.mxu0 %v3418
      %4210 = vmatmul.mubr.bf16.gmra.mxu0 %v3354
      %v4211 = vpop.f32.mrf.mxu0
      %v4212 = vadd.f32 0.0, %v4211
      %v4213 = vpop.f32.mrf.mxu0
      %v4214 = vpop.f32.mrf.mxu0
      %v4215 = vadd.f32 0.0, %v4214
      %v4216 = vpop.f32.mrf.mxu0
      %4217 = vmatprep.mubr.bf16.mxu0 %v3419
      %4218 = vmatmul.mubr.bf16.gmra.mxu0 %v3355
      %v4219 = vpop.f32.mrf.mxu0
      %v4220 = vadd.f32 0.0, %v4219
      %v4221 = vpop.f32.mrf.mxu0
      %v4222 = vpop.f32.mrf.mxu0
      %v4223 = vadd.f32 0.0, %v4222
      %v4224 = vpop.f32.mrf.mxu0
      %4225 = vmatprep.mubr.bf16.mxu0 %v3420
      %4226 = vmatmul.mubr.bf16.gmra.mxu0 %v3356
      %v4227 = vpop.f32.mrf.mxu0
      %v4228 = vadd.f32 0.0, %v4227
      %v4229 = vpop.f32.mrf.mxu0
      %v4230 = vpop.f32.mrf.mxu0
      %v4231 = vadd.f32 0.0, %v4230
      %v4232 = vpop.f32.mrf.mxu0
      %4233 = vmatprep.mubr.bf16.mxu0 %v3421
      %4234 = vmatmul.mubr.bf16.gmra.mxu0 %v3357
      %v4235 = vpop.f32.mrf.mxu0
      %v4236 = vadd.f32 0.0, %v4235
      %v4237 = vpop.f32.mrf.mxu0
      %v4238 = vpop.f32.mrf.mxu0
      %v4239 = vadd.f32 0.0, %v4238
      %v4240 = vpop.f32.mrf.mxu0
      %4241 = vmatprep.mubr.bf16.mxu0 %v3422
      %4242 = vmatmul.mubr.bf16.gmra.mxu0 %v3358
      %v4243 = vpop.f32.mrf.mxu0
      %v4244 = vadd.f32 0.0, %v4243
      %v4245 = vpop.f32.mrf.mxu0
      %v4246 = vpop.f32.mrf.mxu0
      %v4247 = vadd.f32 0.0, %v4246
      %v4248 = vpop.f32.mrf.mxu0
      %4249 = vmatprep.mubr.bf16.mxu0 %v3423
      %4250 = vmatmul.mubr.bf16.gmra.mxu0 %v3359
      %v4251 = vpop.f32.mrf.mxu0
      %v4252 = vadd.f32 0.0, %v4251
      %v4253 = vpop.f32.mrf.mxu0
      %v4254 = vpop.f32.mrf.mxu0
      %v4255 = vadd.f32 0.0, %v4254
      %v4256 = vpop.f32.mrf.mxu0
      %4257 = vmatprep.mubr.bf16.mxu0 %v3424
      %4258 = vmatmul.mubr.bf16.gmra.mxu0 %v3360
      %v4259 = vpop.f32.mrf.mxu0
      %v4260 = vadd.f32 0.0, %v4259
      %v4261 = vpop.f32.mrf.mxu0
      %v4262 = vpop.f32.mrf.mxu0
      %v4263 = vadd.f32 0.0, %v4262
      %v4264 = vpop.f32.mrf.mxu0
      %4265 = vdwg.mxu0
      %4266 = vmatprep.subr.bf16.mxu0 0
      %4267 = vmatpush1.bf16.msra.mxu0 %v3984
      %4268 = vmatprep.subr.bf16.mxu0 0
      %4269 = vmatpush1.bf16.msra.mxu0 %v3983
      %4270 = vmatprep.subr.bf16.mxu0 0
      %4271 = vmatpush1.bf16.msra.mxu0 %v3982
      %4272 = vmatprep.subr.bf16.mxu0 0
      %4273 = vmatpush1.bf16.msra.mxu0 %v3981
      %4274 = vmatprep.subr.bf16.mxu0 0
      %4275 = vmatpush1.bf16.msra.mxu0 %v3980
      %4276 = vmatprep.subr.bf16.mxu0 0
      %4277 = vmatpush1.bf16.msra.mxu0 %v3979
      %4278 = vmatprep.subr.bf16.mxu0 0
      %4279 = vmatpush1.bf16.msra.mxu0 %v3978
      %4280 = vmatprep.subr.bf16.mxu0 0
      %4281 = vmatpush1.bf16.msra.mxu0 %v3977
      %4282 = vmatprep.subr.bf16.mxu0 0
      %4283 = vmatpush2.bf16.msra.mxu0 %v3992
      %4284 = vmatprep.subr.bf16.mxu0 0
      %4285 = vmatpush2.bf16.msra.mxu0 %v3991
      %4286 = vmatprep.subr.bf16.mxu0 0
      %4287 = vmatpush2.bf16.msra.mxu0 %v3990
      %4288 = vmatprep.subr.bf16.mxu0 0
      %4289 = vmatpush2.bf16.msra.mxu0 %v3989
      %4290 = vmatprep.subr.bf16.mxu0 0
      %4291 = vmatpush2.bf16.msra.mxu0 %v3988
      %4292 = vmatprep.subr.bf16.mxu0 0
      %4293 = vmatpush2.bf16.msra.mxu0 %v3987
      %4294 = vmatprep.subr.bf16.mxu0 0
      %4295 = vmatpush2.bf16.msra.mxu0 %v3986
      %4296 = vmatprep.subr.bf16.mxu0 0
      %4297 = vmatpush2.bf16.msra.mxu0 %v3985
      %4298 = vmatprep.mubr.bf16.mxu0 %v3346
      %4299 = vmatmul.mubr.bf16.gmra.mxu0 %v3473
      %v4300 = vpop.f32.mrf.mxu0
      %v4301 = vadd.f32 %v4140, %v4300
      %v4302 = vpop.f32.mrf.mxu0
      %v4303 = vpop.f32.mrf.mxu0
      %v4304 = vadd.f32 %v4143, %v4303
      %v4305 = vpop.f32.mrf.mxu0
      %4306 = vmatprep.mubr.bf16.mxu0 %v3347
      %4307 = vmatmul.mubr.bf16.gmra.mxu0 %v3474
      %v4308 = vpop.f32.mrf.mxu0
      %v4309 = vadd.f32 %v4148, %v4308
      %v4310 = vpop.f32.mrf.mxu0
      %v4311 = vpop.f32.mrf.mxu0
      %v4312 = vadd.f32 %v4151, %v4311
      %v4313 = vpop.f32.mrf.mxu0
      %4314 = vmatprep.mubr.bf16.mxu0 %v3348
      %4315 = vmatmul.mubr.bf16.gmra.mxu0 %v3475
      %v4316 = vpop.f32.mrf.mxu0
      %v4317 = vadd.f32 %v4156, %v4316
      %v4318 = vpop.f32.mrf.mxu0
      %v4319 = vpop.f32.mrf.mxu0
      %v4320 = vadd.f32 %v4159, %v4319
      %v4321 = vpop.f32.mrf.mxu0
      %4322 = vmatprep.mubr.bf16.mxu0 %v3349
      %4323 = vmatmul.mubr.bf16.gmra.mxu0 %v3476
      %v4324 = vpop.f32.mrf.mxu0
      %v4325 = vadd.f32 %v4164, %v4324
      %v4326 = vpop.f32.mrf.mxu0
      %v4327 = vpop.f32.mrf.mxu0
      %v4328 = vadd.f32 %v4167, %v4327
      %v4329 = vpop.f32.mrf.mxu0
      %4330 = vmatprep.mubr.bf16.mxu0 %v3350
      %4331 = vmatmul.mubr.bf16.gmra.mxu0 %v3477
      %v4332 = vpop.f32.mrf.mxu0
      %v4333 = vadd.f32 %v4172, %v4332
      %v4334 = vpop.f32.mrf.mxu0
      %v4335 = vpop.f32.mrf.mxu0
      %v4336 = vadd.f32 %v4175, %v4335
      %v4337 = vpop.f32.mrf.mxu0
      %4338 = vmatprep.mubr.bf16.mxu0 %v3351
      %4339 = vmatmul.mubr.bf16.gmra.mxu0 %v3478
      %v4340 = vpop.f32.mrf.mxu0
      %v4341 = vadd.f32 %v4180, %v4340
      %v4342 = vpop.f32.mrf.mxu0
      %v4343 = vpop.f32.mrf.mxu0
      %v4344 = vadd.f32 %v4183, %v4343
      %v4345 = vpop.f32.mrf.mxu0
      %4346 = vmatprep.mubr.bf16.mxu0 %v3352
      %4347 = vmatmul.mubr.bf16.gmra.mxu0 %v3479
      %v4348 = vpop.f32.mrf.mxu0
      %v4349 = vadd.f32 %v4188, %v4348
      %v4350 = vpop.f32.mrf.mxu0
      %v4351 = vpop.f32.mrf.mxu0
      %v4352 = vadd.f32 %v4191, %v4351
      %v4353 = vpop.f32.mrf.mxu0
      %4354 = vmatprep.mubr.bf16.mxu0 %v3353
      %4355 = vmatmul.mubr.bf16.gmra.mxu0 %v3480
      %v4356 = vpop.f32.mrf.mxu0
      %v4357 = vadd.f32 %v4196, %v4356
      %v4358 = vpop.f32.mrf.mxu0
      %v4359 = vpop.f32.mrf.mxu0
      %v4360 = vadd.f32 %v4199, %v4359
      %v4361 = vpop.f32.mrf.mxu0
      %4362 = vmatprep.mubr.bf16.mxu0 %v3354
      %4363 = vmatmul.mubr.bf16.gmra.mxu0 %v3481
      %v4364 = vpop.f32.mrf.mxu0
      %v4365 = vadd.f32 %v4204, %v4364
      %v4366 = vpop.f32.mrf.mxu0
      %v4367 = vpop.f32.mrf.mxu0
      %v4368 = vadd.f32 %v4207, %v4367
      %v4369 = vpop.f32.mrf.mxu0
      %4370 = vmatprep.mubr.bf16.mxu0 %v3355
      %4371 = vmatmul.mubr.bf16.gmra.mxu0 %v3482
      %v4372 = vpop.f32.mrf.mxu0
      %v4373 = vadd.f32 %v4212, %v4372
      %v4374 = vpop.f32.mrf.mxu0
      %v4375 = vpop.f32.mrf.mxu0
      %v4376 = vadd.f32 %v4215, %v4375
      %v4377 = vpop.f32.mrf.mxu0
      %4378 = vmatprep.mubr.bf16.mxu0 %v3356
      %4379 = vmatmul.mubr.bf16.gmra.mxu0 %v3483
      %v4380 = vpop.f32.mrf.mxu0
      %v4381 = vadd.f32 %v4220, %v4380
      %v4382 = vpop.f32.mrf.mxu0
      %v4383 = vpop.f32.mrf.mxu0
      %v4384 = vadd.f32 %v4223, %v4383
      %v4385 = vpop.f32.mrf.mxu0
      %4386 = vmatprep.mubr.bf16.mxu0 %v3357
      %4387 = vmatmul.mubr.bf16.gmra.mxu0 %v3484
      %v4388 = vpop.f32.mrf.mxu0
      %v4389 = vadd.f32 %v4228, %v4388
      %v4390 = vpop.f32.mrf.mxu0
      %v4391 = vpop.f32.mrf.mxu0
      %v4392 = vadd.f32 %v4231, %v4391
      %v4393 = vpop.f32.mrf.mxu0
      %4394 = vmatprep.mubr.bf16.mxu0 %v3358
      %4395 = vmatmul.mubr.bf16.gmra.mxu0 %v3485
      %v4396 = vpop.f32.mrf.mxu0
      %v4397 = vadd.f32 %v4236, %v4396
      %v4398 = vpop.f32.mrf.mxu0
      %v4399 = vpop.f32.mrf.mxu0
      %v4400 = vadd.f32 %v4239, %v4399
      %v4401 = vpop.f32.mrf.mxu0
      %4402 = vmatprep.mubr.bf16.mxu0 %v3359
      %4403 = vmatmul.mubr.bf16.gmra.mxu0 %v3486
      %v4404 = vpop.f32.mrf.mxu0
      %v4405 = vadd.f32 %v4244, %v4404
      %v4406 = vpop.f32.mrf.mxu0
      %v4407 = vpop.f32.mrf.mxu0
      %v4408 = vadd.f32 %v4247, %v4407
      %v4409 = vpop.f32.mrf.mxu0
      %4410 = vmatprep.mubr.bf16.mxu0 %v3360
      %4411 = vmatmul.mubr.bf16.gmra.mxu0 %v3487
      %v4412 = vpop.f32.mrf.mxu0
      %v4413 = vadd.f32 %v4252, %v4412
      %v4414 = vpop.f32.mrf.mxu0
      %v4415 = vpop.f32.mrf.mxu0
      %v4416 = vadd.f32 %v4255, %v4415
      %v4417 = vpop.f32.mrf.mxu0
      %4418 = vmatprep.mubr.bf16.mxu0 %v3507
      %4419 = vmatmul.mubr.bf16.gmra.mxu0 %v3488
      %v4420 = vpop.f32.mrf.mxu0
      %v4421 = vadd.f32 %v4260, %v4420
      %v4422 = vpop.f32.mrf.mxu0
      %v4423 = vpop.f32.mrf.mxu0
      %v4424 = vadd.f32 %v4263, %v4423
      %v4425 = vpop.f32.mrf.mxu0
      %4426 = vdwg.mxu0
      %4427 = vmatprep.subr.bf16.mxu0 0
      %4428 = vmatpush1.bf16.msra.mxu0 %v4000
      %4429 = vmatprep.subr.bf16.mxu0 0
      %4430 = vmatpush1.bf16.msra.mxu0 %v3999
      %4431 = vmatprep.subr.bf16.mxu0 0
      %4432 = vmatpush1.bf16.msra.mxu0 %v3998
      %4433 = vmatprep.subr.bf16.mxu0 0
      %4434 = vmatpush1.bf16.msra.mxu0 %v3997
      %4435 = vmatprep.subr.bf16.mxu0 0
      %4436 = vmatpush1.bf16.msra.mxu0 %v3996
      %4437 = vmatprep.subr.bf16.mxu0 0
      %4438 = vmatpush1.bf16.msra.mxu0 %v3995
      %4439 = vmatprep.subr.bf16.mxu0 0
      %4440 = vmatpush1.bf16.msra.mxu0 %v3994
      %4441 = vmatprep.subr.bf16.mxu0 0
      %4442 = vmatpush1.bf16.msra.mxu0 %v3993
      %4443 = vmatprep.subr.bf16.mxu0 0
      %4444 = vmatpush2.bf16.msra.mxu0 %v4008
      %4445 = vmatprep.subr.bf16.mxu0 0
      %4446 = vmatpush2.bf16.msra.mxu0 %v4007
      %4447 = vmatprep.subr.bf16.mxu0 0
      %4448 = vmatpush2.bf16.msra.mxu0 %v4006
      %4449 = vmatprep.subr.bf16.mxu0 0
      %4450 = vmatpush2.bf16.msra.mxu0 %v4005
      %4451 = vmatprep.subr.bf16.mxu0 0
      %4452 = vmatpush2.bf16.msra.mxu0 %v4004
      %4453 = vmatprep.subr.bf16.mxu0 0
      %4454 = vmatpush2.bf16.msra.mxu0 %v4003
      %4455 = vmatprep.subr.bf16.mxu0 0
      %4456 = vmatpush2.bf16.msra.mxu0 %v4002
      %4457 = vmatprep.subr.bf16.mxu0 0
      %4458 = vmatpush2.bf16.msra.mxu0 %v4001
      %4459 = vmatprep.mubr.bf16.mxu0 %v3474
      %4460 = vmatmul.mubr.bf16.gmra.mxu0 %v3410
      %v4461 = vpop.f32.mrf.mxu0
      %v4462 = vadd.f32 %v4301, %v4461
      %v4463 = vpop.f32.mrf.mxu0
      %v4464 = vpop.f32.mrf.mxu0
      %v4465 = vadd.f32 %v4304, %v4464
      %v4466 = vpop.f32.mrf.mxu0
      %4467 = vmatprep.mubr.bf16.mxu0 %v3475
      %4468 = vmatmul.mubr.bf16.gmra.mxu0 %v3411
      %v4469 = vpop.f32.mrf.mxu0
      %v4470 = vadd.f32 %v4309, %v4469
      %v4471 = vpop.f32.mrf.mxu0
      %v4472 = vpop.f32.mrf.mxu0
      %v4473 = vadd.f32 %v4312, %v4472
      %v4474 = vpop.f32.mrf.mxu0
      %4475 = vmatprep.mubr.bf16.mxu0 %v3476
      %4476 = vmatmul.mubr.bf16.gmra.mxu0 %v3412
      %v4477 = vpop.f32.mrf.mxu0
      %v4478 = vadd.f32 %v4317, %v4477
      %v4479 = vpop.f32.mrf.mxu0
      %v4480 = vpop.f32.mrf.mxu0
      %v4481 = vadd.f32 %v4320, %v4480
      %v4482 = vpop.f32.mrf.mxu0
      %4483 = vmatprep.mubr.bf16.mxu0 %v3477
      %4484 = vmatmul.mubr.bf16.gmra.mxu0 %v3413
      %v4485 = vpop.f32.mrf.mxu0
      %v4486 = vadd.f32 %v4325, %v4485
      %v4487 = vpop.f32.mrf.mxu0
      %v4488 = vpop.f32.mrf.mxu0
      %v4489 = vadd.f32 %v4328, %v4488
      %v4490 = vpop.f32.mrf.mxu0
      %4491 = vmatprep.mubr.bf16.mxu0 %v3478
      %4492 = vmatmul.mubr.bf16.gmra.mxu0 %v3414
      %v4493 = vpop.f32.mrf.mxu0
      %v4494 = vadd.f32 %v4333, %v4493
      %v4495 = vpop.f32.mrf.mxu0
      %v4496 = vpop.f32.mrf.mxu0
      %v4497 = vadd.f32 %v4336, %v4496
      %v4498 = vpop.f32.mrf.mxu0
      %4499 = vmatprep.mubr.bf16.mxu0 %v3479
      %4500 = vmatmul.mubr.bf16.gmra.mxu0 %v3415
      %v4501 = vpop.f32.mrf.mxu0
      %v4502 = vadd.f32 %v4341, %v4501
      %v4503 = vpop.f32.mrf.mxu0
      %v4504 = vpop.f32.mrf.mxu0
      %v4505 = vadd.f32 %v4344, %v4504
      %v4506 = vpop.f32.mrf.mxu0
      %4507 = vmatprep.mubr.bf16.mxu0 %v3480
      %4508 = vmatmul.mubr.bf16.gmra.mxu0 %v3416
      %v4509 = vpop.f32.mrf.mxu0
      %v4510 = vadd.f32 %v4349, %v4509
      %v4511 = vpop.f32.mrf.mxu0
      %v4512 = vpop.f32.mrf.mxu0
      %v4513 = vadd.f32 %v4352, %v4512
      %v4514 = vpop.f32.mrf.mxu0
      %4515 = vmatprep.mubr.bf16.mxu0 %v3481
      %4516 = vmatmul.mubr.bf16.gmra.mxu0 %v3417
      %v4517 = vpop.f32.mrf.mxu0
      %v4518 = vadd.f32 %v4357, %v4517
      %v4519 = vpop.f32.mrf.mxu0
      %v4520 = vpop.f32.mrf.mxu0
      %v4521 = vadd.f32 %v4360, %v4520
      %v4522 = vpop.f32.mrf.mxu0
      %4523 = vmatprep.mubr.bf16.mxu0 %v3482
      %4524 = vmatmul.mubr.bf16.gmra.mxu0 %v3418
      %v4525 = vpop.f32.mrf.mxu0
      %v4526 = vadd.f32 %v4365, %v4525
      %v4527 = vpop.f32.mrf.mxu0
      %v4528 = vpop.f32.mrf.mxu0
      %v4529 = vadd.f32 %v4368, %v4528
      %v4530 = vpop.f32.mrf.mxu0
      %4531 = vmatprep.mubr.bf16.mxu0 %v3483
      %4532 = vmatmul.mubr.bf16.gmra.mxu0 %v3419
      %v4533 = vpop.f32.mrf.mxu0
      %v4534 = vadd.f32 %v4373, %v4533
      %v4535 = vpop.f32.mrf.mxu0
      %v4536 = vpop.f32.mrf.mxu0
      %v4537 = vadd.f32 %v4376, %v4536
      %v4538 = vpop.f32.mrf.mxu0
      %4539 = vmatprep.mubr.bf16.mxu0 %v3484
      %4540 = vmatmul.mubr.bf16.gmra.mxu0 %v3420
      %v4541 = vpop.f32.mrf.mxu0
      %v4542 = vadd.f32 %v4381, %v4541
      %v4543 = vpop.f32.mrf.mxu0
      %v4544 = vpop.f32.mrf.mxu0
      %v4545 = vadd.f32 %v4384, %v4544
      %v4546 = vpop.f32.mrf.mxu0
      %4547 = vmatprep.mubr.bf16.mxu0 %v3485
      %4548 = vmatmul.mubr.bf16.gmra.mxu0 %v3421
      %v4549 = vpop.f32.mrf.mxu0
      %v4550 = vadd.f32 %v4389, %v4549
      %v4551 = vpop.f32.mrf.mxu0
      %v4552 = vpop.f32.mrf.mxu0
      %v4553 = vadd.f32 %v4392, %v4552
      %v4554 = vpop.f32.mrf.mxu0
      %4555 = vmatprep.mubr.bf16.mxu0 %v3486
      %4556 = vmatmul.mubr.bf16.gmra.mxu0 %v3422
      %v4557 = vpop.f32.mrf.mxu0
      %v4558 = vadd.f32 %v4397, %v4557
      %v4559 = vpop.f32.mrf.mxu0
      %v4560 = vpop.f32.mrf.mxu0
      %v4561 = vadd.f32 %v4400, %v4560
      %v4562 = vpop.f32.mrf.mxu0
      %4563 = vmatprep.mubr.bf16.mxu0 %v3487
      %4564 = vmatmul.mubr.bf16.gmra.mxu0 %v3423
      %v4565 = vpop.f32.mrf.mxu0
      %v4566 = vadd.f32 %v4405, %v4565
      %v4567 = vpop.f32.mrf.mxu0
      %v4568 = vpop.f32.mrf.mxu0
      %v4569 = vadd.f32 %v4408, %v4568
      %v4570 = vpop.f32.mrf.mxu0
      %4571 = vmatprep.mubr.bf16.mxu0 %v3488
      %4572 = vmatmul.mubr.bf16.gmra.mxu0 %v3424
      %v4573 = vpop.f32.mrf.mxu0
      %v4574 = vadd.f32 %v4413, %v4573
      %v4575 = vpop.f32.mrf.mxu0
      %v4576 = vpop.f32.mrf.mxu0
      %v4577 = vadd.f32 %v4416, %v4576
      %v4578 = vpop.f32.mrf.mxu0
      %4579 = vmatprep.mubr.bf16.mxu0 %v3515
      %4580 = vmatmul.mubr.bf16.gmra.mxu0 %v3511
      %v4581 = vpop.f32.mrf.mxu0
      %v4582 = vadd.f32 %v4421, %v4581
      %v4583 = vpop.f32.mrf.mxu0
      %v4584 = vpop.f32.mrf.mxu0
      %v4585 = vadd.f32 %v4424, %v4584
      %v4586 = vpop.f32.mrf.mxu0
      %4587 = vdwg.mxu0
      %4588 = vmatprep.subr.bf16.mxu0 0
      %4589 = vmatpush1.bf16.msra.mxu0 %v4016
      %4590 = vmatprep.subr.bf16.mxu0 0
      %4591 = vmatpush1.bf16.msra.mxu0 %v4015
      %4592 = vmatprep.subr.bf16.mxu0 0
      %4593 = vmatpush1.bf16.msra.mxu0 %v4014
      %4594 = vmatprep.subr.bf16.mxu0 0
      %4595 = vmatpush1.bf16.msra.mxu0 %v4013
      %4596 = vmatprep.subr.bf16.mxu0 0
      %4597 = vmatpush1.bf16.msra.mxu0 %v4012
      %4598 = vmatprep.subr.bf16.mxu0 0
      %4599 = vmatpush1.bf16.msra.mxu0 %v4011
      %4600 = vmatprep.subr.bf16.mxu0 0
      %4601 = vmatpush1.bf16.msra.mxu0 %v4010
      %4602 = vmatprep.subr.bf16.mxu0 0
      %4603 = vmatpush1.bf16.msra.mxu0 %v4009
      %4604 = vmatprep.subr.bf16.mxu0 0
      %4605 = vmatpush2.bf16.msra.mxu0 %v4024
      %4606 = vmatprep.subr.bf16.mxu0 0
      %4607 = vmatpush2.bf16.msra.mxu0 %v4023
      %4608 = vmatprep.subr.bf16.mxu0 0
      %4609 = vmatpush2.bf16.msra.mxu0 %v4022
      %4610 = vmatprep.subr.bf16.mxu0 0
      %4611 = vmatpush2.bf16.msra.mxu0 %v4021
      %4612 = vmatprep.subr.bf16.mxu0 0
      %4613 = vmatpush2.bf16.msra.mxu0 %v4020
      %4614 = vmatprep.subr.bf16.mxu0 0
      %4615 = vmatpush2.bf16.msra.mxu0 %v4019
      %4616 = vmatprep.subr.bf16.mxu0 0
      %4617 = vmatpush2.bf16.msra.mxu0 %v4018
      %4618 = vmatprep.subr.bf16.mxu0 0
      %4619 = vmatpush2.bf16.msra.mxu0 %v4017
      %4620 = vmatprep.mubr.bf16.mxu0 %v3411
      %4621 = vmatmul.mubr.bf16.gmra.mxu0 %v3347
      %v4622 = vpop.f32.mrf.mxu0
      %v4623 = vadd.f32 %v4462, %v4622
      %v4624 = vpop.f32.mrf.mxu0
      %v4625 = vpop.f32.mrf.mxu0
      %v4626 = vadd.f32 %v4465, %v4625
      %v4627 = vpop.f32.mrf.mxu0
      %4628 = vmatprep.mubr.bf16.mxu0 %v3412
      %4629 = vmatmul.mubr.bf16.gmra.mxu0 %v3348
      %v4630 = vpop.f32.mrf.mxu0
      %v4631 = vadd.f32 %v4470, %v4630
      %v4632 = vpop.f32.mrf.mxu0
      %v4633 = vpop.f32.mrf.mxu0
      %v4634 = vadd.f32 %v4473, %v4633
      %v4635 = vpop.f32.mrf.mxu0
      %4636 = vmatprep.mubr.bf16.mxu0 %v3413
      %4637 = vmatmul.mubr.bf16.gmra.mxu0 %v3349
      %v4638 = vpop.f32.mrf.mxu0
      %v4639 = vadd.f32 %v4478, %v4638
      %v4640 = vpop.f32.mrf.mxu0
      %v4641 = vpop.f32.mrf.mxu0
      %v4642 = vadd.f32 %v4481, %v4641
      %v4643 = vpop.f32.mrf.mxu0
      %4644 = vmatprep.mubr.bf16.mxu0 %v3414
      %4645 = vmatmul.mubr.bf16.gmra.mxu0 %v3350
      %v4646 = vpop.f32.mrf.mxu0
      %v4647 = vadd.f32 %v4486, %v4646
      %v4648 = vpop.f32.mrf.mxu0
      %v4649 = vpop.f32.mrf.mxu0
      %v4650 = vadd.f32 %v4489, %v4649
      %v4651 = vpop.f32.mrf.mxu0
      %4652 = vmatprep.mubr.bf16.mxu0 %v3415
      %4653 = vmatmul.mubr.bf16.gmra.mxu0 %v3351
      %v4654 = vpop.f32.mrf.mxu0
      %v4655 = vadd.f32 %v4494, %v4654
      %v4656 = vpop.f32.mrf.mxu0
      %v4657 = vpop.f32.mrf.mxu0
      %v4658 = vadd.f32 %v4497, %v4657
      %v4659 = vpop.f32.mrf.mxu0
      %4660 = vmatprep.mubr.bf16.mxu0 %v3416
      %4661 = vmatmul.mubr.bf16.gmra.mxu0 %v3352
      %v4662 = vpop.f32.mrf.mxu0
      %v4663 = vadd.f32 %v4502, %v4662
      %v4664 = vpop.f32.mrf.mxu0
      %v4665 = vpop.f32.mrf.mxu0
      %v4666 = vadd.f32 %v4505, %v4665
      %v4667 = vpop.f32.mrf.mxu0
      %4668 = vmatprep.mubr.bf16.mxu0 %v3417
      %4669 = vmatmul.mubr.bf16.gmra.mxu0 %v3353
      %v4670 = vpop.f32.mrf.mxu0
      %v4671 = vadd.f32 %v4510, %v4670
      %v4672 = vpop.f32.mrf.mxu0
      %v4673 = vpop.f32.mrf.mxu0
      %v4674 = vadd.f32 %v4513, %v4673
      %v4675 = vpop.f32.mrf.mxu0
      %4676 = vmatprep.mubr.bf16.mxu0 %v3418
      %4677 = vmatmul.mubr.bf16.gmra.mxu0 %v3354
      %v4678 = vpop.f32.mrf.mxu0
      %v4679 = vadd.f32 %v4518, %v4678
      %v4680 = vpop.f32.mrf.mxu0
      %v4681 = vpop.f32.mrf.mxu0
      %v4682 = vadd.f32 %v4521, %v4681
      %v4683 = vpop.f32.mrf.mxu0
      %4684 = vmatprep.mubr.bf16.mxu0 %v3419
      %4685 = vmatmul.mubr.bf16.gmra.mxu0 %v3355
      %v4686 = vpop.f32.mrf.mxu0
      %v4687 = vadd.f32 %v4526, %v4686
      %v4688 = vpop.f32.mrf.mxu0
      %v4689 = vpop.f32.mrf.mxu0
      %v4690 = vadd.f32 %v4529, %v4689
      %v4691 = vpop.f32.mrf.mxu0
      %4692 = vmatprep.mubr.bf16.mxu0 %v3420
      %4693 = vmatmul.mubr.bf16.gmra.mxu0 %v3356
      %v4694 = vpop.f32.mrf.mxu0
      %v4695 = vadd.f32 %v4534, %v4694
      %v4696 = vpop.f32.mrf.mxu0
      %v4697 = vpop.f32.mrf.mxu0
      %v4698 = vadd.f32 %v4537, %v4697
      %v4699 = vpop.f32.mrf.mxu0
      %4700 = vmatprep.mubr.bf16.mxu0 %v3421
      %4701 = vmatmul.mubr.bf16.gmra.mxu0 %v3357
      %v4702 = vpop.f32.mrf.mxu0
      %v4703 = vadd.f32 %v4542, %v4702
      %v4704 = vpop.f32.mrf.mxu0
      %v4705 = vpop.f32.mrf.mxu0
      %v4706 = vadd.f32 %v4545, %v4705
      %v4707 = vpop.f32.mrf.mxu0
      %4708 = vmatprep.mubr.bf16.mxu0 %v3422
      %4709 = vmatmul.mubr.bf16.gmra.mxu0 %v3358
      %v4710 = vpop.f32.mrf.mxu0
      %v4711 = vadd.f32 %v4550, %v4710
      %v4712 = vpop.f32.mrf.mxu0
      %v4713 = vpop.f32.mrf.mxu0
      %v4714 = vadd.f32 %v4553, %v4713
      %v4715 = vpop.f32.mrf.mxu0
      %4716 = vmatprep.mubr.bf16.mxu0 %v3423
      %4717 = vmatmul.mubr.bf16.gmra.mxu0 %v3359
      %v4718 = vpop.f32.mrf.mxu0
      %v4719 = vadd.f32 %v4558, %v4718
      %v4720 = vpop.f32.mrf.mxu0
      %v4721 = vpop.f32.mrf.mxu0
      %v4722 = vadd.f32 %v4561, %v4721
      %v4723 = vpop.f32.mrf.mxu0
      %4724 = vmatprep.mubr.bf16.mxu0 %v3424
      %4725 = vmatmul.mubr.bf16.gmra.mxu0 %v3360
      %v4726 = vpop.f32.mrf.mxu0
      %v4727 = vadd.f32 %v4566, %v4726
      %v4728 = vpop.f32.mrf.mxu0
      %v4729 = vpop.f32.mrf.mxu0
      %v4730 = vadd.f32 %v4569, %v4729
      %v4731 = vpop.f32.mrf.mxu0
      %4732 = vmatprep.mubr.bf16.mxu0 %v3511
      %4733 = vmatmul.mubr.bf16.gmra.mxu0 %v3507
      %v4734 = vpop.f32.mrf.mxu0
      %v4735 = vadd.f32 %v4574, %v4734
      %v4736 = vpop.f32.mrf.mxu0
      %v4737 = vpop.f32.mrf.mxu0
      %v4738 = vadd.f32 %v4577, %v4737
      %v4739 = vpop.f32.mrf.mxu0
      %4740 = vmatprep.mubr.bf16.mxu0 %v3523
      %4741 = vmatmul.mubr.bf16.gmra.mxu0 %v3519
      %v4742 = vpop.f32.mrf.mxu0
      %v4743 = vadd.f32 %v4582, %v4742
      %v4744 = vpop.f32.mrf.mxu0
      %v4745 = vpop.f32.mrf.mxu0
      %v4746 = vadd.f32 %v4585, %v4745
      %v4747 = vpop.f32.mrf.mxu0
      %4748 = vdwg.mxu0
      %4749 = vmatprep.subr.bf16.mxu0 0
      %4750 = vmatpush1.bf16.msra.mxu0 %v4032
      %4751 = vmatprep.subr.bf16.mxu0 0
      %4752 = vmatpush1.bf16.msra.mxu0 %v4031
      %4753 = vmatprep.subr.bf16.mxu0 0
      %4754 = vmatpush1.bf16.msra.mxu0 %v4030
      %4755 = vmatprep.subr.bf16.mxu0 0
      %4756 = vmatpush1.bf16.msra.mxu0 %v4029
      %4757 = vmatprep.subr.bf16.mxu0 0
      %4758 = vmatpush1.bf16.msra.mxu0 %v4028
      %4759 = vmatprep.subr.bf16.mxu0 0
      %4760 = vmatpush1.bf16.msra.mxu0 %v4027
      %4761 = vmatprep.subr.bf16.mxu0 0
      %4762 = vmatpush1.bf16.msra.mxu0 %v4026
      %4763 = vmatprep.subr.bf16.mxu0 0
      %4764 = vmatpush1.bf16.msra.mxu0 %v4025
      %4765 = vmatprep.subr.bf16.mxu0 0
      %4766 = vmatpush2.bf16.msra.mxu0 0
      %4767 = vmatprep.subr.bf16.mxu0 0
      %4768 = vmatpush2.bf16.msra.mxu0 0
      %4769 = vmatprep.subr.bf16.mxu0 0
      %4770 = vmatpush2.bf16.msra.mxu0 0
      %4771 = vmatprep.subr.bf16.mxu0 0
      %4772 = vmatpush2.bf16.msra.mxu0 0
      %4773 = vmatprep.subr.bf16.mxu0 0
      %4774 = vmatpush2.bf16.msra.mxu0 0
      %4775 = vmatprep.subr.bf16.mxu0 0
      %4776 = vmatpush2.bf16.msra.mxu0 0
      %4777 = vmatprep.subr.bf16.mxu0 0
      %4778 = vmatpush2.bf16.msra.mxu0 0
      %4779 = vmatprep.subr.bf16.mxu0 0
      %4780 = vmatpush2.bf16.msra.mxu0 0
      %4781 = vmatprep.mubr.bf16.mxu0 0
      %4782 = vmatmul.mubr.bf16.gmra.mxu0 %v3475
      %v4783 = vpop.f32.mrf.mxu0
      %v4784 = vadd.f32 %v4623, %v4783
      %v4785 = vpop.f32.mrf.mxu0
      %v4786 = vpop.f32.mrf.mxu0
      %v4787 = vadd.f32 %v4626, %v4786
      %v4788 = vpop.f32.mrf.mxu0
      %4789 = vmatprep.mubr.bf16.mxu0 0
      %4790 = vmatmul.mubr.bf16.gmra.mxu0 %v3476
      %v4791 = vpop.f32.mrf.mxu0
      %v4792 = vadd.f32 %v4631, %v4791
      %v4793 = vpop.f32.mrf.mxu0
      %v4794 = vpop.f32.mrf.mxu0
      %v4795 = vadd.f32 %v4634, %v4794
      %v4796 = vpop.f32.mrf.mxu0
      %4797 = vmatprep.mubr.bf16.mxu0 0
      %4798 = vmatmul.mubr.bf16.gmra.mxu0 %v3477
      %v4799 = vpop.f32.mrf.mxu0
      %v4800 = vadd.f32 %v4639, %v4799
      %v4801 = vpop.f32.mrf.mxu0
      %v4802 = vpop.f32.mrf.mxu0
      %v4803 = vadd.f32 %v4642, %v4802
      %v4804 = vpop.f32.mrf.mxu0
      %4805 = vmatprep.mubr.bf16.mxu0 0
      %4806 = vmatmul.mubr.bf16.gmra.mxu0 %v3478
      %v4807 = vpop.f32.mrf.mxu0
      %v4808 = vadd.f32 %v4647, %v4807
      %v4809 = vpop.f32.mrf.mxu0
      %v4810 = vpop.f32.mrf.mxu0
      %v4811 = vadd.f32 %v4650, %v4810
      %v4812 = vpop.f32.mrf.mxu0
      %4813 = vmatprep.mubr.bf16.mxu0 0
      %4814 = vmatmul.mubr.bf16.gmra.mxu0 %v3479
      %v4815 = vpop.f32.mrf.mxu0
      %v4816 = vadd.f32 %v4655, %v4815
      %v4817 = vpop.f32.mrf.mxu0
      %v4818 = vpop.f32.mrf.mxu0
      %v4819 = vadd.f32 %v4658, %v4818
      %v4820 = vpop.f32.mrf.mxu0
      %4821 = vmatprep.mubr.bf16.mxu0 0
      %4822 = vmatmul.mubr.bf16.gmra.mxu0 %v3480
      %v4823 = vpop.f32.mrf.mxu0
      %v4824 = vadd.f32 %v4663, %v4823
      %v4825 = vpop.f32.mrf.mxu0
      %v4826 = vpop.f32.mrf.mxu0
      %v4827 = vadd.f32 %v4666, %v4826
      %v4828 = vpop.f32.mrf.mxu0
      %4829 = vmatprep.mubr.bf16.mxu0 0
      %4830 = vmatmul.mubr.bf16.gmra.mxu0 %v3481
      %v4831 = vpop.f32.mrf.mxu0
      %v4832 = vadd.f32 %v4671, %v4831
      %v4833 = vpop.f32.mrf.mxu0
      %v4834 = vpop.f32.mrf.mxu0
      %v4835 = vadd.f32 %v4674, %v4834
      %v4836 = vpop.f32.mrf.mxu0
      %4837 = vmatprep.mubr.bf16.mxu0 0
      %4838 = vmatmul.mubr.bf16.gmra.mxu0 %v3482
      %v4839 = vpop.f32.mrf.mxu0
      %v4840 = vadd.f32 %v4679, %v4839
      %v4841 = vpop.f32.mrf.mxu0
      %v4842 = vpop.f32.mrf.mxu0
      %v4843 = vadd.f32 %v4682, %v4842
      %v4844 = vpop.f32.mrf.mxu0
      %4845 = vmatprep.mubr.bf16.mxu0 0
      %4846 = vmatmul.mubr.bf16.gmra.mxu0 %v3483
      %v4847 = vpop.f32.mrf.mxu0
      %v4848 = vadd.f32 %v4687, %v4847
      %v4849 = vpop.f32.mrf.mxu0
      %v4850 = vpop.f32.mrf.mxu0
      %v4851 = vadd.f32 %v4690, %v4850
      %v4852 = vpop.f32.mrf.mxu0
      %4853 = vmatprep.mubr.bf16.mxu0 0
      %4854 = vmatmul.mubr.bf16.gmra.mxu0 %v3484
      %v4855 = vpop.f32.mrf.mxu0
      %v4856 = vadd.f32 %v4695, %v4855
      %v4857 = vpop.f32.mrf.mxu0
      %v4858 = vpop.f32.mrf.mxu0
      %v4859 = vadd.f32 %v4698, %v4858
      %v4860 = vpop.f32.mrf.mxu0
      %4861 = vmatprep.mubr.bf16.mxu0 0
      %4862 = vmatmul.mubr.bf16.gmra.mxu0 %v3485
      %v4863 = vpop.f32.mrf.mxu0
      %v4864 = vadd.f32 %v4703, %v4863
      %v4865 = vpop.f32.mrf.mxu0
      %v4866 = vpop.f32.mrf.mxu0
      %v4867 = vadd.f32 %v4706, %v4866
      %v4868 = vpop.f32.mrf.mxu0
      %4869 = vmatprep.mubr.bf16.mxu0 0
      %4870 = vmatmul.mubr.bf16.gmra.mxu0 %v3486
      %v4871 = vpop.f32.mrf.mxu0
      %v4872 = vadd.f32 %v4711, %v4871
      %v4873 = vpop.f32.mrf.mxu0
      %v4874 = vpop.f32.mrf.mxu0
      %v4875 = vadd.f32 %v4714, %v4874
      %v4876 = vpop.f32.mrf.mxu0
      %4877 = vmatprep.mubr.bf16.mxu0 0
      %4878 = vmatmul.mubr.bf16.gmra.mxu0 %v3487
      %v4879 = vpop.f32.mrf.mxu0
      %v4880 = vadd.f32 %v4719, %v4879
      %v4881 = vpop.f32.mrf.mxu0
      %v4882 = vpop.f32.mrf.mxu0
      %v4883 = vadd.f32 %v4722, %v4882
      %v4884 = vpop.f32.mrf.mxu0
      %4885 = vmatprep.mubr.bf16.mxu0 0
      %4886 = vmatmul.mubr.bf16.gmra.mxu0 %v3488
      %v4887 = vpop.f32.mrf.mxu0
      %v4888 = vadd.f32 %v4727, %v4887
      %v4889 = vpop.f32.mrf.mxu0
      %v4890 = vpop.f32.mrf.mxu0
      %v4891 = vadd.f32 %v4730, %v4890
      %v4892 = vpop.f32.mrf.mxu0
      %4893 = vmatprep.mubr.bf16.mxu0 0
      %4894 = vmatmul.mubr.bf16.gmra.mxu0 %v3515
      %v4895 = vpop.f32.mrf.mxu0
      %v4896 = vadd.f32 %v4735, %v4895
      %v4897 = vpop.f32.mrf.mxu0
      %v4898 = vpop.f32.mrf.mxu0
      %v4899 = vadd.f32 %v4738, %v4898
      %v4900 = vpop.f32.mrf.mxu0
      %4901 = vmatprep.mubr.bf16.mxu0 0
      %4902 = vmatmul.mubr.bf16.gmra.mxu0 %v3527
      %v4903 = vpop.f32.mrf.mxu0
      %v4904 = vadd.f32 %v4743, %v4903
      %v4905 = vpop.f32.mrf.mxu0
      %v4906 = vpop.f32.mrf.mxu0
      %v4907 = vadd.f32 %v4746, %v4906
      %v4908 = vpop.f32.mrf.mxu0
      %4909 = vdwg.mxu0
      %v4910 = vld [vmem:[%s5] sm:$0x1]
      %v4912 = vlaneseq
      %v4913 = vshrl.u32 %v4912, 7
      %v4914 = vsub.s32 0, %v4913
      %v4915 = vrot.slane %v4910, %v4914
      %v4917 = vmul.f32 %v4784, %v4915
      %v4918 = vmul.f32 %v4787, %v4915
      %v4919 = vmul.f32 %v4792, %v4915
      %v4920 = vmul.f32 %v4795, %v4915
      %v4921 = vmul.f32 %v4800, %v4915
      %v4922 = vmul.f32 %v4803, %v4915
      %v4923 = vmul.f32 %v4808, %v4915
      %v4924 = vmul.f32 %v4811, %v4915
      %v4925 = vmul.f32 %v4816, %v4915
      %v4926 = vmul.f32 %v4819, %v4915
      %v4927 = vmul.f32 %v4824, %v4915
      %v4928 = vmul.f32 %v4827, %v4915
      %v4929 = vmul.f32 %v4832, %v4915
      %v4930 = vmul.f32 %v4835, %v4915
      %v4931 = vmul.f32 %v4840, %v4915
      %v4932 = vmul.f32 %v4843, %v4915
      %v4933 = vmul.f32 %v4848, %v4915
      %v4934 = vmul.f32 %v4851, %v4915
      %v4935 = vmul.f32 %v4856, %v4915
      %v4936 = vmul.f32 %v4859, %v4915
      %v4937 = vmul.f32 %v4864, %v4915
      %v4938 = vmul.f32 %v4867, %v4915
      %v4939 = vmul.f32 %v4872, %v4915
      %v4940 = vmul.f32 %v4875, %v4915
      %v4941 = vmul.f32 %v4880, %v4915
      %v4942 = vmul.f32 %v4883, %v4915
      %v4943 = vmul.f32 %v4888, %v4915
      %v4944 = vmul.f32 %v4891, %v4915
      %v4945 = vmul.f32 %v4896, %v4915
      %v4946 = vmul.f32 %v4899, %v4915
      %v4947 = vmul.f32 %v4904, %v4915
      %v4948 = vmul.f32 %v4907, %v4915
      %v4949 = vld [vmem:[%s6] sm:$0x1]
      %v4951 = vlaneseq
      %v4952 = vshrl.u32 %v4951, 7
      %v4953 = vsub.s32 0, %v4952
      %v4954 = vrot.slane %v4949, %v4953
      %v4956 = vadd.f32 %v4917, %v4954
      %v4957 = vadd.f32 %v4918, %v4954
      %v4958 = vadd.f32 %v4919, %v4954
      %v4959 = vadd.f32 %v4920, %v4954
      %v4960 = vadd.f32 %v4921, %v4954
      %v4961 = vadd.f32 %v4922, %v4954
      %v4962 = vadd.f32 %v4923, %v4954
      %v4963 = vadd.f32 %v4924, %v4954
      %v4964 = vadd.f32 %v4925, %v4954
      %v4965 = vadd.f32 %v4926, %v4954
      %v4966 = vadd.f32 %v4927, %v4954
      %v4967 = vadd.f32 %v4928, %v4954
      %v4968 = vadd.f32 %v4929, %v4954
      %v4969 = vadd.f32 %v4930, %v4954
      %v4970 = vadd.f32 %v4931, %v4954
      %v4971 = vadd.f32 %v4932, %v4954
      %v4972 = vadd.f32 %v4933, %v4954
      %v4973 = vadd.f32 %v4934, %v4954
      %v4974 = vadd.f32 %v4935, %v4954
      %v4975 = vadd.f32 %v4936, %v4954
      %v4976 = vadd.f32 %v4937, %v4954
      %v4977 = vadd.f32 %v4938, %v4954
      %v4978 = vadd.f32 %v4939, %v4954
      %v4979 = vadd.f32 %v4940, %v4954
      %v4980 = vadd.f32 %v4941, %v4954
      %v4981 = vadd.f32 %v4942, %v4954
      %v4982 = vadd.f32 %v4943, %v4954
      %v4983 = vadd.f32 %v4944, %v4954
      %v4984 = vadd.f32 %v4945, %v4954
      %v4985 = vadd.f32 %v4946, %v4954
      %v4986 = vadd.f32 %v4947, %v4954
      %v4987 = vadd.f32 %v4948, %v4954
      %v4988 = vmax.f32 %v4956, 0.0
      %v4989 = vmax.f32 %v4957, 0.0
      %v4990 = vmax.f32 %v4958, 0.0
      %v4991 = vmax.f32 %v4959, 0.0
      %v4992 = vmax.f32 %v4960, 0.0
      %v4993 = vmax.f32 %v4961, 0.0
      %v4994 = vmax.f32 %v4962, 0.0
      %v4995 = vmax.f32 %v4963, 0.0
      %v4996 = vmax.f32 %v4964, 0.0
      %v4997 = vmax.f32 %v4965, 0.0
      %v4998 = vmax.f32 %v4966, 0.0
      %v4999 = vmax.f32 %v4967, 0.0
      %v5000 = vmax.f32 %v4968, 0.0
      %v5001 = vmax.f32 %v4969, 0.0
      %v5002 = vmax.f32 %v4970, 0.0
      %v5003 = vmax.f32 %v4971, 0.0
      %v5004 = vmax.f32 %v4972, 0.0
      %v5005 = vmax.f32 %v4973, 0.0
      %v5006 = vmax.f32 %v4974, 0.0
      %v5007 = vmax.f32 %v4975, 0.0
      %v5008 = vmax.f32 %v4976, 0.0
      %v5009 = vmax.f32 %v4977, 0.0
      %v5010 = vmax.f32 %v4978, 0.0
      %v5011 = vmax.f32 %v4979, 0.0
      %v5012 = vmax.f32 %v4980, 0.0
      %v5013 = vmax.f32 %v4981, 0.0
      %v5014 = vmax.f32 %v4982, 0.0
      %v5015 = vmax.f32 %v4983, 0.0
      %v5016 = vmax.f32 %v4984, 0.0
      %v5017 = vmax.f32 %v4985, 0.0
      %v5018 = vmax.f32 %v4986, 0.0
      %v5019 = vmax.f32 %v4987, 0.0
      %v5052 = vcombine.high %v4988, %v4988
      %v5054 = vunpack.c.l.s4 1983009808
      %v5055 = vunpack.c.0.s8 %v5054
      %v5056 = vlaneseq
      %v5057 = vshrl.u32 %v5056, 7
      %v5058 = vsub.s32 %v5055, %v5057
      %v5059 = vrot.slane %v4988, %v5058
      %v5061 = vunpack.c.l.s4 1983009808
      %v5062 = vunpack.c.0.s8 %v5061
      %v5063 = vlaneseq
      %v5064 = vshrl.u32 %v5063, 7
      %v5065 = vsub.s32 %v5062, %v5064
      %v5066 = vrot.slane %v5052, %v5065
      %v5067 = vcombine.high %v5059, %v5059
      %v5068 = vcombine.high %v5066, %v5066
      %v5069 = vcombine.high %v4989, %v4989
      %v5071 = vunpack.c.l.s4 1983009808
      %v5072 = vunpack.c.0.s8 %v5071
      %v5073 = vlaneseq
      %v5074 = vshrl.u32 %v5073, 7
      %v5075 = vsub.s32 %v5072, %v5074
      %v5076 = vrot.slane %v4989, %v5075
      %v5078 = vunpack.c.l.s4 1983009808
      %v5079 = vunpack.c.0.s8 %v5078
      %v5080 = vlaneseq
      %v5081 = vshrl.u32 %v5080, 7
      %v5082 = vsub.s32 %v5079, %v5081
      %v5083 = vrot.slane %v5069, %v5082
      %v5084 = vcombine.high %v5076, %v5076
      %v5085 = vcombine.high %v5083, %v5083
      %v5086 = vcombine.high %v4990, %v4990
      %v5088 = vunpack.c.l.s4 1983009808
      %v5089 = vunpack.c.0.s8 %v5088
      %v5090 = vlaneseq
      %v5091 = vshrl.u32 %v5090, 7
      %v5092 = vsub.s32 %v5089, %v5091
      %v5093 = vrot.slane %v4990, %v5092
      %v5095 = vunpack.c.l.s4 1983009808
      %v5096 = vunpack.c.0.s8 %v5095
      %v5097 = vlaneseq
      %v5098 = vshrl.u32 %v5097, 7
      %v5099 = vsub.s32 %v5096, %v5098
      %v5100 = vrot.slane %v5086, %v5099
      %v5101 = vcombine.high %v5093, %v5093
      %v5102 = vcombine.high %v5100, %v5100
      %v5103 = vcombine.high %v4991, %v4991
      %v5105 = vunpack.c.l.s4 1983009808
      %v5106 = vunpack.c.0.s8 %v5105
      %v5107 = vlaneseq
      %v5108 = vshrl.u32 %v5107, 7
      %v5109 = vsub.s32 %v5106, %v5108
      %v5110 = vrot.slane %v4991, %v5109
      %v5112 = vunpack.c.l.s4 1983009808
      %v5113 = vunpack.c.0.s8 %v5112
      %v5114 = vlaneseq
      %v5115 = vshrl.u32 %v5114, 7
      %v5116 = vsub.s32 %v5113, %v5115
      %v5117 = vrot.slane %v5103, %v5116
      %v5118 = vcombine.high %v5110, %v5110
      %v5119 = vcombine.high %v5117, %v5117
      %v5120 = vcombine.high %v4992, %v4992
      %v5122 = vunpack.c.l.s4 1983009808
      %v5123 = vunpack.c.0.s8 %v5122
      %v5124 = vlaneseq
      %v5125 = vshrl.u32 %v5124, 7
      %v5126 = vsub.s32 %v5123, %v5125
      %v5127 = vrot.slane %v4992, %v5126
      %v5129 = vunpack.c.l.s4 1983009808
      %v5130 = vunpack.c.0.s8 %v5129
      %v5131 = vlaneseq
      %v5132 = vshrl.u32 %v5131, 7
      %v5133 = vsub.s32 %v5130, %v5132
      %v5134 = vrot.slane %v5120, %v5133
      %v5135 = vcombine.high %v5127, %v5127
      %v5136 = vcombine.high %v5134, %v5134
      %v5137 = vcombine.high %v4993, %v4993
      %v5139 = vunpack.c.l.s4 1983009808
      %v5140 = vunpack.c.0.s8 %v5139
      %v5141 = vlaneseq
      %v5142 = vshrl.u32 %v5141, 7
      %v5143 = vsub.s32 %v5140, %v5142
      %v5144 = vrot.slane %v4993, %v5143
      %v5146 = vunpack.c.l.s4 1983009808
      %v5147 = vunpack.c.0.s8 %v5146
      %v5148 = vlaneseq
      %v5149 = vshrl.u32 %v5148, 7
      %v5150 = vsub.s32 %v5147, %v5149
      %v5151 = vrot.slane %v5137, %v5150
      %v5152 = vcombine.high %v5144, %v5144
      %v5153 = vcombine.high %v5151, %v5151
      %v5154 = vcombine.high %v4994, %v4994
      %v5156 = vunpack.c.l.s4 1983009808
      %v5157 = vunpack.c.0.s8 %v5156
      %v5158 = vlaneseq
      %v5159 = vshrl.u32 %v5158, 7
      %v5160 = vsub.s32 %v5157, %v5159
      %v5161 = vrot.slane %v4994, %v5160
      %v5163 = vunpack.c.l.s4 1983009808
      %v5164 = vunpack.c.0.s8 %v5163
      %v5165 = vlaneseq
      %v5166 = vshrl.u32 %v5165, 7
      %v5167 = vsub.s32 %v5164, %v5166
      %v5168 = vrot.slane %v5154, %v5167
      %v5169 = vcombine.high %v5161, %v5161
      %v5170 = vcombine.high %v5168, %v5168
      %v5171 = vcombine.high %v4995, %v4995
      %v5173 = vunpack.c.l.s4 1983009808
      %v5174 = vunpack.c.0.s8 %v5173
      %v5175 = vlaneseq
      %v5176 = vshrl.u32 %v5175, 7
      %v5177 = vsub.s32 %v5174, %v5176
      %v5178 = vrot.slane %v4995, %v5177
      %v5180 = vunpack.c.l.s4 1983009808
      %v5181 = vunpack.c.0.s8 %v5180
      %v5182 = vlaneseq
      %v5183 = vshrl.u32 %v5182, 7
      %v5184 = vsub.s32 %v5181, %v5183
      %v5185 = vrot.slane %v5171, %v5184
      %v5186 = vcombine.high %v5178, %v5178
      %v5187 = vcombine.high %v5185, %v5185
      %v5188 = vcombine.high %v4996, %v4996
      %v5190 = vunpack.c.l.s4 1983009808
      %v5191 = vunpack.c.0.s8 %v5190
      %v5192 = vlaneseq
      %v5193 = vshrl.u32 %v5192, 7
      %v5194 = vsub.s32 %v5191, %v5193
      %v5195 = vrot.slane %v4996, %v5194
      %v5197 = vunpack.c.l.s4 1983009808
      %v5198 = vunpack.c.0.s8 %v5197
      %v5199 = vlaneseq
      %v5200 = vshrl.u32 %v5199, 7
      %v5201 = vsub.s32 %v5198, %v5200
      %v5202 = vrot.slane %v5188, %v5201
      %v5203 = vcombine.high %v5195, %v5195
      %v5204 = vcombine.high %v5202, %v5202
      %v5205 = vcombine.high %v4997, %v4997
      %v5207 = vunpack.c.l.s4 1983009808
      %v5208 = vunpack.c.0.s8 %v5207
      %v5209 = vlaneseq
      %v5210 = vshrl.u32 %v5209, 7
      %v5211 = vsub.s32 %v5208, %v5210
      %v5212 = vrot.slane %v4997, %v5211
      %v5214 = vunpack.c.l.s4 1983009808
      %v5215 = vunpack.c.0.s8 %v5214
      %v5216 = vlaneseq
      %v5217 = vshrl.u32 %v5216, 7
      %v5218 = vsub.s32 %v5215, %v5217
      %v5219 = vrot.slane %v5205, %v5218
      %v5220 = vcombine.high %v5212, %v5212
      %v5221 = vcombine.high %v5219, %v5219
      %v5222 = vcombine.high %v4998, %v4998
      %v5224 = vunpack.c.l.s4 1983009808
      %v5225 = vunpack.c.0.s8 %v5224
      %v5226 = vlaneseq
      %v5227 = vshrl.u32 %v5226, 7
      %v5228 = vsub.s32 %v5225, %v5227
      %v5229 = vrot.slane %v4998, %v5228
      %v5231 = vunpack.c.l.s4 1983009808
      %v5232 = vunpack.c.0.s8 %v5231
      %v5233 = vlaneseq
      %v5234 = vshrl.u32 %v5233, 7
      %v5235 = vsub.s32 %v5232, %v5234
      %v5236 = vrot.slane %v5222, %v5235
      %v5237 = vcombine.high %v5229, %v5229
      %v5238 = vcombine.high %v5236, %v5236
      %v5239 = vcombine.high %v4999, %v4999
      %v5241 = vunpack.c.l.s4 1983009808
      %v5242 = vunpack.c.0.s8 %v5241
      %v5243 = vlaneseq
      %v5244 = vshrl.u32 %v5243, 7
      %v5245 = vsub.s32 %v5242, %v5244
      %v5246 = vrot.slane %v4999, %v5245
      %v5248 = vunpack.c.l.s4 1983009808
      %v5249 = vunpack.c.0.s8 %v5248
      %v5250 = vlaneseq
      %v5251 = vshrl.u32 %v5250, 7
      %v5252 = vsub.s32 %v5249, %v5251
      %v5253 = vrot.slane %v5239, %v5252
      %v5254 = vcombine.high %v5246, %v5246
      %v5255 = vcombine.high %v5253, %v5253
      %v5256 = vcombine.high %v5000, %v5000
      %v5258 = vunpack.c.l.s4 1983009808
      %v5259 = vunpack.c.0.s8 %v5258
      %v5260 = vlaneseq
      %v5261 = vshrl.u32 %v5260, 7
      %v5262 = vsub.s32 %v5259, %v5261
      %v5263 = vrot.slane %v5000, %v5262
      %v5265 = vunpack.c.l.s4 1983009808
      %v5266 = vunpack.c.0.s8 %v5265
      %v5267 = vlaneseq
      %v5268 = vshrl.u32 %v5267, 7
      %v5269 = vsub.s32 %v5266, %v5268
      %v5270 = vrot.slane %v5256, %v5269
      %v5271 = vcombine.high %v5263, %v5263
      %v5272 = vcombine.high %v5270, %v5270
      %v5273 = vcombine.high %v5001, %v5001
      %v5275 = vunpack.c.l.s4 1983009808
      %v5276 = vunpack.c.0.s8 %v5275
      %v5277 = vlaneseq
      %v5278 = vshrl.u32 %v5277, 7
      %v5279 = vsub.s32 %v5276, %v5278
      %v5280 = vrot.slane %v5001, %v5279
      %v5282 = vunpack.c.l.s4 1983009808
      %v5283 = vunpack.c.0.s8 %v5282
      %v5284 = vlaneseq
      %v5285 = vshrl.u32 %v5284, 7
      %v5286 = vsub.s32 %v5283, %v5285
      %v5287 = vrot.slane %v5273, %v5286
      %v5288 = vcombine.high %v5280, %v5280
      %v5289 = vcombine.high %v5287, %v5287
      %v5290 = vcombine.high %v5002, %v5002
      %v5292 = vunpack.c.l.s4 1983009808
      %v5293 = vunpack.c.0.s8 %v5292
      %v5294 = vlaneseq
      %v5295 = vshrl.u32 %v5294, 7
      %v5296 = vsub.s32 %v5293, %v5295
      %v5297 = vrot.slane %v5002, %v5296
      %v5299 = vunpack.c.l.s4 1983009808
      %v5300 = vunpack.c.0.s8 %v5299
      %v5301 = vlaneseq
      %v5302 = vshrl.u32 %v5301, 7
      %v5303 = vsub.s32 %v5300, %v5302
      %v5304 = vrot.slane %v5290, %v5303
      %v5305 = vcombine.high %v5297, %v5297
      %v5306 = vcombine.high %v5304, %v5304
      %v5307 = vcombine.high %v5003, %v5003
      %v5309 = vunpack.c.l.s4 1983009808
      %v5310 = vunpack.c.0.s8 %v5309
      %v5311 = vlaneseq
      %v5312 = vshrl.u32 %v5311, 7
      %v5313 = vsub.s32 %v5310, %v5312
      %v5314 = vrot.slane %v5003, %v5313
      %v5316 = vunpack.c.l.s4 1983009808
      %v5317 = vunpack.c.0.s8 %v5316
      %v5318 = vlaneseq
      %v5319 = vshrl.u32 %v5318, 7
      %v5320 = vsub.s32 %v5317, %v5319
      %v5321 = vrot.slane %v5307, %v5320
      %v5322 = vcombine.high %v5314, %v5314
      %v5323 = vcombine.high %v5321, %v5321
      %v5324 = vcombine.high %v5004, %v5004
      %v5326 = vunpack.c.l.s4 1983009808
      %v5327 = vunpack.c.0.s8 %v5326
      %v5328 = vlaneseq
      %v5329 = vshrl.u32 %v5328, 7
      %v5330 = vsub.s32 %v5327, %v5329
      %v5331 = vrot.slane %v5004, %v5330
      %v5333 = vunpack.c.l.s4 1983009808
      %v5334 = vunpack.c.0.s8 %v5333
      %v5335 = vlaneseq
      %v5336 = vshrl.u32 %v5335, 7
      %v5337 = vsub.s32 %v5334, %v5336
      %v5338 = vrot.slane %v5324, %v5337
      %v5339 = vcombine.high %v5331, %v5331
      %v5340 = vcombine.high %v5338, %v5338
      %v5341 = vcombine.high %v5005, %v5005
      %v5343 = vunpack.c.l.s4 1983009808
      %v5344 = vunpack.c.0.s8 %v5343
      %v5345 = vlaneseq
      %v5346 = vshrl.u32 %v5345, 7
      %v5347 = vsub.s32 %v5344, %v5346
      %v5348 = vrot.slane %v5005, %v5347
      %v5350 = vunpack.c.l.s4 1983009808
      %v5351 = vunpack.c.0.s8 %v5350
      %v5352 = vlaneseq
      %v5353 = vshrl.u32 %v5352, 7
      %v5354 = vsub.s32 %v5351, %v5353
      %v5355 = vrot.slane %v5341, %v5354
      %v5356 = vcombine.high %v5348, %v5348
      %v5357 = vcombine.high %v5355, %v5355
      %v5358 = vcombine.high %v5006, %v5006
      %v5360 = vunpack.c.l.s4 1983009808
      %v5361 = vunpack.c.0.s8 %v5360
      %v5362 = vlaneseq
      %v5363 = vshrl.u32 %v5362, 7
      %v5364 = vsub.s32 %v5361, %v5363
      %v5365 = vrot.slane %v5006, %v5364
      %v5367 = vunpack.c.l.s4 1983009808
      %v5368 = vunpack.c.0.s8 %v5367
      %v5369 = vlaneseq
      %v5370 = vshrl.u32 %v5369, 7
      %v5371 = vsub.s32 %v5368, %v5370
      %v5372 = vrot.slane %v5358, %v5371
      %v5373 = vcombine.high %v5365, %v5365
      %v5374 = vcombine.high %v5372, %v5372
      %v5375 = vcombine.high %v5007, %v5007
      %v5377 = vunpack.c.l.s4 1983009808
      %v5378 = vunpack.c.0.s8 %v5377
      %v5379 = vlaneseq
      %v5380 = vshrl.u32 %v5379, 7
      %v5381 = vsub.s32 %v5378, %v5380
      %v5382 = vrot.slane %v5007, %v5381
      %v5384 = vunpack.c.l.s4 1983009808
      %v5385 = vunpack.c.0.s8 %v5384
      %v5386 = vlaneseq
      %v5387 = vshrl.u32 %v5386, 7
      %v5388 = vsub.s32 %v5385, %v5387
      %v5389 = vrot.slane %v5375, %v5388
      %v5390 = vcombine.high %v5382, %v5382
      %v5391 = vcombine.high %v5389, %v5389
      %v5392 = vcombine.high %v5008, %v5008
      %v5394 = vunpack.c.l.s4 1983009808
      %v5395 = vunpack.c.0.s8 %v5394
      %v5396 = vlaneseq
      %v5397 = vshrl.u32 %v5396, 7
      %v5398 = vsub.s32 %v5395, %v5397
      %v5399 = vrot.slane %v5008, %v5398
      %v5401 = vunpack.c.l.s4 1983009808
      %v5402 = vunpack.c.0.s8 %v5401
      %v5403 = vlaneseq
      %v5404 = vshrl.u32 %v5403, 7
      %v5405 = vsub.s32 %v5402, %v5404
      %v5406 = vrot.slane %v5392, %v5405
      %v5407 = vcombine.high %v5399, %v5399
      %v5408 = vcombine.high %v5406, %v5406
      %v5409 = vcombine.high %v5009, %v5009
      %v5411 = vunpack.c.l.s4 1983009808
      %v5412 = vunpack.c.0.s8 %v5411
      %v5413 = vlaneseq
      %v5414 = vshrl.u32 %v5413, 7
      %v5415 = vsub.s32 %v5412, %v5414
      %v5416 = vrot.slane %v5009, %v5415
      %v5418 = vunpack.c.l.s4 1983009808
      %v5419 = vunpack.c.0.s8 %v5418
      %v5420 = vlaneseq
      %v5421 = vshrl.u32 %v5420, 7
      %v5422 = vsub.s32 %v5419, %v5421
      %v5423 = vrot.slane %v5409, %v5422
      %v5424 = vcombine.high %v5416, %v5416
      %v5425 = vcombine.high %v5423, %v5423
      %v5426 = vcombine.high %v5010, %v5010
      %v5428 = vunpack.c.l.s4 1983009808
      %v5429 = vunpack.c.0.s8 %v5428
      %v5430 = vlaneseq
      %v5431 = vshrl.u32 %v5430, 7
      %v5432 = vsub.s32 %v5429, %v5431
      %v5433 = vrot.slane %v5010, %v5432
      %v5435 = vunpack.c.l.s4 1983009808
      %v5436 = vunpack.c.0.s8 %v5435
      %v5437 = vlaneseq
      %v5438 = vshrl.u32 %v5437, 7
      %v5439 = vsub.s32 %v5436, %v5438
      %v5440 = vrot.slane %v5426, %v5439
      %v5441 = vcombine.high %v5433, %v5433
      %v5442 = vcombine.high %v5440, %v5440
      %v5443 = vcombine.high %v5011, %v5011
      %v5445 = vunpack.c.l.s4 1983009808
      %v5446 = vunpack.c.0.s8 %v5445
      %v5447 = vlaneseq
      %v5448 = vshrl.u32 %v5447, 7
      %v5449 = vsub.s32 %v5446, %v5448
      %v5450 = vrot.slane %v5011, %v5449
      %v5452 = vunpack.c.l.s4 1983009808
      %v5453 = vunpack.c.0.s8 %v5452
      %v5454 = vlaneseq
      %v5455 = vshrl.u32 %v5454, 7
      %v5456 = vsub.s32 %v5453, %v5455
      %v5457 = vrot.slane %v5443, %v5456
      %v5458 = vcombine.high %v5450, %v5450
      %v5459 = vcombine.high %v5457, %v5457
      %v5460 = vcombine.high %v5012, %v5012
      %v5462 = vunpack.c.l.s4 1983009808
      %v5463 = vunpack.c.0.s8 %v5462
      %v5464 = vlaneseq
      %v5465 = vshrl.u32 %v5464, 7
      %v5466 = vsub.s32 %v5463, %v5465
      %v5467 = vrot.slane %v5012, %v5466
      %v5469 = vunpack.c.l.s4 1983009808
      %v5470 = vunpack.c.0.s8 %v5469
      %v5471 = vlaneseq
      %v5472 = vshrl.u32 %v5471, 7
      %v5473 = vsub.s32 %v5470, %v5472
      %v5474 = vrot.slane %v5460, %v5473
      %v5475 = vcombine.high %v5467, %v5467
      %v5476 = vcombine.high %v5474, %v5474
      %v5477 = vcombine.high %v5013, %v5013
      %v5479 = vunpack.c.l.s4 1983009808
      %v5480 = vunpack.c.0.s8 %v5479
      %v5481 = vlaneseq
      %v5482 = vshrl.u32 %v5481, 7
      %v5483 = vsub.s32 %v5480, %v5482
      %v5484 = vrot.slane %v5013, %v5483
      %v5486 = vunpack.c.l.s4 1983009808
      %v5487 = vunpack.c.0.s8 %v5486
      %v5488 = vlaneseq
      %v5489 = vshrl.u32 %v5488, 7
      %v5490 = vsub.s32 %v5487, %v5489
      %v5491 = vrot.slane %v5477, %v5490
      %v5492 = vcombine.high %v5484, %v5484
      %v5493 = vcombine.high %v5491, %v5491
      %v5494 = vcombine.high %v5014, %v5014
      %v5496 = vunpack.c.l.s4 1983009808
      %v5497 = vunpack.c.0.s8 %v5496
      %v5498 = vlaneseq
      %v5499 = vshrl.u32 %v5498, 7
      %v5500 = vsub.s32 %v5497, %v5499
      %v5501 = vrot.slane %v5014, %v5500
      %v5503 = vunpack.c.l.s4 1983009808
      %v5504 = vunpack.c.0.s8 %v5503
      %v5505 = vlaneseq
      %v5506 = vshrl.u32 %v5505, 7
      %v5507 = vsub.s32 %v5504, %v5506
      %v5508 = vrot.slane %v5494, %v5507
      %v5509 = vcombine.high %v5501, %v5501
      %v5510 = vcombine.high %v5508, %v5508
      %v5511 = vcombine.high %v5015, %v5015
      %v5513 = vunpack.c.l.s4 1983009808
      %v5514 = vunpack.c.0.s8 %v5513
      %v5515 = vlaneseq
      %v5516 = vshrl.u32 %v5515, 7
      %v5517 = vsub.s32 %v5514, %v5516
      %v5518 = vrot.slane %v5015, %v5517
      %v5520 = vunpack.c.l.s4 1983009808
      %v5521 = vunpack.c.0.s8 %v5520
      %v5522 = vlaneseq
      %v5523 = vshrl.u32 %v5522, 7
      %v5524 = vsub.s32 %v5521, %v5523
      %v5525 = vrot.slane %v5511, %v5524
      %v5526 = vcombine.high %v5518, %v5518
      %v5527 = vcombine.high %v5525, %v5525
      %v5528 = vcombine.high %v5016, %v5016
      %v5530 = vunpack.c.l.s4 1983009808
      %v5531 = vunpack.c.0.s8 %v5530
      %v5532 = vlaneseq
      %v5533 = vshrl.u32 %v5532, 7
      %v5534 = vsub.s32 %v5531, %v5533
      %v5535 = vrot.slane %v5016, %v5534
      %v5537 = vunpack.c.l.s4 1983009808
      %v5538 = vunpack.c.0.s8 %v5537
      %v5539 = vlaneseq
      %v5540 = vshrl.u32 %v5539, 7
      %v5541 = vsub.s32 %v5538, %v5540
      %v5542 = vrot.slane %v5528, %v5541
      %v5543 = vcombine.high %v5535, %v5535
      %v5544 = vcombine.high %v5542, %v5542
      %v5545 = vcombine.high %v5017, %v5017
      %v5547 = vunpack.c.l.s4 1983009808
      %v5548 = vunpack.c.0.s8 %v5547
      %v5549 = vlaneseq
      %v5550 = vshrl.u32 %v5549, 7
      %v5551 = vsub.s32 %v5548, %v5550
      %v5552 = vrot.slane %v5017, %v5551
      %v5554 = vunpack.c.l.s4 1983009808
      %v5555 = vunpack.c.0.s8 %v5554
      %v5556 = vlaneseq
      %v5557 = vshrl.u32 %v5556, 7
      %v5558 = vsub.s32 %v5555, %v5557
      %v5559 = vrot.slane %v5545, %v5558
      %v5560 = vcombine.high %v5552, %v5552
      %v5561 = vcombine.high %v5559, %v5559
      %v5562 = vcombine.high %v5018, %v5018
      %v5564 = vunpack.c.l.s4 1983009808
      %v5565 = vunpack.c.0.s8 %v5564
      %v5566 = vlaneseq
      %v5567 = vshrl.u32 %v5566, 7
      %v5568 = vsub.s32 %v5565, %v5567
      %v5569 = vrot.slane %v5018, %v5568
      %v5571 = vunpack.c.l.s4 1983009808
      %v5572 = vunpack.c.0.s8 %v5571
      %v5573 = vlaneseq
      %v5574 = vshrl.u32 %v5573, 7
      %v5575 = vsub.s32 %v5572, %v5574
      %v5576 = vrot.slane %v5562, %v5575
      %v5577 = vcombine.high %v5569, %v5569
      %v5578 = vcombine.high %v5576, %v5576
      %v5579 = vcombine.high %v5019, %v5019
      %v5581 = vunpack.c.l.s4 1983009808
      %v5582 = vunpack.c.0.s8 %v5581
      %v5583 = vlaneseq
      %v5584 = vshrl.u32 %v5583, 7
      %v5585 = vsub.s32 %v5582, %v5584
      %v5586 = vrot.slane %v5019, %v5585
      %v5588 = vunpack.c.l.s4 1983009808
      %v5589 = vunpack.c.0.s8 %v5588
      %v5590 = vlaneseq
      %v5591 = vshrl.u32 %v5590, 7
      %v5592 = vsub.s32 %v5589, %v5591
      %v5593 = vrot.slane %v5579, %v5592
      %v5594 = vcombine.high %v5586, %v5586
      %v5595 = vcombine.high %v5593, %v5593
      %v5724 = vrot.slane %v5059, 7
      %v5725 = vrot.slane %v5724, 2
      %v5726 = vrot.slane %v5067, 7
      %v5727 = vrot.slane %v5726, 2
      %v5728 = vrot.slane %v5066, 7
      %v5729 = vrot.slane %v5728, 2
      %v5730 = vrot.slane %v5068, 7
      %v5731 = vrot.slane %v5730, 2
      %v5732 = vrot.slane %v5076, 7
      %v5733 = vrot.slane %v5732, 2
      %v5734 = vrot.slane %v5084, 7
      %v5735 = vrot.slane %v5734, 2
      %v5736 = vrot.slane %v5083, 7
      %v5737 = vrot.slane %v5736, 2
      %v5738 = vrot.slane %v5085, 7
      %v5739 = vrot.slane %v5738, 2
      %v5740 = vrot.slane %v5093, 7
      %v5741 = vrot.slane %v5740, 2
      %v5742 = vrot.slane %v5101, 7
      %v5743 = vrot.slane %v5742, 2
      %v5744 = vrot.slane %v5100, 7
      %v5745 = vrot.slane %v5744, 2
      %v5746 = vrot.slane %v5102, 7
      %v5747 = vrot.slane %v5746, 2
      %v5748 = vrot.slane %v5110, 7
      %v5749 = vrot.slane %v5748, 2
      %v5750 = vrot.slane %v5118, 7
      %v5751 = vrot.slane %v5750, 2
      %v5752 = vrot.slane %v5117, 7
      %v5753 = vrot.slane %v5752, 2
      %v5754 = vrot.slane %v5119, 7
      %v5755 = vrot.slane %v5754, 2
      %v5756 = vrot.slane %v5127, 7
      %v5757 = vrot.slane %v5756, 2
      %v5758 = vrot.slane %v5135, 7
      %v5759 = vrot.slane %v5758, 2
      %v5760 = vrot.slane %v5134, 7
      %v5761 = vrot.slane %v5760, 2
      %v5762 = vrot.slane %v5136, 7
      %v5763 = vrot.slane %v5762, 2
      %v5764 = vrot.slane %v5144, 7
      %v5765 = vrot.slane %v5764, 2
      %v5766 = vrot.slane %v5152, 7
      %v5767 = vrot.slane %v5766, 2
      %v5768 = vrot.slane %v5151, 7
      %v5769 = vrot.slane %v5768, 2
      %v5770 = vrot.slane %v5153, 7
      %v5771 = vrot.slane %v5770, 2
      %v5772 = vrot.slane %v5161, 7
      %v5773 = vrot.slane %v5772, 2
      %v5774 = vrot.slane %v5169, 7
      %v5775 = vrot.slane %v5774, 2
      %v5776 = vrot.slane %v5168, 7
      %v5777 = vrot.slane %v5776, 2
      %v5778 = vrot.slane %v5170, 7
      %v5779 = vrot.slane %v5778, 2
      %v5780 = vrot.slane %v5178, 7
      %v5781 = vrot.slane %v5780, 2
      %v5782 = vrot.slane %v5186, 7
      %v5783 = vrot.slane %v5782, 2
      %v5784 = vrot.slane %v5185, 7
      %v5785 = vrot.slane %v5784, 2
      %v5786 = vrot.slane %v5187, 7
      %v5787 = vrot.slane %v5786, 2
      %v5788 = vrot.slane %v5195, 7
      %v5789 = vrot.slane %v5788, 2
      %v5790 = vrot.slane %v5203, 7
      %v5791 = vrot.slane %v5790, 2
      %v5792 = vrot.slane %v5202, 7
      %v5793 = vrot.slane %v5792, 2
      %v5794 = vrot.slane %v5204, 7
      %v5795 = vrot.slane %v5794, 2
      %v5796 = vrot.slane %v5212, 7
      %v5797 = vrot.slane %v5796, 2
      %v5798 = vrot.slane %v5220, 7
      %v5799 = vrot.slane %v5798, 2
      %v5800 = vrot.slane %v5219, 7
      %v5801 = vrot.slane %v5800, 2
      %v5802 = vrot.slane %v5221, 7
      %v5803 = vrot.slane %v5802, 2
      %v5804 = vrot.slane %v5229, 7
      %v5805 = vrot.slane %v5804, 2
      %v5806 = vrot.slane %v5237, 7
      %v5807 = vrot.slane %v5806, 2
      %v5808 = vrot.slane %v5236, 7
      %v5809 = vrot.slane %v5808, 2
      %v5810 = vrot.slane %v5238, 7
      %v5811 = vrot.slane %v5810, 2
      %v5812 = vrot.slane %v5246, 7
      %v5813 = vrot.slane %v5812, 2
      %v5814 = vrot.slane %v5254, 7
      %v5815 = vrot.slane %v5814, 2
      %v5816 = vrot.slane %v5253, 7
      %v5817 = vrot.slane %v5816, 2
      %v5818 = vrot.slane %v5255, 7
      %v5819 = vrot.slane %v5818, 2
      %v5820 = vrot.slane %v5263, 7
      %v5821 = vrot.slane %v5820, 2
      %v5822 = vrot.slane %v5271, 7
      %v5823 = vrot.slane %v5822, 2
      %v5824 = vrot.slane %v5270, 7
      %v5825 = vrot.slane %v5824, 2
      %v5826 = vrot.slane %v5272, 7
      %v5827 = vrot.slane %v5826, 2
      %v5828 = vrot.slane %v5280, 7
      %v5829 = vrot.slane %v5828, 2
      %v5830 = vrot.slane %v5288, 7
      %v5831 = vrot.slane %v5830, 2
      %v5832 = vrot.slane %v5287, 7
      %v5833 = vrot.slane %v5832, 2
      %v5834 = vrot.slane %v5289, 7
      %v5835 = vrot.slane %v5834, 2
      %v5836 = vrot.slane %v5297, 7
      %v5837 = vrot.slane %v5836, 2
      %v5838 = vrot.slane %v5305, 7
      %v5839 = vrot.slane %v5838, 2
      %v5840 = vrot.slane %v5304, 7
      %v5841 = vrot.slane %v5840, 2
      %v5842 = vrot.slane %v5306, 7
      %v5843 = vrot.slane %v5842, 2
      %v5844 = vrot.slane %v5314, 7
      %v5845 = vrot.slane %v5844, 2
      %v5846 = vrot.slane %v5322, 7
      %v5847 = vrot.slane %v5846, 2
      %v5848 = vrot.slane %v5321, 7
      %v5849 = vrot.slane %v5848, 2
      %v5850 = vrot.slane %v5323, 7
      %v5851 = vrot.slane %v5850, 2
      %v5852 = vrot.slane %v5331, 7
      %v5853 = vrot.slane %v5852, 2
      %v5854 = vrot.slane %v5339, 7
      %v5855 = vrot.slane %v5854, 2
      %v5856 = vrot.slane %v5338, 7
      %v5857 = vrot.slane %v5856, 2
      %v5858 = vrot.slane %v5340, 7
      %v5859 = vrot.slane %v5858, 2
      %v5860 = vrot.slane %v5348, 7
      %v5861 = vrot.slane %v5860, 2
      %v5862 = vrot.slane %v5356, 7
      %v5863 = vrot.slane %v5862, 2
      %v5864 = vrot.slane %v5355, 7
      %v5865 = vrot.slane %v5864, 2
      %v5866 = vrot.slane %v5357, 7
      %v5867 = vrot.slane %v5866, 2
      %v5868 = vrot.slane %v5365, 7
      %v5869 = vrot.slane %v5868, 2
      %v5870 = vrot.slane %v5373, 7
      %v5871 = vrot.slane %v5870, 2
      %v5872 = vrot.slane %v5372, 7
      %v5873 = vrot.slane %v5872, 2
      %v5874 = vrot.slane %v5374, 7
      %v5875 = vrot.slane %v5874, 2
      %v5876 = vrot.slane %v5382, 7
      %v5877 = vrot.slane %v5876, 2
      %v5878 = vrot.slane %v5390, 7
      %v5879 = vrot.slane %v5878, 2
      %v5880 = vrot.slane %v5389, 7
      %v5881 = vrot.slane %v5880, 2
      %v5882 = vrot.slane %v5391, 7
      %v5883 = vrot.slane %v5882, 2
      %v5884 = vrot.slane %v5399, 7
      %v5885 = vrot.slane %v5884, 2
      %v5886 = vrot.slane %v5407, 7
      %v5887 = vrot.slane %v5886, 2
      %v5888 = vrot.slane %v5406, 7
      %v5889 = vrot.slane %v5888, 2
      %v5890 = vrot.slane %v5408, 7
      %v5891 = vrot.slane %v5890, 2
      %v5892 = vrot.slane %v5416, 7
      %v5893 = vrot.slane %v5892, 2
      %v5894 = vrot.slane %v5424, 7
      %v5895 = vrot.slane %v5894, 2
      %v5896 = vrot.slane %v5423, 7
      %v5897 = vrot.slane %v5896, 2
      %v5898 = vrot.slane %v5425, 7
      %v5899 = vrot.slane %v5898, 2
      %v5900 = vrot.slane %v5433, 7
      %v5901 = vrot.slane %v5900, 2
      %v5902 = vrot.slane %v5441, 7
      %v5903 = vrot.slane %v5902, 2
      %v5904 = vrot.slane %v5440, 7
      %v5905 = vrot.slane %v5904, 2
      %v5906 = vrot.slane %v5442, 7
      %v5907 = vrot.slane %v5906, 2
      %v5908 = vrot.slane %v5450, 7
      %v5909 = vrot.slane %v5908, 2
      %v5910 = vrot.slane %v5458, 7
      %v5911 = vrot.slane %v5910, 2
      %v5912 = vrot.slane %v5457, 7
      %v5913 = vrot.slane %v5912, 2
      %v5914 = vrot.slane %v5459, 7
      %v5915 = vrot.slane %v5914, 2
      %v5916 = vrot.slane %v5467, 7
      %v5917 = vrot.slane %v5916, 2
      %v5918 = vrot.slane %v5475, 7
      %v5919 = vrot.slane %v5918, 2
      %v5920 = vrot.slane %v5474, 7
      %v5921 = vrot.slane %v5920, 2
      %v5922 = vrot.slane %v5476, 7
      %v5923 = vrot.slane %v5922, 2
      %v5924 = vrot.slane %v5484, 7
      %v5925 = vrot.slane %v5924, 2
      %v5926 = vrot.slane %v5492, 7
      %v5927 = vrot.slane %v5926, 2
      %v5928 = vrot.slane %v5491, 7
      %v5929 = vrot.slane %v5928, 2
      %v5930 = vrot.slane %v5493, 7
      %v5931 = vrot.slane %v5930, 2
      %v5932 = vrot.slane %v5501, 7
      %v5933 = vrot.slane %v5932, 2
      %v5934 = vrot.slane %v5509, 7
      %v5935 = vrot.slane %v5934, 2
      %v5936 = vrot.slane %v5508, 7
      %v5937 = vrot.slane %v5936, 2
      %v5938 = vrot.slane %v5510, 7
      %v5939 = vrot.slane %v5938, 2
      %v5940 = vrot.slane %v5518, 7
      %v5941 = vrot.slane %v5940, 2
      %v5942 = vrot.slane %v5526, 7
      %v5943 = vrot.slane %v5942, 2
      %v5944 = vrot.slane %v5525, 7
      %v5945 = vrot.slane %v5944, 2
      %v5946 = vrot.slane %v5527, 7
      %v5947 = vrot.slane %v5946, 2
      %v5948 = vrot.slane %v5535, 7
      %v5949 = vrot.slane %v5948, 2
      %v5950 = vrot.slane %v5543, 7
      %v5951 = vrot.slane %v5950, 2
      %v5952 = vrot.slane %v5542, 7
      %v5953 = vrot.slane %v5952, 2
      %v5954 = vrot.slane %v5544, 7
      %v5955 = vrot.slane %v5954, 2
      %v5956 = vrot.slane %v5552, 7
      %v5957 = vrot.slane %v5956, 2
      %v5958 = vrot.slane %v5560, 7
      %v5959 = vrot.slane %v5958, 2
      %v5960 = vrot.slane %v5559, 7
      %v5961 = vrot.slane %v5960, 2
      %v5962 = vrot.slane %v5561, 7
      %v5963 = vrot.slane %v5962, 2
      %v5964 = vrot.slane %v5569, 7
      %v5965 = vrot.slane %v5964, 2
      %v5966 = vrot.slane %v5577, 7
      %v5967 = vrot.slane %v5966, 2
      %v5968 = vrot.slane %v5576, 7
      %v5969 = vrot.slane %v5968, 2
      %v5970 = vrot.slane %v5578, 7
      %v5971 = vrot.slane %v5970, 2
      %v5972 = vrot.slane %v5586, 7
      %v5973 = vrot.slane %v5972, 2
      %v5974 = vrot.slane %v5594, 7
      %v5975 = vrot.slane %v5974, 2
      %v5976 = vrot.slane %v5593, 7
      %v5977 = vrot.slane %v5976, 2
      %v5978 = vrot.slane %v5595, 7
      %v5979 = vrot.slane %v5978, 2
      %v6108 = vadd.f32 %v5059, %v5725
      %v6109 = vadd.f32 %v5067, %v5727
      %v6110 = vadd.f32 %v5066, %v5729
      %v6111 = vadd.f32 %v5068, %v5731
      %v6112 = vadd.f32 %v5076, %v5733
      %v6113 = vadd.f32 %v5084, %v5735
      %v6114 = vadd.f32 %v5083, %v5737
      %v6115 = vadd.f32 %v5085, %v5739
      %v6116 = vadd.f32 %v5093, %v5741
      %v6117 = vadd.f32 %v5101, %v5743
      %v6118 = vadd.f32 %v5100, %v5745
      %v6119 = vadd.f32 %v5102, %v5747
      %v6120 = vadd.f32 %v5110, %v5749
      %v6121 = vadd.f32 %v5118, %v5751
      %v6122 = vadd.f32 %v5117, %v5753
      %v6123 = vadd.f32 %v5119, %v5755
      %v6124 = vadd.f32 %v5127, %v5757
      %v6125 = vadd.f32 %v5135, %v5759
      %v6126 = vadd.f32 %v5134, %v5761
      %v6127 = vadd.f32 %v5136, %v5763
      %v6128 = vadd.f32 %v5144, %v5765
      %v6129 = vadd.f32 %v5152, %v5767
      %v6130 = vadd.f32 %v5151, %v5769
      %v6131 = vadd.f32 %v5153, %v5771
      %v6132 = vadd.f32 %v5161, %v5773
      %v6133 = vadd.f32 %v5169, %v5775
      %v6134 = vadd.f32 %v5168, %v5777
      %v6135 = vadd.f32 %v5170, %v5779
      %v6136 = vadd.f32 %v5178, %v5781
      %v6137 = vadd.f32 %v5186, %v5783
      %v6138 = vadd.f32 %v5185, %v5785
      %v6139 = vadd.f32 %v5187, %v5787
      %v6140 = vadd.f32 %v5195, %v5789
      %v6141 = vadd.f32 %v5203, %v5791
      %v6142 = vadd.f32 %v5202, %v5793
      %v6143 = vadd.f32 %v5204, %v5795
      %v6144 = vadd.f32 %v5212, %v5797
      %v6145 = vadd.f32 %v5220, %v5799
      %v6146 = vadd.f32 %v5219, %v5801
      %v6147 = vadd.f32 %v5221, %v5803
      %v6148 = vadd.f32 %v5229, %v5805
      %v6149 = vadd.f32 %v5237, %v5807
      %v6150 = vadd.f32 %v5236, %v5809
      %v6151 = vadd.f32 %v5238, %v5811
      %v6152 = vadd.f32 %v5246, %v5813
      %v6153 = vadd.f32 %v5254, %v5815
      %v6154 = vadd.f32 %v5253, %v5817
      %v6155 = vadd.f32 %v5255, %v5819
      %v6156 = vadd.f32 %v5263, %v5821
      %v6157 = vadd.f32 %v5271, %v5823
      %v6158 = vadd.f32 %v5270, %v5825
      %v6159 = vadd.f32 %v5272, %v5827
      %v6160 = vadd.f32 %v5280, %v5829
      %v6161 = vadd.f32 %v5288, %v5831
      %v6162 = vadd.f32 %v5287, %v5833
      %v6163 = vadd.f32 %v5289, %v5835
      %v6164 = vadd.f32 %v5297, %v5837
      %v6165 = vadd.f32 %v5305, %v5839
      %v6166 = vadd.f32 %v5304, %v5841
      %v6167 = vadd.f32 %v5306, %v5843
      %v6168 = vadd.f32 %v5314, %v5845
      %v6169 = vadd.f32 %v5322, %v5847
      %v6170 = vadd.f32 %v5321, %v5849
      %v6171 = vadd.f32 %v5323, %v5851
      %v6172 = vadd.f32 %v5331, %v5853
      %v6173 = vadd.f32 %v5339, %v5855
      %v6174 = vadd.f32 %v5338, %v5857
      %v6175 = vadd.f32 %v5340, %v5859
      %v6176 = vadd.f32 %v5348, %v5861
      %v6177 = vadd.f32 %v5356, %v5863
      %v6178 = vadd.f32 %v5355, %v5865
      %v6179 = vadd.f32 %v5357, %v5867
      %v6180 = vadd.f32 %v5365, %v5869
      %v6181 = vadd.f32 %v5373, %v5871
      %v6182 = vadd.f32 %v5372, %v5873
      %v6183 = vadd.f32 %v5374, %v5875
      %v6184 = vadd.f32 %v5382, %v5877
      %v6185 = vadd.f32 %v5390, %v5879
      %v6186 = vadd.f32 %v5389, %v5881
      %v6187 = vadd.f32 %v5391, %v5883
      %v6188 = vadd.f32 %v5399, %v5885
      %v6189 = vadd.f32 %v5407, %v5887
      %v6190 = vadd.f32 %v5406, %v5889
      %v6191 = vadd.f32 %v5408, %v5891
      %v6192 = vadd.f32 %v5416, %v5893
      %v6193 = vadd.f32 %v5424, %v5895
      %v6194 = vadd.f32 %v5423, %v5897
      %v6195 = vadd.f32 %v5425, %v5899
      %v6196 = vadd.f32 %v5433, %v5901
      %v6197 = vadd.f32 %v5441, %v5903
      %v6198 = vadd.f32 %v5440, %v5905
      %v6199 = vadd.f32 %v5442, %v5907
      %v6200 = vadd.f32 %v5450, %v5909
      %v6201 = vadd.f32 %v5458, %v5911
      %v6202 = vadd.f32 %v5457, %v5913
      %v6203 = vadd.f32 %v5459, %v5915
      %v6204 = vadd.f32 %v5467, %v5917
      %v6205 = vadd.f32 %v5475, %v5919
      %v6206 = vadd.f32 %v5474, %v5921
      %v6207 = vadd.f32 %v5476, %v5923
      %v6208 = vadd.f32 %v5484, %v5925
      %v6209 = vadd.f32 %v5492, %v5927
      %v6210 = vadd.f32 %v5491, %v5929
      %v6211 = vadd.f32 %v5493, %v5931
      %v6212 = vadd.f32 %v5501, %v5933
      %v6213 = vadd.f32 %v5509, %v5935
      %v6214 = vadd.f32 %v5508, %v5937
      %v6215 = vadd.f32 %v5510, %v5939
      %v6216 = vadd.f32 %v5518, %v5941
      %v6217 = vadd.f32 %v5526, %v5943
      %v6218 = vadd.f32 %v5525, %v5945
      %v6219 = vadd.f32 %v5527, %v5947
      %v6220 = vadd.f32 %v5535, %v5949
      %v6221 = vadd.f32 %v5543, %v5951
      %v6222 = vadd.f32 %v5542, %v5953
      %v6223 = vadd.f32 %v5544, %v5955
      %v6224 = vadd.f32 %v5552, %v5957
      %v6225 = vadd.f32 %v5560, %v5959
      %v6226 = vadd.f32 %v5559, %v5961
      %v6227 = vadd.f32 %v5561, %v5963
      %v6228 = vadd.f32 %v5569, %v5965
      %v6229 = vadd.f32 %v5577, %v5967
      %v6230 = vadd.f32 %v5576, %v5969
      %v6231 = vadd.f32 %v5578, %v5971
      %v6232 = vadd.f32 %v5586, %v5973
      %v6233 = vadd.f32 %v5594, %v5975
      %v6234 = vadd.f32 %v5593, %v5977
      %v6235 = vadd.f32 %v5595, %v5979
      %v6236 = vadd.f32 %v6108, %v6116
      %v6237 = vadd.f32 %v6109, %v6117
      %v6238 = vadd.f32 %v6110, %v6118
      %v6239 = vadd.f32 %v6111, %v6119
      %v6240 = vadd.f32 %v6112, %v6120
      %v6241 = vadd.f32 %v6113, %v6121
      %v6242 = vadd.f32 %v6114, %v6122
      %v6243 = vadd.f32 %v6115, %v6123
      %v6244 = vadd.f32 %v6124, %v6132
      %v6245 = vadd.f32 %v6125, %v6133
      %v6246 = vadd.f32 %v6126, %v6134
      %v6247 = vadd.f32 %v6127, %v6135
      %v6248 = vadd.f32 %v6128, %v6136
      %v6249 = vadd.f32 %v6129, %v6137
      %v6250 = vadd.f32 %v6130, %v6138
      %v6251 = vadd.f32 %v6131, %v6139
      %v6252 = vadd.f32 %v6140, %v6148
      %v6253 = vadd.f32 %v6141, %v6149
      %v6254 = vadd.f32 %v6142, %v6150
      %v6255 = vadd.f32 %v6143, %v6151
      %v6256 = vadd.f32 %v6144, %v6152
      %v6257 = vadd.f32 %v6145, %v6153
      %v6258 = vadd.f32 %v6146, %v6154
      %v6259 = vadd.f32 %v6147, %v6155
      %v6260 = vadd.f32 %v6156, %v6164
      %v6261 = vadd.f32 %v6157, %v6165
      %v6262 = vadd.f32 %v6158, %v6166
      %v6263 = vadd.f32 %v6159, %v6167
      %v6264 = vadd.f32 %v6160, %v6168
      %v6265 = vadd.f32 %v6161, %v6169
      %v6266 = vadd.f32 %v6162, %v6170
      %v6267 = vadd.f32 %v6163, %v6171
      %v6268 = vadd.f32 %v6172, %v6180
      %v6269 = vadd.f32 %v6173, %v6181
      %v6270 = vadd.f32 %v6174, %v6182
      %v6271 = vadd.f32 %v6175, %v6183
      %v6272 = vadd.f32 %v6176, %v6184
      %v6273 = vadd.f32 %v6177, %v6185
      %v6274 = vadd.f32 %v6178, %v6186
      %v6275 = vadd.f32 %v6179, %v6187
      %v6276 = vadd.f32 %v6188, %v6196
      %v6277 = vadd.f32 %v6189, %v6197
      %v6278 = vadd.f32 %v6190, %v6198
      %v6279 = vadd.f32 %v6191, %v6199
      %v6280 = vadd.f32 %v6192, %v6200
      %v6281 = vadd.f32 %v6193, %v6201
      %v6282 = vadd.f32 %v6194, %v6202
      %v6283 = vadd.f32 %v6195, %v6203
      %v6284 = vadd.f32 %v6204, %v6212
      %v6285 = vadd.f32 %v6205, %v6213
      %v6286 = vadd.f32 %v6206, %v6214
      %v6287 = vadd.f32 %v6207, %v6215
      %v6288 = vadd.f32 %v6208, %v6216
      %v6289 = vadd.f32 %v6209, %v6217
      %v6290 = vadd.f32 %v6210, %v6218
      %v6291 = vadd.f32 %v6211, %v6219
      %v6292 = vadd.f32 %v6220, %v6228
      %v6293 = vadd.f32 %v6221, %v6229
      %v6294 = vadd.f32 %v6222, %v6230
      %v6295 = vadd.f32 %v6223, %v6231
      %v6296 = vadd.f32 %v6224, %v6232
      %v6297 = vadd.f32 %v6225, %v6233
      %v6298 = vadd.f32 %v6226, %v6234
      %v6299 = vadd.f32 %v6227, %v6235
      %v6300 = vmul.f32 %v6236, 0.25
      %v6301 = vmul.f32 %v6237, 0.25
      %v6302 = vmul.f32 %v6238, 0.25
      %v6303 = vmul.f32 %v6239, 0.25
      %v6304 = vmul.f32 %v6240, 0.25
      %v6305 = vmul.f32 %v6241, 0.25
      %v6306 = vmul.f32 %v6242, 0.25
      %v6307 = vmul.f32 %v6243, 0.25
      %v6308 = vmul.f32 %v6244, 0.25
      %v6309 = vmul.f32 %v6245, 0.25
      %v6310 = vmul.f32 %v6246, 0.25
      %v6311 = vmul.f32 %v6247, 0.25
      %v6312 = vmul.f32 %v6248, 0.25
      %v6313 = vmul.f32 %v6249, 0.25
      %v6314 = vmul.f32 %v6250, 0.25
      %v6315 = vmul.f32 %v6251, 0.25
      %v6316 = vmul.f32 %v6252, 0.25
      %v6317 = vmul.f32 %v6253, 0.25
      %v6318 = vmul.f32 %v6254, 0.25
      %v6319 = vmul.f32 %v6255, 0.25
      %v6320 = vmul.f32 %v6256, 0.25
      %v6321 = vmul.f32 %v6257, 0.25
      %v6322 = vmul.f32 %v6258, 0.25
      %v6323 = vmul.f32 %v6259, 0.25
      %v6324 = vmul.f32 %v6260, 0.25
      %v6325 = vmul.f32 %v6261, 0.25
      %v6326 = vmul.f32 %v6262, 0.25
      %v6327 = vmul.f32 %v6263, 0.25
      %v6328 = vmul.f32 %v6264, 0.25
      %v6329 = vmul.f32 %v6265, 0.25
      %v6330 = vmul.f32 %v6266, 0.25
      %v6331 = vmul.f32 %v6267, 0.25
      %v6332 = vmul.f32 %v6268, 0.25
      %v6333 = vmul.f32 %v6269, 0.25
      %v6334 = vmul.f32 %v6270, 0.25
      %v6335 = vmul.f32 %v6271, 0.25
      %v6336 = vmul.f32 %v6272, 0.25
      %v6337 = vmul.f32 %v6273, 0.25
      %v6338 = vmul.f32 %v6274, 0.25
      %v6339 = vmul.f32 %v6275, 0.25
      %v6340 = vmul.f32 %v6276, 0.25
      %v6341 = vmul.f32 %v6277, 0.25
      %v6342 = vmul.f32 %v6278, 0.25
      %v6343 = vmul.f32 %v6279, 0.25
      %v6344 = vmul.f32 %v6280, 0.25
      %v6345 = vmul.f32 %v6281, 0.25
      %v6346 = vmul.f32 %v6282, 0.25
      %v6347 = vmul.f32 %v6283, 0.25
      %v6348 = vmul.f32 %v6284, 0.25
      %v6349 = vmul.f32 %v6285, 0.25
      %v6350 = vmul.f32 %v6286, 0.25
      %v6351 = vmul.f32 %v6287, 0.25
      %v6352 = vmul.f32 %v6288, 0.25
      %v6353 = vmul.f32 %v6289, 0.25
      %v6354 = vmul.f32 %v6290, 0.25
      %v6355 = vmul.f32 %v6291, 0.25
      %v6356 = vmul.f32 %v6292, 0.25
      %v6357 = vmul.f32 %v6293, 0.25
      %v6358 = vmul.f32 %v6294, 0.25
      %v6359 = vmul.f32 %v6295, 0.25
      %v6360 = vmul.f32 %v6296, 0.25
      %v6361 = vmul.f32 %v6297, 0.25
      %v6362 = vmul.f32 %v6298, 0.25
      %v6363 = vmul.f32 %v6299, 0.25
      %v6364 = vpack.c.bf16 %v6300, %v6300
      %v6365 = vpack.c.bf16 %v6301, %v6301
      %v6366 = vpack.c.bf16 %v6302, %v6302
      %v6367 = vpack.c.bf16 %v6303, %v6303
      %v6368 = vpack.c.bf16 %v6304, %v6304
      %v6369 = vpack.c.bf16 %v6305, %v6305
      %v6370 = vpack.c.bf16 %v6306, %v6306
      %v6371 = vpack.c.bf16 %v6307, %v6307
      %v6372 = vpack.c.bf16 %v6308, %v6308
      %v6373 = vpack.c.bf16 %v6309, %v6309
      %v6374 = vpack.c.bf16 %v6310, %v6310
      %v6375 = vpack.c.bf16 %v6311, %v6311
      %v6376 = vpack.c.bf16 %v6312, %v6312
      %v6377 = vpack.c.bf16 %v6313, %v6313
      %v6378 = vpack.c.bf16 %v6314, %v6314
      %v6379 = vpack.c.bf16 %v6315, %v6315
      %v6380 = vpack.c.bf16 %v6316, %v6316
      %v6381 = vpack.c.bf16 %v6317, %v6317
      %v6382 = vpack.c.bf16 %v6318, %v6318
      %v6383 = vpack.c.bf16 %v6319, %v6319
      %v6384 = vpack.c.bf16 %v6320, %v6320
      %v6385 = vpack.c.bf16 %v6321, %v6321
      %v6386 = vpack.c.bf16 %v6322, %v6322
      %v6387 = vpack.c.bf16 %v6323, %v6323
      %v6388 = vpack.c.bf16 %v6324, %v6324
      %v6389 = vpack.c.bf16 %v6325, %v6325
      %v6390 = vpack.c.bf16 %v6326, %v6326
      %v6391 = vpack.c.bf16 %v6327, %v6327
      %v6392 = vpack.c.bf16 %v6328, %v6328
      %v6393 = vpack.c.bf16 %v6329, %v6329
      %v6394 = vpack.c.bf16 %v6330, %v6330
      %v6395 = vpack.c.bf16 %v6331, %v6331
      %v6396 = vpack.c.bf16 %v6332, %v6332
      %v6397 = vpack.c.bf16 %v6333, %v6333
      %v6398 = vpack.c.bf16 %v6334, %v6334
      %v6399 = vpack.c.bf16 %v6335, %v6335
      %v6400 = vpack.c.bf16 %v6336, %v6336
      %v6401 = vpack.c.bf16 %v6337, %v6337
      %v6402 = vpack.c.bf16 %v6338, %v6338
      %v6403 = vpack.c.bf16 %v6339, %v6339
      %v6404 = vpack.c.bf16 %v6340, %v6340
      %v6405 = vpack.c.bf16 %v6341, %v6341
      %v6406 = vpack.c.bf16 %v6342, %v6342
      %v6407 = vpack.c.bf16 %v6343, %v6343
      %v6408 = vpack.c.bf16 %v6344, %v6344
      %v6409 = vpack.c.bf16 %v6345, %v6345
      %v6410 = vpack.c.bf16 %v6346, %v6346
      %v6411 = vpack.c.bf16 %v6347, %v6347
      %v6412 = vpack.c.bf16 %v6348, %v6348
      %v6413 = vpack.c.bf16 %v6349, %v6349
      %v6414 = vpack.c.bf16 %v6350, %v6350
      %v6415 = vpack.c.bf16 %v6351, %v6351
      %v6416 = vpack.c.bf16 %v6352, %v6352
      %v6417 = vpack.c.bf16 %v6353, %v6353
      %v6418 = vpack.c.bf16 %v6354, %v6354
      %v6419 = vpack.c.bf16 %v6355, %v6355
      %v6420 = vpack.c.bf16 %v6356, %v6356
      %v6421 = vpack.c.bf16 %v6357, %v6357
      %v6422 = vpack.c.bf16 %v6358, %v6358
      %v6423 = vpack.c.bf16 %v6359, %v6359
      %v6424 = vpack.c.bf16 %v6360, %v6360
      %v6425 = vpack.c.bf16 %v6361, %v6361
      %v6426 = vpack.c.bf16 %v6362, %v6362
      %v6427 = vpack.c.bf16 %v6363, %v6363
      %v6492 = vunpack.c.l.b16 %v6364
      %v6493 = vunpack.c.l.b16 %v6365
      %v6494 = vunpack.c.l.b16 %v6366
      %v6495 = vunpack.c.l.b16 %v6367
      %v6496 = vunpack.c.l.b16 %v6368
      %v6497 = vunpack.c.l.b16 %v6369
      %v6498 = vunpack.c.l.b16 %v6370
      %v6499 = vunpack.c.l.b16 %v6371
      %v6500 = vunpack.c.l.b16 %v6372
      %v6501 = vunpack.c.l.b16 %v6373
      %v6502 = vunpack.c.l.b16 %v6374
      %v6503 = vunpack.c.l.b16 %v6375
      %v6504 = vunpack.c.l.b16 %v6376
      %v6505 = vunpack.c.l.b16 %v6377
      %v6506 = vunpack.c.l.b16 %v6378
      %v6507 = vunpack.c.l.b16 %v6379
      %v6508 = vunpack.c.l.b16 %v6380
      %v6509 = vunpack.c.l.b16 %v6381
      %v6510 = vunpack.c.l.b16 %v6382
      %v6511 = vunpack.c.l.b16 %v6383
      %v6512 = vunpack.c.l.b16 %v6384
      %v6513 = vunpack.c.l.b16 %v6385
      %v6514 = vunpack.c.l.b16 %v6386
      %v6515 = vunpack.c.l.b16 %v6387
      %v6516 = vunpack.c.l.b16 %v6388
      %v6517 = vunpack.c.l.b16 %v6389
      %v6518 = vunpack.c.l.b16 %v6390
      %v6519 = vunpack.c.l.b16 %v6391
      %v6520 = vunpack.c.l.b16 %v6392
      %v6521 = vunpack.c.l.b16 %v6393
      %v6522 = vunpack.c.l.b16 %v6394
      %v6523 = vunpack.c.l.b16 %v6395
      %v6524 = vunpack.c.l.b16 %v6396
      %v6525 = vunpack.c.l.b16 %v6397
      %v6526 = vunpack.c.l.b16 %v6398
      %v6527 = vunpack.c.l.b16 %v6399
      %v6528 = vunpack.c.l.b16 %v6400
      %v6529 = vunpack.c.l.b16 %v6401
      %v6530 = vunpack.c.l.b16 %v6402
      %v6531 = vunpack.c.l.b16 %v6403
      %v6532 = vunpack.c.l.b16 %v6404
      %v6533 = vunpack.c.l.b16 %v6405
      %v6534 = vunpack.c.l.b16 %v6406
      %v6535 = vunpack.c.l.b16 %v6407
      %v6536 = vunpack.c.l.b16 %v6408
      %v6537 = vunpack.c.l.b16 %v6409
      %v6538 = vunpack.c.l.b16 %v6410
      %v6539 = vunpack.c.l.b16 %v6411
      %v6540 = vunpack.c.l.b16 %v6412
      %v6541 = vunpack.c.l.b16 %v6413
      %v6542 = vunpack.c.l.b16 %v6414
      %v6543 = vunpack.c.l.b16 %v6415
      %v6544 = vunpack.c.l.b16 %v6416
      %v6545 = vunpack.c.l.b16 %v6417
      %v6546 = vunpack.c.l.b16 %v6418
      %v6547 = vunpack.c.l.b16 %v6419
      %v6548 = vunpack.c.l.b16 %v6420
      %v6549 = vunpack.c.l.b16 %v6421
      %v6550 = vunpack.c.l.b16 %v6422
      %v6551 = vunpack.c.l.b16 %v6423
      %v6552 = vunpack.c.l.b16 %v6424
      %v6553 = vunpack.c.l.b16 %v6425
      %v6554 = vunpack.c.l.b16 %v6426
      %v6555 = vunpack.c.l.b16 %v6427
      %v6556 = vpack.c.b16 %v6492, %v6492
      %v6557 = vpack.c.b16 %v6493, %v6493
      %v6558 = vpack.c.b16 %v6494, %v6494
      %v6559 = vpack.c.b16 %v6495, %v6495
      %v6560 = vpack.c.b16 %v6496, %v6496
      %v6561 = vpack.c.b16 %v6497, %v6497
      %v6562 = vpack.c.b16 %v6498, %v6498
      %v6563 = vpack.c.b16 %v6499, %v6499
      %v6564 = vpack.c.b16 %v6500, %v6500
      %v6565 = vpack.c.b16 %v6501, %v6501
      %v6566 = vpack.c.b16 %v6502, %v6502
      %v6567 = vpack.c.b16 %v6503, %v6503
      %v6568 = vpack.c.b16 %v6504, %v6504
      %v6569 = vpack.c.b16 %v6505, %v6505
      %v6570 = vpack.c.b16 %v6506, %v6506
      %v6571 = vpack.c.b16 %v6507, %v6507
      %v6572 = vpack.c.b16 %v6508, %v6508
      %v6573 = vpack.c.b16 %v6509, %v6509
      %v6574 = vpack.c.b16 %v6510, %v6510
      %v6575 = vpack.c.b16 %v6511, %v6511
      %v6576 = vpack.c.b16 %v6512, %v6512
      %v6577 = vpack.c.b16 %v6513, %v6513
      %v6578 = vpack.c.b16 %v6514, %v6514
      %v6579 = vpack.c.b16 %v6515, %v6515
      %v6580 = vpack.c.b16 %v6516, %v6516
      %v6581 = vpack.c.b16 %v6517, %v6517
      %v6582 = vpack.c.b16 %v6518, %v6518
      %v6583 = vpack.c.b16 %v6519, %v6519
      %v6584 = vpack.c.b16 %v6520, %v6520
      %v6585 = vpack.c.b16 %v6521, %v6521
      %v6586 = vpack.c.b16 %v6522, %v6522
      %v6587 = vpack.c.b16 %v6523, %v6523
      %v6588 = vpack.c.b16 %v6524, %v6524
      %v6589 = vpack.c.b16 %v6525, %v6525
      %v6590 = vpack.c.b16 %v6526, %v6526
      %v6591 = vpack.c.b16 %v6527, %v6527
      %v6592 = vpack.c.b16 %v6528, %v6528
      %v6593 = vpack.c.b16 %v6529, %v6529
      %v6594 = vpack.c.b16 %v6530, %v6530
      %v6595 = vpack.c.b16 %v6531, %v6531
      %v6596 = vpack.c.b16 %v6532, %v6532
      %v6597 = vpack.c.b16 %v6533, %v6533
      %v6598 = vpack.c.b16 %v6534, %v6534
      %v6599 = vpack.c.b16 %v6535, %v6535
      %v6600 = vpack.c.b16 %v6536, %v6536
      %v6601 = vpack.c.b16 %v6537, %v6537
      %v6602 = vpack.c.b16 %v6538, %v6538
      %v6603 = vpack.c.b16 %v6539, %v6539
      %v6604 = vpack.c.b16 %v6540, %v6540
      %v6605 = vpack.c.b16 %v6541, %v6541
      %v6606 = vpack.c.b16 %v6542, %v6542
      %v6607 = vpack.c.b16 %v6543, %v6543
      %v6608 = vpack.c.b16 %v6544, %v6544
      %v6609 = vpack.c.b16 %v6545, %v6545
      %v6610 = vpack.c.b16 %v6546, %v6546
      %v6611 = vpack.c.b16 %v6547, %v6547
      %v6612 = vpack.c.b16 %v6548, %v6548
      %v6613 = vpack.c.b16 %v6549, %v6549
      %v6614 = vpack.c.b16 %v6550, %v6550
      %v6615 = vpack.c.b16 %v6551, %v6551
      %v6616 = vpack.c.b16 %v6552, %v6552
      %v6617 = vpack.c.b16 %v6553, %v6553
      %v6618 = vpack.c.b16 %v6554, %v6554
      %v6619 = vpack.c.b16 %v6555, %v6555
      %v6620 = vunpack.c.l.b16 %v6556
      %v6621 = vunpack.c.l.b16 %v6557
      %v6622 = vunpack.c.l.b16 %v6558
      %v6623 = vunpack.c.l.b16 %v6559
      %v6624 = vunpack.c.l.b16 %v6560
      %v6625 = vunpack.c.l.b16 %v6561
      %v6626 = vunpack.c.l.b16 %v6562
      %v6627 = vunpack.c.l.b16 %v6563
      %v6628 = vunpack.c.l.b16 %v6564
      %v6629 = vunpack.c.l.b16 %v6565
      %v6630 = vunpack.c.l.b16 %v6566
      %v6631 = vunpack.c.l.b16 %v6567
      %v6632 = vunpack.c.l.b16 %v6568
      %v6633 = vunpack.c.l.b16 %v6569
      %v6634 = vunpack.c.l.b16 %v6570
      %v6635 = vunpack.c.l.b16 %v6571
      %v6636 = vunpack.c.l.b16 %v6572
      %v6637 = vunpack.c.l.b16 %v6573
      %v6638 = vunpack.c.l.b16 %v6574
      %v6639 = vunpack.c.l.b16 %v6575
      %v6640 = vunpack.c.l.b16 %v6576
      %v6641 = vunpack.c.l.b16 %v6577
      %v6642 = vunpack.c.l.b16 %v6578
      %v6643 = vunpack.c.l.b16 %v6579
      %v6644 = vunpack.c.l.b16 %v6580
      %v6645 = vunpack.c.l.b16 %v6581
      %v6646 = vunpack.c.l.b16 %v6582
      %v6647 = vunpack.c.l.b16 %v6583
      %v6648 = vunpack.c.l.b16 %v6584
      %v6649 = vunpack.c.l.b16 %v6585
      %v6650 = vunpack.c.l.b16 %v6586
      %v6651 = vunpack.c.l.b16 %v6587
      %v6652 = vunpack.c.l.b16 %v6588
      %v6653 = vunpack.c.l.b16 %v6589
      %v6654 = vunpack.c.l.b16 %v6590
      %v6655 = vunpack.c.l.b16 %v6591
      %v6656 = vunpack.c.l.b16 %v6592
      %v6657 = vunpack.c.l.b16 %v6593
      %v6658 = vunpack.c.l.b16 %v6594
      %v6659 = vunpack.c.l.b16 %v6595
      %v6660 = vunpack.c.l.b16 %v6596
      %v6661 = vunpack.c.l.b16 %v6597
      %v6662 = vunpack.c.l.b16 %v6598
      %v6663 = vunpack.c.l.b16 %v6599
      %v6664 = vunpack.c.l.b16 %v6600
      %v6665 = vunpack.c.l.b16 %v6601
      %v6666 = vunpack.c.l.b16 %v6602
      %v6667 = vunpack.c.l.b16 %v6603
      %v6668 = vunpack.c.l.b16 %v6604
      %v6669 = vunpack.c.l.b16 %v6605
      %v6670 = vunpack.c.l.b16 %v6606
      %v6671 = vunpack.c.l.b16 %v6607
      %v6672 = vunpack.c.l.b16 %v6608
      %v6673 = vunpack.c.l.b16 %v6609
      %v6674 = vunpack.c.l.b16 %v6610
      %v6675 = vunpack.c.l.b16 %v6611
      %v6676 = vunpack.c.l.b16 %v6612
      %v6677 = vunpack.c.l.b16 %v6613
      %v6678 = vunpack.c.l.b16 %v6614
      %v6679 = vunpack.c.l.b16 %v6615
      %v6680 = vunpack.c.l.b16 %v6616
      %v6681 = vunpack.c.l.b16 %v6617
      %v6682 = vunpack.c.l.b16 %v6618
      %v6683 = vunpack.c.l.b16 %v6619
      %v6684 = vrot.slane %v6621, 7
      %vm6685 = vcmask 1041409
      %v6686 = vsel %vm6685, %v6684, %v6620
      %v6687 = vrot.slane %v6622, 6
      %vm6688 = vcmask 1042434
      %v6689 = vsel %vm6688, %v6687, %v6686
      %v6690 = vrot.slane %v6623, 5
      %vm6691 = vcmask 1043459
      %v6692 = vsel %vm6691, %v6690, %v6689
      %v6693 = vrot.slane %v6624, 4
      %vm6694 = vcmask 1044484
      %v6695 = vsel %vm6694, %v6693, %v6692
      %v6696 = vrot.slane %v6625, 3
      %vm6697 = vcmask 1045509
      %v6698 = vsel %vm6697, %v6696, %v6695
      %v6699 = vrot.slane %v6626, 2
      %vm6700 = vcmask 1046534
      %v6701 = vsel %vm6700, %v6699, %v6698
      %v6702 = vrot.slane %v6627, 1
      %vm6703 = vcmask 1047559
      %v6704 = vsel %vm6703, %v6702, %v6701
      %v6705 = vrot.slane %v6629, 7
      %v6706 = vsel %vm6685, %v6705, %v6628
      %v6707 = vrot.slane %v6630, 6
      %v6708 = vsel %vm6688, %v6707, %v6706
      %v6709 = vrot.slane %v6631, 5
      %v6710 = vsel %vm6691, %v6709, %v6708
      %v6711 = vrot.slane %v6632, 4
      %v6712 = vsel %vm6694, %v6711, %v6710
      %v6713 = vrot.slane %v6633, 3
      %v6714 = vsel %vm6697, %v6713, %v6712
      %v6715 = vrot.slane %v6634, 2
      %v6716 = vsel %vm6700, %v6715, %v6714
      %v6717 = vrot.slane %v6635, 1
      %v6718 = vsel %vm6703, %v6717, %v6716
      %v6719 = vrot.slane %v6637, 7
      %v6720 = vsel %vm6685, %v6719, %v6636
      %v6721 = vrot.slane %v6638, 6
      %v6722 = vsel %vm6688, %v6721, %v6720
      %v6723 = vrot.slane %v6639, 5
      %v6724 = vsel %vm6691, %v6723, %v6722
      %v6725 = vrot.slane %v6640, 4
      %v6726 = vsel %vm6694, %v6725, %v6724
      %v6727 = vrot.slane %v6641, 3
      %v6728 = vsel %vm6697, %v6727, %v6726
      %v6729 = vrot.slane %v6642, 2
      %v6730 = vsel %vm6700, %v6729, %v6728
      %v6731 = vrot.slane %v6643, 1
      %v6732 = vsel %vm6703, %v6731, %v6730
      %v6733 = vrot.slane %v6645, 7
      %v6734 = vsel %vm6685, %v6733, %v6644
      %v6735 = vrot.slane %v6646, 6
      %v6736 = vsel %vm6688, %v6735, %v6734
      %v6737 = vrot.slane %v6647, 5
      %v6738 = vsel %vm6691, %v6737, %v6736
      %v6739 = vrot.slane %v6648, 4
      %v6740 = vsel %vm6694, %v6739, %v6738
      %v6741 = vrot.slane %v6649, 3
      %v6742 = vsel %vm6697, %v6741, %v6740
      %v6743 = vrot.slane %v6650, 2
      %v6744 = vsel %vm6700, %v6743, %v6742
      %v6745 = vrot.slane %v6651, 1
      %v6746 = vsel %vm6703, %v6745, %v6744
      %v6747 = vrot.slane %v6653, 7
      %v6748 = vsel %vm6685, %v6747, %v6652
      %v6749 = vrot.slane %v6654, 6
      %v6750 = vsel %vm6688, %v6749, %v6748
      %v6751 = vrot.slane %v6655, 5
      %v6752 = vsel %vm6691, %v6751, %v6750
      %v6753 = vrot.slane %v6656, 4
      %v6754 = vsel %vm6694, %v6753, %v6752
      %v6755 = vrot.slane %v6657, 3
      %v6756 = vsel %vm6697, %v6755, %v6754
      %v6757 = vrot.slane %v6658, 2
      %v6758 = vsel %vm6700, %v6757, %v6756
      %v6759 = vrot.slane %v6659, 1
      %v6760 = vsel %vm6703, %v6759, %v6758
      %v6761 = vrot.slane %v6661, 7
      %v6762 = vsel %vm6685, %v6761, %v6660
      %v6763 = vrot.slane %v6662, 6
      %v6764 = vsel %vm6688, %v6763, %v6762
      %v6765 = vrot.slane %v6663, 5
      %v6766 = vsel %vm6691, %v6765, %v6764
      %v6767 = vrot.slane %v6664, 4
      %v6768 = vsel %vm6694, %v6767, %v6766
      %v6769 = vrot.slane %v6665, 3
      %v6770 = vsel %vm6697, %v6769, %v6768
      %v6771 = vrot.slane %v6666, 2
      %v6772 = vsel %vm6700, %v6771, %v6770
      %v6773 = vrot.slane %v6667, 1
      %v6774 = vsel %vm6703, %v6773, %v6772
      %v6775 = vrot.slane %v6669, 7
      %v6776 = vsel %vm6685, %v6775, %v6668
      %v6777 = vrot.slane %v6670, 6
      %v6778 = vsel %vm6688, %v6777, %v6776
      %v6779 = vrot.slane %v6671, 5
      %v6780 = vsel %vm6691, %v6779, %v6778
      %v6781 = vrot.slane %v6672, 4
      %v6782 = vsel %vm6694, %v6781, %v6780
      %v6783 = vrot.slane %v6673, 3
      %v6784 = vsel %vm6697, %v6783, %v6782
      %v6785 = vrot.slane %v6674, 2
      %v6786 = vsel %vm6700, %v6785, %v6784
      %v6787 = vrot.slane %v6675, 1
      %v6788 = vsel %vm6703, %v6787, %v6786
      %v6789 = vrot.slane %v6677, 7
      %v6790 = vsel %vm6685, %v6789, %v6676
      %v6791 = vrot.slane %v6678, 6
      %v6792 = vsel %vm6688, %v6791, %v6790
      %v6793 = vrot.slane %v6679, 5
      %v6794 = vsel %vm6691, %v6793, %v6792
      %v6795 = vrot.slane %v6680, 4
      %v6796 = vsel %vm6694, %v6795, %v6794
      %v6797 = vrot.slane %v6681, 3
      %v6798 = vsel %vm6697, %v6797, %v6796
      %v6799 = vrot.slane %v6682, 2
      %v6800 = vsel %vm6700, %v6799, %v6798
      %v6801 = vrot.slane %v6683, 1
      %v6802 = vsel %vm6703, %v6801, %v6800
      %v6803 = vpack.c.b16 %v6704, %v6704
      %v6804 = vpack.c.b16 %v6718, %v6718
      %v6805 = vpack.c.b16 %v6732, %v6732
      %v6806 = vpack.c.b16 %v6746, %v6746
      %v6807 = vpack.c.b16 %v6760, %v6760
      %v6808 = vpack.c.b16 %v6774, %v6774
      %v6809 = vpack.c.b16 %v6788, %v6788
      %v6810 = vpack.c.b16 %v6802, %v6802
      %6819 = vst [vmem:[%s278] sm:$0xf] %v6803
      %6820 = vst [vmem:[%s278 + $0x4] sm:$0xf] %v6804
      %6821 = vst [vmem:[%s278 + $0x8] sm:$0xf] %v6805
      %6822 = vst [vmem:[%s278 + $0xc] sm:$0xf] %v6806
      %6823 = vst [vmem:[%s278 + $0x10] sm:$0xf] %v6807
      %6824 = vst [vmem:[%s278 + $0x14] sm:$0xf] %v6808
      %6825 = vst [vmem:[%s278 + $0x18] sm:$0xf] %v6809
      %6826 = vst [vmem:[%s278 + $0x1c] sm:$0xf] %v6810
      %p6827 = scmp.lt.s32.totalorder %s18, 1
      %s6828 = scalar_select %p6827, %s18, 1
      %s6829 = smul.addr %s6828, 8
      %s6830 = smul.addr %s6829, 4
      %s6831 = scalar_lea.vmem %s7, %s6830
      // Predicated region
      $region49: #{convblock_forward.1} parent=47 // pred_check
        %p6832 = pneg %p188
      $region50: #{convblock_forward.1} parent=47 // pred_check_branch
        %6834 = sbr.rel (%p6832) target = $region52
      $region51: #{convblock_forward.1} parent=47 // pred_region
        _
      $region52: #{convblock_forward.1} parent=47 // pred_fallthru
        _
    $region48: #{convblock_forward.1} parent=5 // pred_fallthru
      _
    %p6835 = scmp.le.s32.totalorder 2, %s13
    // Predicated region
    $region53: #{convblock_forward.1} parent=5 // pred_check
      %p6836 = pneg %p6835
    $region54: #{convblock_forward.1} parent=5 // pred_check_branch
      %6838 = sbr.rel (%p6836) target = $region56
    $region55: #{convblock_forward.1} parent=5 // pred_region
      %s6839 = ssub.s32 %s13, 2
      // Predicated region
      $region57: #{convblock_forward.1} parent=55 // pred_check
        %p6840 = pneg %p194
      $region58: #{convblock_forward.1} parent=55 // pred_check_branch
        %6842 = sbr.rel (%p6840) target = $region60
      $region59: #{convblock_forward.1} parent=55 // pred_region
        %p6843 = scmp.lt.s32.totalorder %s19, 1
        %s6844 = scalar_select %p6843, %s19, 1
        %s6845 = smul.addr %s6844, 8
        %s6846 = smul.addr %s6845, 4
        %s6847 = scalar_lea.vmem %s7, %s6846
      $region60: #{convblock_forward.1} parent=55 // pred_fallthru
        _
    $region56: #{convblock_forward.1} parent=5 // pred_fallthru
      _
  $region6: #{convblock_forward.1} parent=0 // loop_footer
    %s17 = sadd.s32 1, %s13
  $region7: #{convblock_forward.1} parent=0 // loop_footer_branch
    %12 = sbr.rel target = $region3
  $region8: #{convblock_forward.1} parent=0 // loop_exit
    _

</llo_original>
